<compile_context>
chip_gen: v5e
topology: v5e:2x2
jax: 0.10.0
libtpu: 0.0.40
codegen_flags: <defaults>
</compile_context>

<pallas_src>
import math

import jax
import jax.numpy as jnp
from jax.experimental import pallas as pl
from jax.experimental.pallas import tpu as pltpu


# ----------------------------- model config -------------------------------
OUT_FEATURES = 16
N_HIDDENS = 3

# ViT tower ("image_model" with head=Identity)
IMG_SIZE = 16
PATCH = 4
IMG_CH = 3
VIT_DIM = 32          # head.in_features for each tower
VIT_DEPTH = 2
VIT_HEADS = 2
VIT_MLP = VIT_DIM * 4
VIT_SEQ = (IMG_SIZE // PATCH) ** 2 + 1                 # 17 = cls + 16 patches
PATCH_PIX = IMG_CH * PATCH * PATCH                     # 48
PATCH_AUG = VIT_SEQ + PATCH_PIX                        # 65 = [position indicators | pixels]

# BERT tower ("bert_model" with output_hidden_states=True)
VOCAB = 100
BERT_DIM = 32         # config.hidden_size
BERT_LAYERS = 2
BERT_HEADS = 2
BERT_FF = 64
MAX_POS = 16
TYPE_VOCAB = 2

VEC_ROWS = 8          # rows per layer in the packed small-vector slab
VEC_WIDTH = 128       # lane width of the packed slab (one vreg row)
NEG_INF = -1e9        # block-diagonal attention mask value


# ------------------------- in-kernel math helpers --------------------------
def _layernorm(x, g, b, eps):
    mu = jnp.mean(x, axis=-1, keepdims=True)
    var = jnp.mean(jnp.square(x - mu), axis=-1, keepdims=True)
    return (x - mu) * jax.lax.rsqrt(var + eps) * g + b


def _gelu(x):
    # TODO(synk): nn.GELU / HF "gelu" use exact erf; tanh approximation kept
    # (erf lowering in Mosaic is not guaranteed; tanh goes to the EUP slot).
    c = math.sqrt(2.0 / math.pi)
    return 0.5 * x * (1.0 + jnp.tanh(c * (x + 0.044715 * x * x * x)))


def _softmax_rows(s):
    m = jnp.max(s, axis=-1, keepdims=True)
    p = jnp.exp(s - m)
    return p / jnp.sum(p, axis=-1, keepdims=True)          # exact division (parity)


def _l2_rows(x, eps=1e-12):
    # F.normalize(x, p=2, dim=-1), exact division (model output).
    n = jnp.sqrt(jnp.sum(x * x, axis=-1, keepdims=True))
    return x / jnp.maximum(n, eps)


def _mha(x_ln, qkv_w, qkv_b, projw_ref, proj_idx, proj_b, n_heads, d_model, bias):
    """Multi-head self-attention on a flattened (M, D) slab.

    `bias` is an additive (M, M) mask (block-diagonal + optional padding bias)
    so images/sequences packed into the slab never attend to each other.
    QKV is one fused matmul; head-merge uses leading-axis indexed proj weights.
    """
    dh = d_model // n_heads
    scale = 1.0 / math.sqrt(dh)
    qkv = jnp.dot(x_ln, qkv_w, preferred_element_type=jnp.float32) + qkv_b   # (M, 3D)
    out = None
    for h in range(n_heads):
        q = qkv[:, h * dh:(h + 1) * dh]
        k = qkv[:, d_model + h * dh:d_model + (h + 1) * dh]
        v = qkv[:, 2 * d_model + h * dh:2 * d_model + (h + 1) * dh]
        s = jax.lax.dot_general(q, k, (((1,), (1,)), ((), ())),
                                preferred_element_type=jnp.float32) * scale + bias
        p = _softmax_rows(s)
        o_h = jnp.dot(p, v, preferred_element_type=jnp.float32)             # (M, dh)
        w_out = projw_ref[proj_idx + (h,)]                                   # (dh, D)
        contrib = jnp.dot(o_h, w_out, preferred_element_type=jnp.float32)
        out = contrib if out is None else out + contrib
    return out + proj_b


def _mlp(x_ln, w1, b1, w2, b2):
    h = _gelu(jnp.dot(x_ln, w1, preferred_element_type=jnp.float32) + b1)
    return jnp.dot(h, w2, preferred_element_type=jnp.float32) + b2


# ----------------------------- Pallas kernels -----------------------------
def _vit_tower_kernel(patches_ref, mask_ref, wemb_ref, qkvw_ref, projw_ref,
                      fc1w_ref, fc2w_ref, vecs_ref, o_ref):
    """One grid step = the whole image batch through one full ViT tower."""
    Bn = o_ref.shape[1]
    BS = Bn * VIT_SEQ
    mask = mask_ref[...]                                                     # (BS, BS)
    # One augmented matmul = patch embed + bias + cls token + pos embed.
    x = jnp.dot(patches_ref[0], wemb_ref[0], preferred_element_type=jnp.float32)  # (BS, D)
    for l in range(VIT_DEPTH):
        v = vecs_ref[0, l]                                                   # (8, 128)
        ln1_g, ln1_b = v[0:1, :VIT_DIM], v[1:2, :VIT_DIM]
        qkv_b = v[2:3, :3 * VIT_DIM]
        proj_b = v[3:4, :VIT_DIM]
        ln2_g, ln2_b = v[4:5, :VIT_DIM], v[5:6, :VIT_DIM]
        fc1_b = v[6:7, :VIT_MLP]
        fc2_b = v[7:8, :VIT_DIM]
        h = _layernorm(x, ln1_g, ln1_b, 1e-6)
        x = x + _mha(h, qkvw_ref[0, l], qkv_b, projw_ref, (0, l), proj_b,
                     VIT_HEADS, VIT_DIM, mask)
        h = _layernorm(x, ln2_g, ln2_b, 1e-6)
        x = x + _mlp(h, fc1w_ref[0, l], fc1_b, fc2w_ref[0, l], fc2_b)
    vf = vecs_ref[0, VIT_DEPTH]
    norm_g, norm_b = vf[0:1, :VIT_DIM], vf[1:2, :VIT_DIM]
    # Select the cls row of each image via a tiny selection matmul (row b*S),
    # then apply the final LayerNorm (LN is per-row, so order is equivalent).
    col = jax.lax.broadcasted_iota(jnp.int32, (Bn, BS), 1)
    row = jax.lax.broadcasted_iota(jnp.int32, (Bn, BS), 0)
    sel = jnp.where(col == row * VIT_SEQ, 1.0, 0.0).astype(jnp.float32)      # (Bn, BS)
    cls = jnp.dot(sel, x, preferred_element_type=jnp.float32)                # (Bn, D)
    o_ref[0] = _layernorm(cls, norm_g, norm_b, 1e-6).astype(o_ref.dtype)


def _bert_kernel(emb_ref, bias_ref, qkvw_ref, projw_ref, iw_ref, ow_ref,
                 vecs_ref, tw_ref, o_ref):
    """One grid step = one chunk (pos or neg) of B sequences, flattened to a
    (B*S, D) slab, through the whole BERT encoder + pooling + classifier + L2."""
    Bn = o_ref.shape[1]
    BS = emb_ref.shape[1]
    S = BS // Bn
    bias = bias_ref[0]                                                       # (BS, BS) additive
    vf = vecs_ref[BERT_LAYERS]
    emb_ln_g, emb_ln_b = vf[0:1, :BERT_DIM], vf[1:2, :BERT_DIM]
    text_b = vf[2:3, :OUT_FEATURES]
    x = _layernorm(emb_ref[0], emb_ln_g, emb_ln_b, 1e-12)                    # (BS, D)
    hidden_states = [x]
    for l in range(BERT_LAYERS):
        v = vecs_ref[l]
        qkv_b = v[0:1, :3 * BERT_DIM]
        proj_b = v[1:2, :BERT_DIM]
        aln_g, aln_b = v[2:3, :BERT_DIM], v[3:4, :BERT_DIM]
        inter_b = v[4:5, :BERT_FF]
        out_b = v[5:6, :BERT_DIM]
        oln_g, oln_b = v[6:7, :BERT_DIM], v[7:8, :BERT_DIM]
        attn = _mha(x, qkvw_ref[l], qkv_b, projw_ref, (l,), proj_b,
                    BERT_HEADS, BERT_DIM, bias)
        x = _layernorm(x + attn, aln_g, aln_b, 1e-12)
        m = _mlp(x, iw_ref[l], inter_b, ow_ref[l], out_b)
        x = _layernorm(x + m, oln_g, oln_b, 1e-12)
        hidden_states.append(x)
    # torch: cat([hidden_states[-i] for i in range(n_hiddens)], -1) -> mean(seq)
    # -> classifier.  (-0 == 0 quirk kept on purpose to mirror the reference.)
    # Per-sequence mean pooling as one (Bn, BS) pooling matmul; the lane-concat
    # is folded into the leading-axis indexed classifier weight slices.
    col = jax.lax.broadcasted_iota(jnp.int32, (Bn, BS), 1)
    row = jax.lax.broadcasted_iota(jnp.int32, (Bn, BS), 0)
    in_seq = (col >= row * S) & (col < row * S + S)
    pool = jnp.where(in_seq, 1.0 / S, 0.0).astype(jnp.float32)               # (Bn, BS)
    acc = None
    for i in range(N_HIDDENS):
        pooled = jnp.dot(pool, hidden_states[-i], preferred_element_type=jnp.float32)  # (Bn, D)
        contrib = jnp.dot(pooled, tw_ref[i], preferred_element_type=jnp.float32)        # (Bn, OUT)
        acc = contrib if acc is None else acc + contrib
    logits = acc + text_b
    o_ref[0] = _l2_rows(logits).astype(o_ref.dtype)


# ----------------------------- parameters ---------------------------------
def _dense(key, fan_in, fan_out):
    kw, kb = jax.random.split(key)
    w = jax.random.normal(kw, (fan_in, fan_out), jnp.float32) * 0.02
    b = jax.random.normal(kb, (fan_out,), jnp.float32) * 0.02
    return w, b


def make_vit_params(key):
    n_patches = (IMG_SIZE // PATCH) ** 2
    keys = jax.random.split(key, 3 + VIT_DEPTH)
    patch_w, patch_b = _dense(keys[0], PATCH_PIX, VIT_DIM)
    cls_token = jax.random.normal(keys[1], (1, 1, VIT_DIM), jnp.float32) * 0.02
    pos_embed = jax.random.normal(keys[2], (1, n_patches + 1, VIT_DIM), jnp.float32) * 0.02
    blocks = []
    for d in range(VIT_DEPTH):
        bk = jax.random.split(keys[3 + d], 4)
        qkv_w, qkv_b = _dense(bk[0], VIT_DIM, 3 * VIT_DIM)
        proj_w, proj_b = _dense(bk[1], VIT_DIM, VIT_DIM)
        fc1_w, fc1_b = _dense(bk[2], VIT_DIM, VIT_MLP)
        fc2_w, fc2_b = _dense(bk[3], VIT_MLP, VIT_DIM)
        blocks.append(dict(
            ln1_g=jnp.ones(VIT_DIM, jnp.float32), ln1_b=jnp.zeros(VIT_DIM, jnp.float32),
            ln2_g=jnp.ones(VIT_DIM, jnp.float32), ln2_b=jnp.zeros(VIT_DIM, jnp.float32),
            qkv_w=qkv_w, qkv_b=qkv_b, proj_w=proj_w, proj_b=proj_b,
            fc1_w=fc1_w, fc1_b=fc1_b, fc2_w=fc2_w, fc2_b=fc2_b))
    return dict(patch_w=patch_w, patch_b=patch_b, cls=cls_token, pos=pos_embed,
                blocks=blocks,
                norm_g=jnp.ones(VIT_DIM, jnp.float32),
                norm_b=jnp.zeros(VIT_DIM, jnp.float32))


def make_bert_params(key):
    keys = jax.random.split(key, 3 + BERT_LAYERS)
    word_emb = jax.random.normal(keys[0], (VOCAB, BERT_DIM), jnp.float32) * 0.02
    pos_emb = jax.random.normal(keys[1], (MAX_POS, BERT_DIM), jnp.float32) * 0.02
    type_emb = jax.random.normal(keys[2], (TYPE_VOCAB, BERT_DIM), jnp.float32) * 0.02
    layers = []
    for l in range(BERT_LAYERS):
        lk = jax.random.split(keys[3 + l], 4)
        qkv_w, qkv_b = _dense(lk[0], BERT_DIM, 3 * BERT_DIM)
        proj_w, proj_b = _dense(lk[1], BERT_DIM, BERT_DIM)
        inter_w, inter_b = _dense(lk[2], BERT_DIM, BERT_FF)
        out_w, out_b = _dense(lk[3], BERT_FF, BERT_DIM)
        layers.append(dict(
            qkv_w=qkv_w, qkv_b=qkv_b, proj_w=proj_w, proj_b=proj_b,
            attn_ln_g=jnp.ones(BERT_DIM, jnp.float32), attn_ln_b=jnp.zeros(BERT_DIM, jnp.float32),
            inter_w=inter_w, inter_b=inter_b, out_w=out_w, out_b=out_b,
            out_ln_g=jnp.ones(BERT_DIM, jnp.float32), out_ln_b=jnp.zeros(BERT_DIM, jnp.float32)))
    return dict(word_emb=word_emb, pos_emb=pos_emb, type_emb=type_emb,
                emb_ln_g=jnp.ones(BERT_DIM, jnp.float32),
                emb_ln_b=jnp.zeros(BERT_DIM, jnp.float32),
                layers=layers)


def _pack_vec_rows(vectors, width=VEC_WIDTH, n_rows=VEC_ROWS):
    """Pack a list of small 1-D vectors into a single (n_rows, width) slab."""
    rows = []
    for v in vectors:
        v = jnp.asarray(v, jnp.float32).reshape(-1)
        rows.append(jnp.pad(v, (0, width - v.shape[0])))
    while len(rows) < n_rows:
        rows.append(jnp.zeros((width,), jnp.float32))
    return jnp.stack(rows, axis=0)


def pack_vit_towers(towers):
    """Stack both towers on a leading tower axis; fuse cls/bias/pos into W_aug,
    repack proj for leading-axis head indexing, pack all small vectors."""
    D = VIT_DIM
    dh = D // VIT_HEADS

    def one_tower(p):
        pos = p["pos"].reshape(VIT_SEQ, D)
        # Row s of the "position" part of W_aug: pos[s] + (cls if s==0 else patch bias).
        head_add = jnp.concatenate(
            [p["cls"].reshape(1, D), jnp.tile(p["patch_b"].reshape(1, D), (VIT_SEQ - 1, 1))],
            axis=0)
        wemb = jnp.concatenate([pos + head_add, p["patch_w"]], axis=0)      # (PATCH_AUG, D)
        qkv_w = jnp.stack([b["qkv_w"] for b in p["blocks"]], axis=0)        # (DEPTH, D, 3D)
        proj_w = jnp.stack([b["proj_w"].reshape(VIT_HEADS, dh, D) for b in p["blocks"]],
                           axis=0)                                          # (DEPTH, H, dh, D)
        fc1_w = jnp.stack([b["fc1_w"] for b in p["blocks"]], axis=0)
        fc2_w = jnp.stack([b["fc2_w"] for b in p["blocks"]], axis=0)
        vec_layers = [_pack_vec_rows([b["ln1_g"], b["ln1_b"], b["qkv_b"], b["proj_b"],
                                      b["ln2_g"], b["ln2_b"], b["fc1_b"], b["fc2_b"]])
                      for b in p["blocks"]]
        vec_layers.append(_pack_vec_rows([p["norm_g"], p["norm_b"]]))
        vecs = jnp.stack(vec_layers, axis=0)                                # (DEPTH+1, 8, 128)
        return dict(wemb=wemb, qkv_w=qkv_w, proj_w=proj_w,
                    fc1_w=fc1_w, fc2_w=fc2_w, vecs=vecs)

    packed = [one_tower(t) for t in towers]
    return {k: jnp.stack([pk[k] for pk in packed], axis=0) for k in packed[0]}


def pack_bert(p, text_cls_w, text_cls_b):
    D = BERT_DIM
    dh = D // BERT_HEADS
    layers = p["layers"]
    qkv_w = jnp.stack([l["qkv_w"] for l in layers], axis=0)                 # (L, D, 3D)
    proj_w = jnp.stack([l["proj_w"].reshape(BERT_HEADS, dh, D) for l in layers], axis=0)
    inter_w = jnp.stack([l["inter_w"] for l in layers], axis=0)             # (L, D, FF)
    out_w = jnp.stack([l["out_w"] for l in layers], axis=0)                 # (L, FF, D)
    vec_layers = [_pack_vec_rows([l["qkv_b"], l["proj_b"], l["attn_ln_g"], l["attn_ln_b"],
                                  l["inter_b"], l["out_b"], l["out_ln_g"], l["out_ln_b"]])
                  for l in layers]
    vec_layers.append(_pack_vec_rows([p["emb_ln_g"], p["emb_ln_b"], text_cls_b]))
    vecs = jnp.stack(vec_layers, axis=0)                                    # (L+1, 8, 128)
    return dict(word_emb=p["word_emb"], pos_emb=p["pos_emb"], type_emb=p["type_emb"],
                qkv_w=qkv_w, proj_w=proj_w, inter_w=inter_w, out_w=out_w, vecs=vecs,
                text_cls_w=text_cls_w.reshape(N_HIDDENS, D, OUT_FEATURES))


def make_params(key):
    k1, k2, k3, k4, k5 = jax.random.split(key, 5)
    bg_vit = make_vit_params(k1)
    cr_vit = make_vit_params(k2)
    bert = make_bert_params(k3)
    img_cls_w, img_cls_b = _dense(k4, 2 * VIT_DIM, OUT_FEATURES)   # n_features = 2 * head.in_features
    text_cls_w, text_cls_b = _dense(k5, BERT_DIM * N_HIDDENS, OUT_FEATURES)
    return dict(
        vit=pack_vit_towers([bg_vit, cr_vit]),     # tower 0 = background, tower 1 = cropped
        bert=pack_bert(bert, text_cls_w, text_cls_b),
        img_cls_w=img_cls_w,
        img_cls_b=img_cls_b.reshape(1, OUT_FEATURES),
    )


# ----------------------------- host-side glue -------------------------------
def _patchify_aug(img_nchw):
    """NCHW image -> flattened augmented patch matrix (B*S, PATCH_AUG).
    The first VIT_SEQ columns are per-position indicators (selecting
    pos+cls / pos+bias rows of W_aug); the rest are the patch pixels."""
    B, C, H, W = img_nchw.shape
    gh, gw = H // PATCH, W // PATCH
    p = img_nchw.reshape(B, C, gh, PATCH, gw, PATCH)
    p = p.transpose(0, 2, 4, 1, 3, 5).reshape(B, gh * gw, C * PATCH * PATCH)
    pix = jnp.concatenate(
        [jnp.zeros((B, 1, C * PATCH * PATCH), jnp.float32), p.astype(jnp.float32)], axis=1)
    onehot = jnp.tile(jnp.eye(VIT_SEQ, dtype=jnp.float32)[None], (B, 1, 1))     # (B, S, S)
    aug = jnp.concatenate([onehot, pix], axis=-1)                               # (B, S, PATCH_AUG)
    return aug.reshape(B * VIT_SEQ, PATCH_AUG)


def _blockdiag_mask(n_blocks, seq):
    """Additive (n_blocks*seq, n_blocks*seq) mask: 0 inside a block, NEG_INF across."""
    ids = jnp.arange(n_blocks * seq) // seq
    return jnp.where(ids[:, None] == ids[None, :], 0.0, NEG_INF).astype(jnp.float32)


# ----------------------------- model forward -------------------------------
def forward_text(params, input_ids, attention_mask, token_type_ids):
    bp = params["bert"]
    Bt, S = input_ids.shape                      # Bt = 2*B (pos chunk + neg chunk)
    NC = 2                                       # pos / neg chunks (one per grid step)
    Bc = Bt // NC
    BS = Bc * S
    # TODO(synk): embedding table gathers stay in plain JAX (no useful Pallas gather at this scale).
    word = jnp.take(bp["word_emb"], input_ids, axis=0)
    pos = bp["pos_emb"][:S][None, :, :]
    tok = jnp.take(bp["type_emb"], token_type_ids, axis=0)
    emb = (word + pos + tok).astype(jnp.float32).reshape(NC, BS, BERT_DIM)
    # Combined additive bias: per-key padding mask + block-diagonal sequence isolation.
    col_bias = ((1.0 - attention_mask.astype(jnp.float32)) * -10000.0).reshape(NC, 1, BS)
    bias = col_bias + _blockdiag_mask(Bc, S)[None]                            # (NC, BS, BS)

    def wfull(shape):
        return pl.BlockSpec(shape, lambda c: (0,) * len(shape))

    out = pl.pallas_call(
        _bert_kernel,
        out_shape=jax.ShapeDtypeStruct((NC, Bc, OUT_FEATURES), jnp.float32),
        grid=(NC,),
        in_specs=[
            pl.BlockSpec((1, BS, BERT_DIM), lambda c: (c, 0, 0)),
            pl.BlockSpec((1, BS, BS), lambda c: (c, 0, 0)),
            wfull((BERT_LAYERS, BERT_DIM, 3 * BERT_DIM)),
            wfull((BERT_LAYERS, BERT_HEADS, BERT_DIM // BERT_HEADS, BERT_DIM)),
            wfull((BERT_LAYERS, BERT_DIM, BERT_FF)),
            wfull((BERT_LAYERS, BERT_FF, BERT_DIM)),
            wfull((BERT_LAYERS + 1, VEC_ROWS, VEC_WIDTH)),
            wfull((N_HIDDENS, BERT_DIM, OUT_FEATURES)),
        ],
        out_specs=pl.BlockSpec((1, Bc, OUT_FEATURES), lambda c: (c, 0, 0)),
        compiler_params=pltpu.CompilerParams(dimension_semantics=("parallel",)),
    )(emb, bias, bp["qkv_w"], bp["proj_w"], bp["inter_w"], bp["out_w"],
      bp["vecs"], bp["text_cls_w"])
    return out.reshape(Bt, OUT_FEATURES)


def forward_image(params, background_image, cropped_image):
    vp = params["vit"]
    B = background_image.shape[0]
    BS = B * VIT_SEQ
    # TODO(synk): patch extraction (reshape/transpose) and the tiny stack stay in plain JAX.
    patches = jnp.stack(
        [_patchify_aug(background_image), _patchify_aug(cropped_image)], axis=0)  # (2, BS, PATCH_AUG)
    mask = _blockdiag_mask(B, VIT_SEQ)                                             # (BS, BS)

    def tfull(shape):
        return pl.BlockSpec((1,) + shape, lambda t: (t,) + (0,) * len(shape))

    feats = pl.pallas_call(
        _vit_tower_kernel,
        out_shape=jax.ShapeDtypeStruct((2, B, VIT_DIM), jnp.float32),
        grid=(2,),
        in_specs=[
            pl.BlockSpec((1, BS, PATCH_AUG), lambda t: (t, 0, 0)),
            pl.BlockSpec((BS, BS), lambda t: (0, 0)),
            tfull((PATCH_AUG, VIT_DIM)),
            tfull((VIT_DEPTH, VIT_DIM, 3 * VIT_DIM)),
            tfull((VIT_DEPTH, VIT_HEADS, VIT_DIM // VIT_HEADS, VIT_DIM)),
            tfull((VIT_DEPTH, VIT_DIM, VIT_MLP)),
            tfull((VIT_DEPTH, VIT_MLP, VIT_DIM)),
            tfull((VIT_DEPTH + 1, VEC_ROWS, VEC_WIDTH)),
        ],
        out_specs=pl.BlockSpec((1, B, VIT_DIM), lambda t: (t, 0, 0)),
        compiler_params=pltpu.CompilerParams(dimension_semantics=("parallel",)),
    )(patches, mask, vp["wemb"], vp["qkv_w"], vp["proj_w"],
      vp["fc1_w"], vp["fc2_w"], vp["vecs"])

    # Image head kept in plain jnp (a (B, 64) @ (64, 16) matmul) — saves a
    # third pallas_call and the feature HBM round trip through another kernel.
    cat = jnp.concatenate([feats[0], feats[1]], axis=-1)                     # (B, 2D)
    logits = cat @ params["img_cls_w"] + params["img_cls_b"]
    norm = jnp.sqrt(jnp.sum(logits * logits, axis=-1, keepdims=True))
    return logits / jnp.maximum(norm, 1e-12)


def forward(params, background_image, cropped_image,
            pos_input_ids, pos_attention_mask, pos_token_type_ids,
            neg_input_ids, neg_attention_mask, neg_token_type_ids):
    B = pos_input_ids.shape[0]
    # pos + neg text go through ONE BERT kernel (grid axis = pos/neg chunk).
    input_ids = jnp.concatenate([pos_input_ids, neg_input_ids], axis=0)
    attention_mask = jnp.concatenate([pos_attention_mask, neg_attention_mask], axis=0)
    token_type_ids = jnp.concatenate([pos_token_type_ids, neg_token_type_ids], axis=0)
    text = forward_text(params, input_ids, attention_mask, token_type_ids)   # (2B, OUT), normalized
    out_image = forward_image(params, background_image, cropped_image)       # (B, OUT), normalized
    return out_image, text[:B], text[B:]


# ----------------------------- main ----------------------------------------
if __name__ == "__main__":
    key = jax.random.PRNGKey(0)
    k_params, k_inp = jax.random.split(key)
    params = make_params(k_params)

    ks = jax.random.split(k_inp, 4)
    B, S = 2, 8
    background_image = jax.random.normal(ks[0], (B, IMG_CH, IMG_SIZE, IMG_SIZE), jnp.float32)
    cropped_image = jax.random.normal(ks[1], (B, IMG_CH, IMG_SIZE, IMG_SIZE), jnp.float32)
    pos_input_ids = jax.random.randint(ks[2], (B, S), 0, VOCAB, dtype=jnp.int32)
    pos_attention_mask = jnp.concatenate(
        [jnp.ones((B, 6), jnp.int32), jnp.zeros((B, 2), jnp.int32)], axis=1)
    pos_token_type_ids = jnp.zeros((B, S), jnp.int32)
    neg_input_ids = jax.random.randint(ks[3], (B, S), 0, VOCAB, dtype=jnp.int32)
    neg_attention_mask = jnp.ones((B, S), jnp.int32)
    neg_token_type_ids = jnp.zeros((B, S), jnp.int32)

    fwd = jax.jit(forward)
    out_image, pos_text, neg_text = fwd(
        params, background_image, cropped_image,
        pos_input_ids, pos_attention_mask, pos_token_type_ids,
        neg_input_ids, neg_attention_mask, neg_token_type_ids)
    jax.block_until_ready((out_image, pos_text, neg_text))

    assert out_image.shape == (B, OUT_FEATURES)
    assert pos_text.shape == (B, OUT_FEATURES)
    assert neg_text.shape == (B, OUT_FEATURES)
    print("KERNEL_OK")
</pallas_src>

<mosaic_0001>
module attributes {stable_mosaic.version = 11 : i64} {
  func.func @_vit_tower_kernel(%arg0: i32, %arg1: memref<1x34x65xf32, #tpu.memory_space<vmem>>, %arg2: memref<34x34xf32, #tpu.memory_space<vmem>>, %arg3: memref<1x65x32xf32, #tpu.memory_space<vmem>>, %arg4: memref<1x2x32x96xf32, #tpu.memory_space<vmem>>, %arg5: memref<1x2x2x16x32xf32, #tpu.memory_space<vmem>>, %arg6: memref<1x2x32x128xf32, #tpu.memory_space<vmem>>, %arg7: memref<1x2x128x32xf32, #tpu.memory_space<vmem>>, %arg8: memref<1x3x8x128xf32, #tpu.memory_space<vmem>>, %arg9: memref<1x2x32xf32, #tpu.memory_space<vmem>>) attributes {dimension_semantics = [#tpu.dimension_semantics<parallel>], iteration_bounds = array<i64: 2>, scalar_prefetch = 0 : i64, scratch_operands = 0 : i64, tpu.core_type = #tpu.core_type<tc>, window_params = [{transform_indices = @transform_0, window_bounds = array<i64: 1, 34, 65>}, {pipeline_mode = #tpu.pipeline_mode<synchronous>, transform_indices = @transform_1, window_bounds = array<i64: 34, 34>}, {transform_indices = @transform_2, window_bounds = array<i64: 1, 65, 32>}, {transform_indices = @transform_3, window_bounds = array<i64: 1, 2, 32, 96>}, {transform_indices = @transform_4, window_bounds = array<i64: 1, 2, 2, 16, 32>}, {transform_indices = @transform_5, window_bounds = array<i64: 1, 2, 32, 128>}, {transform_indices = @transform_6, window_bounds = array<i64: 1, 2, 128, 32>}, {transform_indices = @transform_7, window_bounds = array<i64: 1, 3, 8, 128>}, {transform_indices = @transform_8, window_bounds = array<i64: 1, 2, 32>}]} {
    %c0 = arith.constant 0 : index
    %c0_0 = arith.constant 0 : index
    %0 = vector.load %arg2[%c0, %c0_0] : memref<34x34xf32, #tpu.memory_space<vmem>>, vector<34x34xf32>
    %c0_1 = arith.constant 0 : index
    %c0_2 = arith.constant 0 : index
    %c0_3 = arith.constant 0 : index
    %1 = vector.load %arg1[%c0_1, %c0_2, %c0_3] : memref<1x34x65xf32, #tpu.memory_space<vmem>>, vector<1x34x65xf32>
    %2 = vector.shape_cast %1 : vector<1x34x65xf32> to vector<34x65xf32>
    %c0_4 = arith.constant 0 : index
    %c0_5 = arith.constant 0 : index
    %c0_6 = arith.constant 0 : index
    %3 = vector.load %arg3[%c0_4, %c0_5, %c0_6] : memref<1x65x32xf32, #tpu.memory_space<vmem>>, vector<1x65x32xf32>
    %4 = vector.shape_cast %3 : vector<1x65x32xf32> to vector<65x32xf32>
    %cst = arith.constant dense<0.000000e+00> : vector<34x32xf32>
    %5 = tpu.matmul %2, %4, %cst {dimension_numbers = #tpu.dot_dimension_numbers<[1], [0], [0], [1], [0, 0, 1, 1], [], []>} : vector<34x65xf32>, vector<65x32xf32>, vector<34x32xf32> -> vector<34x32xf32>
    %c0_7 = arith.constant 0 : index
    %c0_8 = arith.constant 0 : index
    %c0_9 = arith.constant 0 : index
    %c0_10 = arith.constant 0 : index
    %6 = vector.load %arg8[%c0_7, %c0_8, %c0_9, %c0_10] : memref<1x3x8x128xf32, #tpu.memory_space<vmem>>, vector<1x1x8x128xf32>
    %7 = vector.shape_cast %6 : vector<1x1x8x128xf32> to vector<8x128xf32>
    %8 = vector.extract_strided_slice %7 {offsets = [0, 0], sizes = [1, 32], strides = [1, 1]} : vector<8x128xf32> to vector<1x32xf32>
    %9 = vector.extract_strided_slice %7 {offsets = [1, 0], sizes = [1, 32], strides = [1, 1]} : vector<8x128xf32> to vector<1x32xf32>
    %10 = vector.extract_strided_slice %7 {offsets = [2, 0], sizes = [1, 96], strides = [1, 1]} : vector<8x128xf32> to vector<1x96xf32>
    %11 = vector.extract_strided_slice %7 {offsets = [3, 0], sizes = [1, 32], strides = [1, 1]} : vector<8x128xf32> to vector<1x32xf32>
    %12 = vector.extract_strided_slice %7 {offsets = [4, 0], sizes = [1, 32], strides = [1, 1]} : vector<8x128xf32> to vector<1x32xf32>
    %13 = vector.extract_strided_slice %7 {offsets = [5, 0], sizes = [1, 32], strides = [1, 1]} : vector<8x128xf32> to vector<1x32xf32>
    %14 = vector.extract_strided_slice %7 {offsets = [6, 0], sizes = [1, 128], strides = [1, 1]} : vector<8x128xf32> to vector<1x128xf32>
    %15 = vector.extract_strided_slice %7 {offsets = [7, 0], sizes = [1, 32], strides = [1, 1]} : vector<8x128xf32> to vector<1x32xf32>
    %cst_11 = arith.constant dense<0.000000e+00> : vector<34xf32>
    %16 = vector.multi_reduction <add>, %5, %cst_11 [1] : vector<34x32xf32> to vector<34xf32>
    %17 = vector.shape_cast %16 : vector<34xf32> to vector<34x1xf32>
    %cst_12 = arith.constant 3.200000e+01 : f32
    %18 = vector.broadcast %cst_12 : f32 to vector<34x1xf32>
    %19 = arith.divf %17, %18 : vector<34x1xf32>
    %20 = vector.broadcast %19 : vector<34x1xf32> to vector<34x32xf32>
    %21 = arith.subf %5, %20 : vector<34x32xf32>
    %22 = arith.mulf %21, %21 : vector<34x32xf32>
    %cst_13 = arith.constant dense<0.000000e+00> : vector<34xf32>
    %23 = vector.multi_reduction <add>, %22, %cst_13 [1] : vector<34x32xf32> to vector<34xf32>
    %24 = vector.shape_cast %23 : vector<34xf32> to vector<34x1xf32>
    %cst_14 = arith.constant 3.200000e+01 : f32
    %25 = vector.broadcast %cst_14 : f32 to vector<34x1xf32>
    %26 = arith.divf %24, %25 : vector<34x1xf32>
    %27 = vector.broadcast %19 : vector<34x1xf32> to vector<34x32xf32>
    %28 = arith.subf %5, %27 : vector<34x32xf32>
    %cst_15 = arith.constant 9.99999997E-7 : f32
    %29 = vector.broadcast %cst_15 : f32 to vector<34x1xf32>
    %30 = arith.addf %26, %29 : vector<34x1xf32>
    %31 = math.rsqrt %30 : vector<34x1xf32>
    %32 = vector.broadcast %31 : vector<34x1xf32> to vector<34x32xf32>
    %33 = arith.mulf %28, %32 : vector<34x32xf32>
    %34 = vector.broadcast %8 : vector<1x32xf32> to vector<34x32xf32>
    %35 = arith.mulf %33, %34 : vector<34x32xf32>
    %36 = vector.broadcast %9 : vector<1x32xf32> to vector<34x32xf32>
    %37 = arith.addf %35, %36 : vector<34x32xf32>
    %c0_16 = arith.constant 0 : index
    %c0_17 = arith.constant 0 : index
    %c0_18 = arith.constant 0 : index
    %c0_19 = arith.constant 0 : index
    %38 = vector.load %arg4[%c0_16, %c0_17, %c0_18, %c0_19] : memref<1x2x32x96xf32, #tpu.memory_space<vmem>>, vector<1x1x32x96xf32>
    %39 = vector.shape_cast %38 : vector<1x1x32x96xf32> to vector<32x96xf32>
    %cst_20 = arith.constant dense<0.000000e+00> : vector<34x96xf32>
    %40 = tpu.matmul %37, %39, %cst_20 {dimension_numbers = #tpu.dot_dimension_numbers<[1], [0], [0], [1], [0, 0, 1, 1], [], []>} : vector<34x32xf32>, vector<32x96xf32>, vector<34x96xf32> -> vector<34x96xf32>
    %41 = vector.broadcast %10 : vector<1x96xf32> to vector<34x96xf32>
    %42 = arith.addf %40, %41 : vector<34x96xf32>
    %43 = vector.extract_strided_slice %42 {offsets = [0, 0], sizes = [34, 16], strides = [1, 1]} : vector<34x96xf32> to vector<34x16xf32>
    %44 = vector.extract_strided_slice %42 {offsets = [0, 32], sizes = [34, 16], strides = [1, 1]} : vector<34x96xf32> to vector<34x16xf32>
    %45 = vector.extract_strided_slice %42 {offsets = [0, 64], sizes = [34, 16], strides = [1, 1]} : vector<34x96xf32> to vector<34x16xf32>
    %cst_21 = arith.constant dense<0.000000e+00> : vector<34x34xf32>
    %46 = tpu.matmul %43, %44, %cst_21 {dimension_numbers = #tpu.dot_dimension_numbers<[1], [1], [0], [0], [0, 0, 1, 0], [], []>} : vector<34x16xf32>, vector<34x16xf32>, vector<34x34xf32> -> vector<34x34xf32>
    %cst_22 = arith.constant 2.500000e-01 : f32
    %47 = vector.broadcast %cst_22 : f32 to vector<34x34xf32>
    %48 = arith.mulf %46, %47 : vector<34x34xf32>
    %49 = arith.addf %48, %0 : vector<34x34xf32>
    %cst_23 = arith.constant dense<0xFF800000> : vector<34xf32>
    %50 = vector.multi_reduction <maximumf>, %49, %cst_23 [1] : vector<34x34xf32> to vector<34xf32>
    %51 = vector.shape_cast %50 : vector<34xf32> to vector<34x1xf32>
    %52 = vector.broadcast %51 : vector<34x1xf32> to vector<34x34xf32>
    %53 = arith.subf %49, %52 : vector<34x34xf32>
    %54 = math.exp %53 : vector<34x34xf32>
    %cst_24 = arith.constant dense<0.000000e+00> : vector<34xf32>
    %55 = vector.multi_reduction <add>, %54, %cst_24 [1] : vector<34x34xf32> to vector<34xf32>
    %56 = vector.shape_cast %55 : vector<34xf32> to vector<34x1xf32>
    %57 = vector.broadcast %56 : vector<34x1xf32> to vector<34x34xf32>
    %58 = arith.divf %54, %57 : vector<34x34xf32>
    %cst_25 = arith.constant dense<0.000000e+00> : vector<34x16xf32>
    %59 = tpu.matmul %58, %45, %cst_25 {dimension_numbers = #tpu.dot_dimension_numbers<[1], [0], [0], [1], [0, 0, 1, 1], [], []>} : vector<34x34xf32>, vector<34x16xf32>, vector<34x16xf32> -> vector<34x16xf32>
    %c0_26 = arith.constant 0 : index
    %c0_27 = arith.constant 0 : index
    %c0_28 = arith.constant 0 : index
    %c0_29 = arith.constant 0 : index
    %c0_30 = arith.constant 0 : index
    %60 = vector.load %arg5[%c0_26, %c0_27, %c0_28, %c0_29, %c0_30] : memref<1x2x2x16x32xf32, #tpu.memory_space<vmem>>, vector<1x1x1x16x32xf32>
    %61 = vector.shape_cast %60 : vector<1x1x1x16x32xf32> to vector<16x32xf32>
    %cst_31 = arith.constant dense<0.000000e+00> : vector<34x32xf32>
    %62 = tpu.matmul %59, %61, %cst_31 {dimension_numbers = #tpu.dot_dimension_numbers<[1], [0], [0], [1], [0, 0, 1, 1], [], []>} : vector<34x16xf32>, vector<16x32xf32>, vector<34x32xf32> -> vector<34x32xf32>
    %63 = vector.extract_strided_slice %42 {offsets = [0, 16], sizes = [34, 16], strides = [1, 1]} : vector<34x96xf32> to vector<34x16xf32>
    %64 = vector.extract_strided_slice %42 {offsets = [0, 48], sizes = [34, 16], strides = [1, 1]} : vector<34x96xf32> to vector<34x16xf32>
    %65 = vector.extract_strided_slice %42 {offsets = [0, 80], sizes = [34, 16], strides = [1, 1]} : vector<34x96xf32> to vector<34x16xf32>
    %cst_32 = arith.constant dense<0.000000e+00> : vector<34x34xf32>
    %66 = tpu.matmul %63, %64, %cst_32 {dimension_numbers = #tpu.dot_dimension_numbers<[1], [1], [0], [0], [0, 0, 1, 0], [], []>} : vector<34x16xf32>, vector<34x16xf32>, vector<34x34xf32> -> vector<34x34xf32>
    %cst_33 = arith.constant 2.500000e-01 : f32
    %67 = vector.broadcast %cst_33 : f32 to vector<34x34xf32>
    %68 = arith.mulf %66, %67 : vector<34x34xf32>
    %69 = arith.addf %68, %0 : vector<34x34xf32>
    %cst_34 = arith.constant dense<0xFF800000> : vector<34xf32>
    %70 = vector.multi_reduction <maximumf>, %69, %cst_34 [1] : vector<34x34xf32> to vector<34xf32>
    %71 = vector.shape_cast %70 : vector<34xf32> to vector<34x1xf32>
    %72 = vector.broadcast %71 : vector<34x1xf32> to vector<34x34xf32>
    %73 = arith.subf %69, %72 : vector<34x34xf32>
    %74 = math.exp %73 : vector<34x34xf32>
    %cst_35 = arith.constant dense<0.000000e+00> : vector<34xf32>
    %75 = vector.multi_reduction <add>, %74, %cst_35 [1] : vector<34x34xf32> to vector<34xf32>
    %76 = vector.shape_cast %75 : vector<34xf32> to vector<34x1xf32>
    %77 = vector.broadcast %76 : vector<34x1xf32> to vector<34x34xf32>
    %78 = arith.divf %74, %77 : vector<34x34xf32>
    %cst_36 = arith.constant dense<0.000000e+00> : vector<34x16xf32>
    %79 = tpu.matmul %78, %65, %cst_36 {dimension_numbers = #tpu.dot_dimension_numbers<[1], [0], [0], [1], [0, 0, 1, 1], [], []>} : vector<34x34xf32>, vector<34x16xf32>, vector<34x16xf32> -> vector<34x16xf32>
    %c0_37 = arith.constant 0 : index
    %c0_38 = arith.constant 0 : index
    %c1 = arith.constant 1 : index
    %c0_39 = arith.constant 0 : index
    %c0_40 = arith.constant 0 : index
    %80 = vector.load %arg5[%c0_37, %c0_38, %c1, %c0_39, %c0_40] : memref<1x2x2x16x32xf32, #tpu.memory_space<vmem>>, vector<1x1x1x16x32xf32>
    %81 = vector.shape_cast %80 : vector<1x1x1x16x32xf32> to vector<16x32xf32>
    %cst_41 = arith.constant dense<0.000000e+00> : vector<34x32xf32>
    %82 = tpu.matmul %79, %81, %cst_41 {dimension_numbers = #tpu.dot_dimension_numbers<[1], [0], [0], [1], [0, 0, 1, 1], [], []>} : vector<34x16xf32>, vector<16x32xf32>, vector<34x32xf32> -> vector<34x32xf32>
    %83 = arith.addf %62, %82 : vector<34x32xf32>
    %84 = vector.broadcast %11 : vector<1x32xf32> to vector<34x32xf32>
    %85 = arith.addf %83, %84 : vector<34x32xf32>
    %86 = arith.addf %5, %85 : vector<34x32xf32>
    %cst_42 = arith.constant dense<0.000000e+00> : vector<34xf32>
    %87 = vector.multi_reduction <add>, %86, %cst_42 [1] : vector<34x32xf32> to vector<34xf32>
    %88 = vector.shape_cast %87 : vector<34xf32> to vector<34x1xf32>
    %cst_43 = arith.constant 3.200000e+01 : f32
    %89 = vector.broadcast %cst_43 : f32 to vector<34x1xf32>
    %90 = arith.divf %88, %89 : vector<34x1xf32>
    %91 = vector.broadcast %90 : vector<34x1xf32> to vector<34x32xf32>
    %92 = arith.subf %86, %91 : vector<34x32xf32>
    %93 = arith.mulf %92, %92 : vector<34x32xf32>
    %cst_44 = arith.constant dense<0.000000e+00> : vector<34xf32>
    %94 = vector.multi_reduction <add>, %93, %cst_44 [1] : vector<34x32xf32> to vector<34xf32>
    %95 = vector.shape_cast %94 : vector<34xf32> to vector<34x1xf32>
    %cst_45 = arith.constant 3.200000e+01 : f32
    %96 = vector.broadcast %cst_45 : f32 to vector<34x1xf32>
    %97 = arith.divf %95, %96 : vector<34x1xf32>
    %98 = vector.broadcast %90 : vector<34x1xf32> to vector<34x32xf32>
    %99 = arith.subf %86, %98 : vector<34x32xf32>
    %cst_46 = arith.constant 9.99999997E-7 : f32
    %100 = vector.broadcast %cst_46 : f32 to vector<34x1xf32>
    %101 = arith.addf %97, %100 : vector<34x1xf32>
    %102 = math.rsqrt %101 : vector<34x1xf32>
    %103 = vector.broadcast %102 : vector<34x1xf32> to vector<34x32xf32>
    %104 = arith.mulf %99, %103 : vector<34x32xf32>
    %105 = vector.broadcast %12 : vector<1x32xf32> to vector<34x32xf32>
    %106 = arith.mulf %104, %105 : vector<34x32xf32>
    %107 = vector.broadcast %13 : vector<1x32xf32> to vector<34x32xf32>
    %108 = arith.addf %106, %107 : vector<34x32xf32>
    %c0_47 = arith.constant 0 : index
    %c0_48 = arith.constant 0 : index
    %c0_49 = arith.constant 0 : index
    %c0_50 = arith.constant 0 : index
    %109 = vector.load %arg6[%c0_47, %c0_48, %c0_49, %c0_50] : memref<1x2x32x128xf32, #tpu.memory_space<vmem>>, vector<1x1x32x128xf32>
    %110 = vector.shape_cast %109 : vector<1x1x32x128xf32> to vector<32x128xf32>
    %c0_51 = arith.constant 0 : index
    %c0_52 = arith.constant 0 : index
    %c0_53 = arith.constant 0 : index
    %c0_54 = arith.constant 0 : index
    %111 = vector.load %arg7[%c0_51, %c0_52, %c0_53, %c0_54] : memref<1x2x128x32xf32, #tpu.memory_space<vmem>>, vector<1x1x128x32xf32>
    %112 = vector.shape_cast %111 : vector<1x1x128x32xf32> to vector<128x32xf32>
    %cst_55 = arith.constant dense<0.000000e+00> : vector<34x128xf32>
    %113 = tpu.matmul %108, %110, %cst_55 {dimension_numbers = #tpu.dot_dimension_numbers<[1], [0], [0], [1], [0, 0, 1, 1], [], []>} : vector<34x32xf32>, vector<32x128xf32>, vector<34x128xf32> -> vector<34x128xf32>
    %114 = vector.broadcast %14 : vector<1x128xf32> to vector<34x128xf32>
    %115 = arith.addf %113, %114 : vector<34x128xf32>
    %cst_56 = arith.constant 5.000000e-01 : f32
    %116 = vector.broadcast %cst_56 : f32 to vector<34x128xf32>
    %117 = arith.mulf %116, %115 : vector<34x128xf32>
    %cst_57 = arith.constant 4.471500e-02 : f32
    %118 = vector.broadcast %cst_57 : f32 to vector<34x128xf32>
    %119 = arith.mulf %118, %115 : vector<34x128xf32>
    %120 = arith.mulf %119, %115 : vector<34x128xf32>
    %121 = arith.mulf %120, %115 : vector<34x128xf32>
    %122 = arith.addf %115, %121 : vector<34x128xf32>
    %cst_58 = arith.constant 0.797884583 : f32
    %123 = vector.broadcast %cst_58 : f32 to vector<34x128xf32>
    %124 = arith.mulf %123, %122 : vector<34x128xf32>
    %125 = math.tanh %124 : vector<34x128xf32>
    %cst_59 = arith.constant 1.000000e+00 : f32
    %126 = vector.broadcast %cst_59 : f32 to vector<34x128xf32>
    %127 = arith.addf %126, %125 : vector<34x128xf32>
    %128 = arith.mulf %117, %127 : vector<34x128xf32>
    %cst_60 = arith.constant dense<0.000000e+00> : vector<34x32xf32>
    %129 = tpu.matmul %128, %112, %cst_60 {dimension_numbers = #tpu.dot_dimension_numbers<[1], [0], [0], [1], [0, 0, 1, 1], [], []>} : vector<34x128xf32>, vector<128x32xf32>, vector<34x32xf32> -> vector<34x32xf32>
    %130 = vector.broadcast %15 : vector<1x32xf32> to vector<34x32xf32>
    %131 = arith.addf %129, %130 : vector<34x32xf32>
    %132 = arith.addf %86, %131 : vector<34x32xf32>
    %c0_61 = arith.constant 0 : index
    %c1_62 = arith.constant 1 : index
    %c0_63 = arith.constant 0 : index
    %c0_64 = arith.constant 0 : index
    %133 = vector.load %arg8[%c0_61, %c1_62, %c0_63, %c0_64] : memref<1x3x8x128xf32, #tpu.memory_space<vmem>>, vector<1x1x8x128xf32>
    %134 = vector.shape_cast %133 : vector<1x1x8x128xf32> to vector<8x128xf32>
    %135 = vector.extract_strided_slice %134 {offsets = [0, 0], sizes = [1, 32], strides = [1, 1]} : vector<8x128xf32> to vector<1x32xf32>
    %136 = vector.extract_strided_slice %134 {offsets = [1, 0], sizes = [1, 32], strides = [1, 1]} : vector<8x128xf32> to vector<1x32xf32>
    %137 = vector.extract_strided_slice %134 {offsets = [2, 0], sizes = [1, 96], strides = [1, 1]} : vector<8x128xf32> to vector<1x96xf32>
    %138 = vector.extract_strided_slice %134 {offsets = [3, 0], sizes = [1, 32], strides = [1, 1]} : vector<8x128xf32> to vector<1x32xf32>
    %139 = vector.extract_strided_slice %134 {offsets = [4, 0], sizes = [1, 32], strides = [1, 1]} : vector<8x128xf32> to vector<1x32xf32>
    %140 = vector.extract_strided_slice %134 {offsets = [5, 0], sizes = [1, 32], strides = [1, 1]} : vector<8x128xf32> to vector<1x32xf32>
    %141 = vector.extract_strided_slice %134 {offsets = [6, 0], sizes = [1, 128], strides = [1, 1]} : vector<8x128xf32> to vector<1x128xf32>
    %142 = vector.extract_strided_slice %134 {offsets = [7, 0], sizes = [1, 32], strides = [1, 1]} : vector<8x128xf32> to vector<1x32xf32>
    %cst_65 = arith.constant dense<0.000000e+00> : vector<34xf32>
    %143 = vector.multi_reduction <add>, %132, %cst_65 [1] : vector<34x32xf32> to vector<34xf32>
    %144 = vector.shape_cast %143 : vector<34xf32> to vector<34x1xf32>
    %cst_66 = arith.constant 3.200000e+01 : f32
    %145 = vector.broadcast %cst_66 : f32 to vector<34x1xf32>
    %146 = arith.divf %144, %145 : vector<34x1xf32>
    %147 = vector.broadcast %146 : vector<34x1xf32> to vector<34x32xf32>
    %148 = arith.subf %132, %147 : vector<34x32xf32>
    %149 = arith.mulf %148, %148 : vector<34x32xf32>
    %cst_67 = arith.constant dense<0.000000e+00> : vector<34xf32>
    %150 = vector.multi_reduction <add>, %149, %cst_67 [1] : vector<34x32xf32> to vector<34xf32>
    %151 = vector.shape_cast %150 : vector<34xf32> to vector<34x1xf32>
    %cst_68 = arith.constant 3.200000e+01 : f32
    %152 = vector.broadcast %cst_68 : f32 to vector<34x1xf32>
    %153 = arith.divf %151, %152 : vector<34x1xf32>
    %154 = vector.broadcast %146 : vector<34x1xf32> to vector<34x32xf32>
    %155 = arith.subf %132, %154 : vector<34x32xf32>
    %cst_69 = arith.constant 9.99999997E-7 : f32
    %156 = vector.broadcast %cst_69 : f32 to vector<34x1xf32>
    %157 = arith.addf %153, %156 : vector<34x1xf32>
    %158 = math.rsqrt %157 : vector<34x1xf32>
    %159 = vector.broadcast %158 : vector<34x1xf32> to vector<34x32xf32>
    %160 = arith.mulf %155, %159 : vector<34x32xf32>
    %161 = vector.broadcast %135 : vector<1x32xf32> to vector<34x32xf32>
    %162 = arith.mulf %160, %161 : vector<34x32xf32>
    %163 = vector.broadcast %136 : vector<1x32xf32> to vector<34x32xf32>
    %164 = arith.addf %162, %163 : vector<34x32xf32>
    %c0_70 = arith.constant 0 : index
    %c1_71 = arith.constant 1 : index
    %c0_72 = arith.constant 0 : index
    %c0_73 = arith.constant 0 : index
    %165 = vector.load %arg4[%c0_70, %c1_71, %c0_72, %c0_73] : memref<1x2x32x96xf32, #tpu.memory_space<vmem>>, vector<1x1x32x96xf32>
    %166 = vector.shape_cast %165 : vector<1x1x32x96xf32> to vector<32x96xf32>
    %cst_74 = arith.constant dense<0.000000e+00> : vector<34x96xf32>
    %167 = tpu.matmul %164, %166, %cst_74 {dimension_numbers = #tpu.dot_dimension_numbers<[1], [0], [0], [1], [0, 0, 1, 1], [], []>} : vector<34x32xf32>, vector<32x96xf32>, vector<34x96xf32> -> vector<34x96xf32>
    %168 = vector.broadcast %137 : vector<1x96xf32> to vector<34x96xf32>
    %169 = arith.addf %167, %168 : vector<34x96xf32>
    %170 = vector.extract_strided_slice %169 {offsets = [0, 0], sizes = [34, 16], strides = [1, 1]} : vector<34x96xf32> to vector<34x16xf32>
    %171 = vector.extract_strided_slice %169 {offsets = [0, 32], sizes = [34, 16], strides = [1, 1]} : vector<34x96xf32> to vector<34x16xf32>
    %172 = vector.extract_strided_slice %169 {offsets = [0, 64], sizes = [34, 16], strides = [1, 1]} : vector<34x96xf32> to vector<34x16xf32>
    %cst_75 = arith.constant dense<0.000000e+00> : vector<34x34xf32>
    %173 = tpu.matmul %170, %171, %cst_75 {dimension_numbers = #tpu.dot_dimension_numbers<[1], [1], [0], [0], [0, 0, 1, 0], [], []>} : vector<34x16xf32>, vector<34x16xf32>, vector<34x34xf32> -> vector<34x34xf32>
    %cst_76 = arith.constant 2.500000e-01 : f32
    %174 = vector.broadcast %cst_76 : f32 to vector<34x34xf32>
    %175 = arith.mulf %173, %174 : vector<34x34xf32>
    %176 = arith.addf %175, %0 : vector<34x34xf32>
    %cst_77 = arith.constant dense<0xFF800000> : vector<34xf32>
    %177 = vector.multi_reduction <maximumf>, %176, %cst_77 [1] : vector<34x34xf32> to vector<34xf32>
    %178 = vector.shape_cast %177 : vector<34xf32> to vector<34x1xf32>
    %179 = vector.broadcast %178 : vector<34x1xf32> to vector<34x34xf32>
    %180 = arith.subf %176, %179 : vector<34x34xf32>
    %181 = math.exp %180 : vector<34x34xf32>
    %cst_78 = arith.constant dense<0.000000e+00> : vector<34xf32>
    %182 = vector.multi_reduction <add>, %181, %cst_78 [1] : vector<34x34xf32> to vector<34xf32>
    %183 = vector.shape_cast %182 : vector<34xf32> to vector<34x1xf32>
    %184 = vector.broadcast %183 : vector<34x1xf32> to vector<34x34xf32>
    %185 = arith.divf %181, %184 : vector<34x34xf32>
    %cst_79 = arith.constant dense<0.000000e+00> : vector<34x16xf32>
    %186 = tpu.matmul %185, %172, %cst_79 {dimension_numbers = #tpu.dot_dimension_numbers<[1], [0], [0], [1], [0, 0, 1, 1], [], []>} : vector<34x34xf32>, vector<34x16xf32>, vector<34x16xf32> -> vector<34x16xf32>
    %c0_80 = arith.constant 0 : index
    %c1_81 = arith.constant 1 : index
    %c0_82 = arith.constant 0 : index
    %c0_83 = arith.constant 0 : index
    %c0_84 = arith.constant 0 : index
    %187 = vector.load %arg5[%c0_80, %c1_81, %c0_82, %c0_83, %c0_84] : memref<1x2x2x16x32xf32, #tpu.memory_space<vmem>>, vector<1x1x1x16x32xf32>
    %188 = vector.shape_cast %187 : vector<1x1x1x16x32xf32> to vector<16x32xf32>
    %cst_85 = arith.constant dense<0.000000e+00> : vector<34x32xf32>
    %189 = tpu.matmul %186, %188, %cst_85 {dimension_numbers = #tpu.dot_dimension_numbers<[1], [0], [0], [1], [0, 0, 1, 1], [], []>} : vector<34x16xf32>, vector<16x32xf32>, vector<34x32xf32> -> vector<34x32xf32>
    %190 = vector.extract_strided_slice %169 {offsets = [0, 16], sizes = [34, 16], strides = [1, 1]} : vector<34x96xf32> to vector<34x16xf32>
    %191 = vector.extract_strided_slice %169 {offsets = [0, 48], sizes = [34, 16], strides = [1, 1]} : vector<34x96xf32> to vector<34x16xf32>
    %192 = vector.extract_strided_slice %169 {offsets = [0, 80], sizes = [34, 16], strides = [1, 1]} : vector<34x96xf32> to vector<34x16xf32>
    %cst_86 = arith.constant dense<0.000000e+00> : vector<34x34xf32>
    %193 = tpu.matmul %190, %191, %cst_86 {dimension_numbers = #tpu.dot_dimension_numbers<[1], [1], [0], [0], [0, 0, 1, 0], [], []>} : vector<34x16xf32>, vector<34x16xf32>, vector<34x34xf32> -> vector<34x34xf32>
    %cst_87 = arith.constant 2.500000e-01 : f32
    %194 = vector.broadcast %cst_87 : f32 to vector<34x34xf32>
    %195 = arith.mulf %193, %194 : vector<34x34xf32>
    %196 = arith.addf %195, %0 : vector<34x34xf32>
    %cst_88 = arith.constant dense<0xFF800000> : vector<34xf32>
    %197 = vector.multi_reduction <maximumf>, %196, %cst_88 [1] : vector<34x34xf32> to vector<34xf32>
    %198 = vector.shape_cast %197 : vector<34xf32> to vector<34x1xf32>
    %199 = vector.broadcast %198 : vector<34x1xf32> to vector<34x34xf32>
    %200 = arith.subf %196, %199 : vector<34x34xf32>
    %201 = math.exp %200 : vector<34x34xf32>
    %cst_89 = arith.constant dense<0.000000e+00> : vector<34xf32>
    %202 = vector.multi_reduction <add>, %201, %cst_89 [1] : vector<34x34xf32> to vector<34xf32>
    %203 = vector.shape_cast %202 : vector<34xf32> to vector<34x1xf32>
    %204 = vector.broadcast %203 : vector<34x1xf32> to vector<34x34xf32>
    %205 = arith.divf %201, %204 : vector<34x34xf32>
    %cst_90 = arith.constant dense<0.000000e+00> : vector<34x16xf32>
    %206 = tpu.matmul %205, %192, %cst_90 {dimension_numbers = #tpu.dot_dimension_numbers<[1], [0], [0], [1], [0, 0, 1, 1], [], []>} : vector<34x34xf32>, vector<34x16xf32>, vector<34x16xf32> -> vector<34x16xf32>
    %c0_91 = arith.constant 0 : index
    %c1_92 = arith.constant 1 : index
    %c1_93 = arith.constant 1 : index
    %c0_94 = arith.constant 0 : index
    %c0_95 = arith.constant 0 : index
    %207 = vector.load %arg5[%c0_91, %c1_92, %c1_93, %c0_94, %c0_95] : memref<1x2x2x16x32xf32, #tpu.memory_space<vmem>>, vector<1x1x1x16x32xf32>
    %208 = vector.shape_cast %207 : vector<1x1x1x16x32xf32> to vector<16x32xf32>
    %cst_96 = arith.constant dense<0.000000e+00> : vector<34x32xf32>
    %209 = tpu.matmul %206, %208, %cst_96 {dimension_numbers = #tpu.dot_dimension_numbers<[1], [0], [0], [1], [0, 0, 1, 1], [], []>} : vector<34x16xf32>, vector<16x32xf32>, vector<34x32xf32> -> vector<34x32xf32>
    %210 = arith.addf %189, %209 : vector<34x32xf32>
    %211 = vector.broadcast %138 : vector<1x32xf32> to vector<34x32xf32>
    %212 = arith.addf %210, %211 : vector<34x32xf32>
    %213 = arith.addf %132, %212 : vector<34x32xf32>
    %cst_97 = arith.constant dense<0.000000e+00> : vector<34xf32>
    %214 = vector.multi_reduction <add>, %213, %cst_97 [1] : vector<34x32xf32> to vector<34xf32>
    %215 = vector.shape_cast %214 : vector<34xf32> to vector<34x1xf32>
    %cst_98 = arith.constant 3.200000e+01 : f32
    %216 = vector.broadcast %cst_98 : f32 to vector<34x1xf32>
    %217 = arith.divf %215, %216 : vector<34x1xf32>
    %218 = vector.broadcast %217 : vector<34x1xf32> to vector<34x32xf32>
    %219 = arith.subf %213, %218 : vector<34x32xf32>
    %220 = arith.mulf %219, %219 : vector<34x32xf32>
    %cst_99 = arith.constant dense<0.000000e+00> : vector<34xf32>
    %221 = vector.multi_reduction <add>, %220, %cst_99 [1] : vector<34x32xf32> to vector<34xf32>
    %222 = vector.shape_cast %221 : vector<34xf32> to vector<34x1xf32>
    %cst_100 = arith.constant 3.200000e+01 : f32
    %223 = vector.broadcast %cst_100 : f32 to vector<34x1xf32>
    %224 = arith.divf %222, %223 : vector<34x1xf32>
    %225 = vector.broadcast %217 : vector<34x1xf32> to vector<34x32xf32>
    %226 = arith.subf %213, %225 : vector<34x32xf32>
    %cst_101 = arith.constant 9.99999997E-7 : f32
    %227 = vector.broadcast %cst_101 : f32 to vector<34x1xf32>
    %228 = arith.addf %224, %227 : vector<34x1xf32>
    %229 = math.rsqrt %228 : vector<34x1xf32>
    %230 = vector.broadcast %229 : vector<34x1xf32> to vector<34x32xf32>
    %231 = arith.mulf %226, %230 : vector<34x32xf32>
    %232 = vector.broadcast %139 : vector<1x32xf32> to vector<34x32xf32>
    %233 = arith.mulf %231, %232 : vector<34x32xf32>
    %234 = vector.broadcast %140 : vector<1x32xf32> to vector<34x32xf32>
    %235 = arith.addf %233, %234 : vector<34x32xf32>
    %c0_102 = arith.constant 0 : index
    %c1_103 = arith.constant 1 : index
    %c0_104 = arith.constant 0 : index
    %c0_105 = arith.constant 0 : index
    %236 = vector.load %arg6[%c0_102, %c1_103, %c0_104, %c0_105] : memref<1x2x32x128xf32, #tpu.memory_space<vmem>>, vector<1x1x32x128xf32>
    %237 = vector.shape_cast %236 : vector<1x1x32x128xf32> to vector<32x128xf32>
    %c0_106 = arith.constant 0 : index
    %c1_107 = arith.constant 1 : index
    %c0_108 = arith.constant 0 : index
    %c0_109 = arith.constant 0 : index
    %238 = vector.load %arg7[%c0_106, %c1_107, %c0_108, %c0_109] : memref<1x2x128x32xf32, #tpu.memory_space<vmem>>, vector<1x1x128x32xf32>
    %239 = vector.shape_cast %238 : vector<1x1x128x32xf32> to vector<128x32xf32>
    %cst_110 = arith.constant dense<0.000000e+00> : vector<34x128xf32>
    %240 = tpu.matmul %235, %237, %cst_110 {dimension_numbers = #tpu.dot_dimension_numbers<[1], [0], [0], [1], [0, 0, 1, 1], [], []>} : vector<34x32xf32>, vector<32x128xf32>, vector<34x128xf32> -> vector<34x128xf32>
    %241 = vector.broadcast %141 : vector<1x128xf32> to vector<34x128xf32>
    %242 = arith.addf %240, %241 : vector<34x128xf32>
    %cst_111 = arith.constant 5.000000e-01 : f32
    %243 = vector.broadcast %cst_111 : f32 to vector<34x128xf32>
    %244 = arith.mulf %243, %242 : vector<34x128xf32>
    %cst_112 = arith.constant 4.471500e-02 : f32
    %245 = vector.broadcast %cst_112 : f32 to vector<34x128xf32>
    %246 = arith.mulf %245, %242 : vector<34x128xf32>
    %247 = arith.mulf %246, %242 : vector<34x128xf32>
    %248 = arith.mulf %247, %242 : vector<34x128xf32>
    %249 = arith.addf %242, %248 : vector<34x128xf32>
    %cst_113 = arith.constant 0.797884583 : f32
    %250 = vector.broadcast %cst_113 : f32 to vector<34x128xf32>
    %251 = arith.mulf %250, %249 : vector<34x128xf32>
    %252 = math.tanh %251 : vector<34x128xf32>
    %cst_114 = arith.constant 1.000000e+00 : f32
    %253 = vector.broadcast %cst_114 : f32 to vector<34x128xf32>
    %254 = arith.addf %253, %252 : vector<34x128xf32>
    %255 = arith.mulf %244, %254 : vector<34x128xf32>
    %cst_115 = arith.constant dense<0.000000e+00> : vector<34x32xf32>
    %256 = tpu.matmul %255, %239, %cst_115 {dimension_numbers = #tpu.dot_dimension_numbers<[1], [0], [0], [1], [0, 0, 1, 1], [], []>} : vector<34x128xf32>, vector<128x32xf32>, vector<34x32xf32> -> vector<34x32xf32>
    %257 = vector.broadcast %142 : vector<1x32xf32> to vector<34x32xf32>
    %258 = arith.addf %256, %257 : vector<34x32xf32>
    %259 = arith.addf %213, %258 : vector<34x32xf32>
    %c0_116 = arith.constant 0 : index
    %c2 = arith.constant 2 : index
    %c0_117 = arith.constant 0 : index
    %c0_118 = arith.constant 0 : index
    %260 = vector.load %arg8[%c0_116, %c2, %c0_117, %c0_118] : memref<1x3x8x128xf32, #tpu.memory_space<vmem>>, vector<1x1x8x128xf32>
    %261 = vector.shape_cast %260 : vector<1x1x8x128xf32> to vector<8x128xf32>
    %262 = vector.extract_strided_slice %261 {offsets = [0, 0], sizes = [1, 32], strides = [1, 1]} : vector<8x128xf32> to vector<1x32xf32>
    %263 = vector.extract_strided_slice %261 {offsets = [1, 0], sizes = [1, 32], strides = [1, 1]} : vector<8x128xf32> to vector<1x32xf32>
    %264 = tpu.iota {dimensions = array<i32: 1>} : vector<2x34xi32>
    %265 = tpu.iota {dimensions = array<i32: 0>} : vector<2x34xi32>
    %c17_i32 = arith.constant 17 : i32
    %266 = vector.broadcast %c17_i32 : i32 to vector<2x34xi32>
    %267 = arith.muli %265, %266 : vector<2x34xi32>
    %268 = arith.cmpi eq, %264, %267 : vector<2x34xi32>
    %cst_119 = arith.constant 1.000000e+00 : f32
    %cst_120 = arith.constant 0.000000e+00 : f32
    %269 = vector.broadcast %cst_119 : f32 to vector<2x34xf32>
    %270 = vector.broadcast %cst_120 : f32 to vector<2x34xf32>
    %271 = arith.select %268, %269, %270 : vector<2x34xi1>, vector<2x34xf32>
    %cst_121 = arith.constant dense<0.000000e+00> : vector<2x32xf32>
    %272 = tpu.matmul %271, %259, %cst_121 {dimension_numbers = #tpu.dot_dimension_numbers<[1], [0], [0], [1], [0, 0, 1, 1], [], []>} : vector<2x34xf32>, vector<34x32xf32>, vector<2x32xf32> -> vector<2x32xf32>
    %cst_122 = arith.constant dense<0.000000e+00> : vector<2xf32>
    %273 = vector.multi_reduction <add>, %272, %cst_122 [1] : vector<2x32xf32> to vector<2xf32>
    %274 = vector.shape_cast %273 : vector<2xf32> to vector<2x1xf32>
    %cst_123 = arith.constant 3.200000e+01 : f32
    %275 = vector.broadcast %cst_123 : f32 to vector<2x1xf32>
    %276 = arith.divf %274, %275 : vector<2x1xf32>
    %277 = vector.broadcast %276 : vector<2x1xf32> to vector<2x32xf32>
    %278 = arith.subf %272, %277 : vector<2x32xf32>
    %279 = arith.mulf %278, %278 : vector<2x32xf32>
    %cst_124 = arith.constant dense<0.000000e+00> : vector<2xf32>
    %280 = vector.multi_reduction <add>, %279, %cst_124 [1] : vector<2x32xf32> to vector<2xf32>
    %281 = vector.shape_cast %280 : vector<2xf32> to vector<2x1xf32>
    %cst_125 = arith.constant 3.200000e+01 : f32
    %282 = vector.broadcast %cst_125 : f32 to vector<2x1xf32>
    %283 = arith.divf %281, %282 : vector<2x1xf32>
    %284 = vector.broadcast %276 : vector<2x1xf32> to vector<2x32xf32>
    %285 = arith.subf %272, %284 : vector<2x32xf32>
    %cst_126 = arith.constant 9.99999997E-7 : f32
    %286 = vector.broadcast %cst_126 : f32 to vector<2x1xf32>
    %287 = arith.addf %283, %286 : vector<2x1xf32>
    %288 = math.rsqrt %287 : vector<2x1xf32>
    %289 = vector.broadcast %288 : vector<2x1xf32> to vector<2x32xf32>
    %290 = arith.mulf %285, %289 : vector<2x32xf32>
    %291 = vector.broadcast %262 : vector<1x32xf32> to vector<2x32xf32>
    %292 = arith.mulf %290, %291 : vector<2x32xf32>
    %293 = vector.broadcast %263 : vector<1x32xf32> to vector<2x32xf32>
    %294 = arith.addf %292, %293 : vector<2x32xf32>
    %c0_127 = arith.constant 0 : index
    %c0_128 = arith.constant 0 : index
    %c0_129 = arith.constant 0 : index
    %295 = vector.load %arg9[%c0_127, %c0_128, %c0_129] : memref<1x2x32xf32, #tpu.memory_space<vmem>>, vector<1x2x32xf32>
    %296 = vector.shape_cast %295 : vector<1x2x32xf32> to vector<2x32xf32>
    %297 = vector.shape_cast %294 : vector<2x32xf32> to vector<1x2x32xf32>
    tpu.vector_store %arg9[%c0_127, %c0_128, %c0_129], %297 {strides = array<i32>} : memref<1x2x32xf32, #tpu.memory_space<vmem>>, vector<1x2x32xf32>,
    return
  }
  func.func @transform_0(%arg0: i32) -> (i32, i32, i32) {
    %c0_i32 = arith.constant 0 : i32
    %c0_i32_0 = arith.constant 0 : i32
    %c0_i32_1 = arith.constant 0 : i32
    return %arg0, %c0_i32, %c0_i32_0 : i32, i32, i32
  }
  func.func @transform_1(%arg0: i32) -> (i32, i32) {
    %c0_i32 = arith.constant 0 : i32
    %c0_i32_0 = arith.constant 0 : i32
    %c0_i32_1 = arith.constant 0 : i32
    return %c0_i32, %c0_i32_0 : i32, i32
  }
  func.func @transform_2(%arg0: i32) -> (i32, i32, i32) {
    %c0_i32 = arith.constant 0 : i32
    %c0_i32_0 = arith.constant 0 : i32
    %c0_i32_1 = arith.constant 0 : i32
    return %arg0, %c0_i32, %c0_i32_0 : i32, i32, i32
  }
  func.func @transform_3(%arg0: i32) -> (i32, i32, i32, i32) {
    %c0_i32 = arith.constant 0 : i32
    %c0_i32_0 = arith.constant 0 : i32
    %c0_i32_1 = arith.constant 0 : i32
    %c0_i32_2 = arith.constant 0 : i32
    return %arg0, %c0_i32, %c0_i32_0, %c0_i32_1 : i32, i32, i32, i32
  }
  func.func @transform_4(%arg0: i32) -> (i32, i32, i32, i32, i32) {
    %c0_i32 = arith.constant 0 : i32
    %c0_i32_0 = arith.constant 0 : i32
    %c0_i32_1 = arith.constant 0 : i32
    %c0_i32_2 = arith.constant 0 : i32
    %c0_i32_3 = arith.constant 0 : i32
    return %arg0, %c0_i32, %c0_i32_0, %c0_i32_1, %c0_i32_2 : i32, i32, i32, i32, i32
  }
  func.func @transform_5(%arg0: i32) -> (i32, i32, i32, i32) {
    %c0_i32 = arith.constant 0 : i32
    %c0_i32_0 = arith.constant 0 : i32
    %c0_i32_1 = arith.constant 0 : i32
    %c0_i32_2 = arith.constant 0 : i32
    return %arg0, %c0_i32, %c0_i32_0, %c0_i32_1 : i32, i32, i32, i32
  }
  func.func @transform_6(%arg0: i32) -> (i32, i32, i32, i32) {
    %c0_i32 = arith.constant 0 : i32
    %c0_i32_0 = arith.constant 0 : i32
    %c0_i32_1 = arith.constant 0 : i32
    %c0_i32_2 = arith.constant 0 : i32
    return %arg0, %c0_i32, %c0_i32_0, %c0_i32_1 : i32, i32, i32, i32
  }
  func.func @transform_7(%arg0: i32) -> (i32, i32, i32, i32) {
    %c0_i32 = arith.constant 0 : i32
    %c0_i32_0 = arith.constant 0 : i32
    %c0_i32_1 = arith.constant 0 : i32
    %c0_i32_2 = arith.constant 0 : i32
    return %arg0, %c0_i32, %c0_i32_0, %c0_i32_1 : i32, i32, i32, i32
  }
  func.func @transform_8(%arg0: i32) -> (i32, i32, i32) {
    %c0_i32 = arith.constant 0 : i32
    %c0_i32_0 = arith.constant 0 : i32
    %c0_i32_1 = arith.constant 0 : i32
    return %arg0, %c0_i32, %c0_i32_0 : i32, i32, i32
  }
}

module attributes {stable_mosaic.version = 11 : i64} {
  func.func @_bert_kernel(%arg0: i32, %arg1: memref<1x16x32xf32, #tpu.memory_space<vmem>>, %arg2: memref<1x16x16xf32, #tpu.memory_space<vmem>>, %arg3: memref<2x32x96xf32, #tpu.memory_space<vmem>>, %arg4: memref<2x2x16x32xf32, #tpu.memory_space<vmem>>, %arg5: memref<2x32x64xf32, #tpu.memory_space<vmem>>, %arg6: memref<2x64x32xf32, #tpu.memory_space<vmem>>, %arg7: memref<3x8x128xf32, #tpu.memory_space<vmem>>, %arg8: memref<3x32x16xf32, #tpu.memory_space<vmem>>, %arg9: memref<1x2x16xf32, #tpu.memory_space<vmem>>) attributes {dimension_semantics = [#tpu.dimension_semantics<parallel>], iteration_bounds = array<i64: 2>, scalar_prefetch = 0 : i64, scratch_operands = 0 : i64, tpu.core_type = #tpu.core_type<tc>, window_params = [{transform_indices = @transform_0, window_bounds = array<i64: 1, 16, 32>}, {transform_indices = @transform_1, window_bounds = array<i64: 1, 16, 16>}, {pipeline_mode = #tpu.pipeline_mode<synchronous>, transform_indices = @transform_2, window_bounds = array<i64: 2, 32, 96>}, {pipeline_mode = #tpu.pipeline_mode<synchronous>, transform_indices = @transform_3, window_bounds = array<i64: 2, 2, 16, 32>}, {pipeline_mode = #tpu.pipeline_mode<synchronous>, transform_indices = @transform_4, window_bounds = array<i64: 2, 32, 64>}, {pipeline_mode = #tpu.pipeline_mode<synchronous>, transform_indices = @transform_5, window_bounds = array<i64: 2, 64, 32>}, {pipeline_mode = #tpu.pipeline_mode<synchronous>, transform_indices = @transform_6, window_bounds = array<i64: 3, 8, 128>}, {pipeline_mode = #tpu.pipeline_mode<synchronous>, transform_indices = @transform_7, window_bounds = array<i64: 3, 32, 16>}, {transform_indices = @transform_8, window_bounds = array<i64: 1, 2, 16>}]} {
    %c0 = arith.constant 0 : index
    %c0_0 = arith.constant 0 : index
    %c0_1 = arith.constant 0 : index
    %0 = vector.load %arg2[%c0, %c0_0, %c0_1] : memref<1x16x16xf32, #tpu.memory_space<vmem>>, vector<1x16x16xf32>
    %1 = vector.shape_cast %0 : vector<1x16x16xf32> to vector<16x16xf32>
    %c2 = arith.constant 2 : index
    %c0_2 = arith.constant 0 : index
    %c0_3 = arith.constant 0 : index
    %2 = vector.load %arg7[%c2, %c0_2, %c0_3] : memref<3x8x128xf32, #tpu.memory_space<vmem>>, vector<1x8x128xf32>
    %3 = vector.shape_cast %2 : vector<1x8x128xf32> to vector<8x128xf32>
    %4 = vector.extract_strided_slice %3 {offsets = [0, 0], sizes = [1, 32], strides = [1, 1]} : vector<8x128xf32> to vector<1x32xf32>
    %5 = vector.extract_strided_slice %3 {offsets = [1, 0], sizes = [1, 32], strides = [1, 1]} : vector<8x128xf32> to vector<1x32xf32>
    %6 = vector.extract_strided_slice %3 {offsets = [2, 0], sizes = [1, 16], strides = [1, 1]} : vector<8x128xf32> to vector<1x16xf32>
    %c0_4 = arith.constant 0 : index
    %c0_5 = arith.constant 0 : index
    %c0_6 = arith.constant 0 : index
    %7 = vector.load %arg1[%c0_4, %c0_5, %c0_6] : memref<1x16x32xf32, #tpu.memory_space<vmem>>, vector<1x16x32xf32>
    %8 = vector.shape_cast %7 : vector<1x16x32xf32> to vector<16x32xf32>
    %cst = arith.constant dense<0.000000e+00> : vector<16xf32>
    %9 = vector.multi_reduction <add>, %8, %cst [1] : vector<16x32xf32> to vector<16xf32>
    %10 = vector.shape_cast %9 : vector<16xf32> to vector<16x1xf32>
    %cst_7 = arith.constant 3.200000e+01 : f32
    %11 = vector.broadcast %cst_7 : f32 to vector<16x1xf32>
    %12 = arith.divf %10, %11 : vector<16x1xf32>
    %13 = vector.broadcast %12 : vector<16x1xf32> to vector<16x32xf32>
    %14 = arith.subf %8, %13 : vector<16x32xf32>
    %15 = arith.mulf %14, %14 : vector<16x32xf32>
    %cst_8 = arith.constant dense<0.000000e+00> : vector<16xf32>
    %16 = vector.multi_reduction <add>, %15, %cst_8 [1] : vector<16x32xf32> to vector<16xf32>
    %17 = vector.shape_cast %16 : vector<16xf32> to vector<16x1xf32>
    %cst_9 = arith.constant 3.200000e+01 : f32
    %18 = vector.broadcast %cst_9 : f32 to vector<16x1xf32>
    %19 = arith.divf %17, %18 : vector<16x1xf32>
    %20 = vector.broadcast %12 : vector<16x1xf32> to vector<16x32xf32>
    %21 = arith.subf %8, %20 : vector<16x32xf32>
    %cst_10 = arith.constant 9.99999996E-13 : f32
    %22 = vector.broadcast %cst_10 : f32 to vector<16x1xf32>
    %23 = arith.addf %19, %22 : vector<16x1xf32>
    %24 = math.rsqrt %23 : vector<16x1xf32>
    %25 = vector.broadcast %24 : vector<16x1xf32> to vector<16x32xf32>
    %26 = arith.mulf %21, %25 : vector<16x32xf32>
    %27 = vector.broadcast %4 : vector<1x32xf32> to vector<16x32xf32>
    %28 = arith.mulf %26, %27 : vector<16x32xf32>
    %29 = vector.broadcast %5 : vector<1x32xf32> to vector<16x32xf32>
    %30 = arith.addf %28, %29 : vector<16x32xf32>
    %c0_11 = arith.constant 0 : index
    %c0_12 = arith.constant 0 : index
    %c0_13 = arith.constant 0 : index
    %31 = vector.load %arg7[%c0_11, %c0_12, %c0_13] : memref<3x8x128xf32, #tpu.memory_space<vmem>>, vector<1x8x128xf32>
    %32 = vector.shape_cast %31 : vector<1x8x128xf32> to vector<8x128xf32>
    %33 = vector.extract_strided_slice %32 {offsets = [0, 0], sizes = [1, 96], strides = [1, 1]} : vector<8x128xf32> to vector<1x96xf32>
    %34 = vector.extract_strided_slice %32 {offsets = [1, 0], sizes = [1, 32], strides = [1, 1]} : vector<8x128xf32> to vector<1x32xf32>
    %35 = vector.extract_strided_slice %32 {offsets = [2, 0], sizes = [1, 32], strides = [1, 1]} : vector<8x128xf32> to vector<1x32xf32>
    %36 = vector.extract_strided_slice %32 {offsets = [3, 0], sizes = [1, 32], strides = [1, 1]} : vector<8x128xf32> to vector<1x32xf32>
    %37 = vector.extract_strided_slice %32 {offsets = [4, 0], sizes = [1, 64], strides = [1, 1]} : vector<8x128xf32> to vector<1x64xf32>
    %38 = vector.extract_strided_slice %32 {offsets = [5, 0], sizes = [1, 32], strides = [1, 1]} : vector<8x128xf32> to vector<1x32xf32>
    %39 = vector.extract_strided_slice %32 {offsets = [6, 0], sizes = [1, 32], strides = [1, 1]} : vector<8x128xf32> to vector<1x32xf32>
    %40 = vector.extract_strided_slice %32 {offsets = [7, 0], sizes = [1, 32], strides = [1, 1]} : vector<8x128xf32> to vector<1x32xf32>
    %c0_14 = arith.constant 0 : index
    %c0_15 = arith.constant 0 : index
    %c0_16 = arith.constant 0 : index
    %41 = vector.load %arg3[%c0_14, %c0_15, %c0_16] : memref<2x32x96xf32, #tpu.memory_space<vmem>>, vector<1x32x96xf32>
    %42 = vector.shape_cast %41 : vector<1x32x96xf32> to vector<32x96xf32>
    %cst_17 = arith.constant dense<0.000000e+00> : vector<16x96xf32>
    %43 = tpu.matmul %30, %42, %cst_17 {dimension_numbers = #tpu.dot_dimension_numbers<[1], [0], [0], [1], [0, 0, 1, 1], [], []>} : vector<16x32xf32>, vector<32x96xf32>, vector<16x96xf32> -> vector<16x96xf32>
    %44 = vector.broadcast %33 : vector<1x96xf32> to vector<16x96xf32>
    %45 = arith.addf %43, %44 : vector<16x96xf32>
    %46 = vector.extract_strided_slice %45 {offsets = [0, 0], sizes = [16, 16], strides = [1, 1]} : vector<16x96xf32> to vector<16x16xf32>
    %47 = vector.extract_strided_slice %45 {offsets = [0, 32], sizes = [16, 16], strides = [1, 1]} : vector<16x96xf32> to vector<16x16xf32>
    %48 = vector.extract_strided_slice %45 {offsets = [0, 64], sizes = [16, 16], strides = [1, 1]} : vector<16x96xf32> to vector<16x16xf32>
    %cst_18 = arith.constant dense<0.000000e+00> : vector<16x16xf32>
    %49 = tpu.matmul %46, %47, %cst_18 {dimension_numbers = #tpu.dot_dimension_numbers<[1], [1], [0], [0], [0, 0, 1, 0], [], []>} : vector<16x16xf32>, vector<16x16xf32>, vector<16x16xf32> -> vector<16x16xf32>
    %cst_19 = arith.constant 2.500000e-01 : f32
    %50 = vector.broadcast %cst_19 : f32 to vector<16x16xf32>
    %51 = arith.mulf %49, %50 : vector<16x16xf32>
    %52 = arith.addf %51, %1 : vector<16x16xf32>
    %cst_20 = arith.constant dense<0xFF800000> : vector<16xf32>
    %53 = vector.multi_reduction <maximumf>, %52, %cst_20 [1] : vector<16x16xf32> to vector<16xf32>
    %54 = vector.shape_cast %53 : vector<16xf32> to vector<16x1xf32>
    %55 = vector.broadcast %54 : vector<16x1xf32> to vector<16x16xf32>
    %56 = arith.subf %52, %55 : vector<16x16xf32>
    %57 = math.exp %56 : vector<16x16xf32>
    %cst_21 = arith.constant dense<0.000000e+00> : vector<16xf32>
    %58 = vector.multi_reduction <add>, %57, %cst_21 [1] : vector<16x16xf32> to vector<16xf32>
    %59 = vector.shape_cast %58 : vector<16xf32> to vector<16x1xf32>
    %60 = vector.broadcast %59 : vector<16x1xf32> to vector<16x16xf32>
    %61 = arith.divf %57, %60 : vector<16x16xf32>
    %cst_22 = arith.constant dense<0.000000e+00> : vector<16x16xf32>
    %62 = tpu.matmul %61, %48, %cst_22 {dimension_numbers = #tpu.dot_dimension_numbers<[1], [0], [0], [1], [0, 0, 1, 1], [], []>} : vector<16x16xf32>, vector<16x16xf32>, vector<16x16xf32> -> vector<16x16xf32>
    %c0_23 = arith.constant 0 : index
    %c0_24 = arith.constant 0 : index
    %c0_25 = arith.constant 0 : index
    %c0_26 = arith.constant 0 : index
    %63 = vector.load %arg4[%c0_23, %c0_24, %c0_25, %c0_26] : memref<2x2x16x32xf32, #tpu.memory_space<vmem>>, vector<1x1x16x32xf32>
    %64 = vector.shape_cast %63 : vector<1x1x16x32xf32> to vector<16x32xf32>
    %cst_27 = arith.constant dense<0.000000e+00> : vector<16x32xf32>
    %65 = tpu.matmul %62, %64, %cst_27 {dimension_numbers = #tpu.dot_dimension_numbers<[1], [0], [0], [1], [0, 0, 1, 1], [], []>} : vector<16x16xf32>, vector<16x32xf32>, vector<16x32xf32> -> vector<16x32xf32>
    %66 = vector.extract_strided_slice %45 {offsets = [0, 16], sizes = [16, 16], strides = [1, 1]} : vector<16x96xf32> to vector<16x16xf32>
    %67 = vector.extract_strided_slice %45 {offsets = [0, 48], sizes = [16, 16], strides = [1, 1]} : vector<16x96xf32> to vector<16x16xf32>
    %68 = vector.extract_strided_slice %45 {offsets = [0, 80], sizes = [16, 16], strides = [1, 1]} : vector<16x96xf32> to vector<16x16xf32>
    %cst_28 = arith.constant dense<0.000000e+00> : vector<16x16xf32>
    %69 = tpu.matmul %66, %67, %cst_28 {dimension_numbers = #tpu.dot_dimension_numbers<[1], [1], [0], [0], [0, 0, 1, 0], [], []>} : vector<16x16xf32>, vector<16x16xf32>, vector<16x16xf32> -> vector<16x16xf32>
    %cst_29 = arith.constant 2.500000e-01 : f32
    %70 = vector.broadcast %cst_29 : f32 to vector<16x16xf32>
    %71 = arith.mulf %69, %70 : vector<16x16xf32>
    %72 = arith.addf %71, %1 : vector<16x16xf32>
    %cst_30 = arith.constant dense<0xFF800000> : vector<16xf32>
    %73 = vector.multi_reduction <maximumf>, %72, %cst_30 [1] : vector<16x16xf32> to vector<16xf32>
    %74 = vector.shape_cast %73 : vector<16xf32> to vector<16x1xf32>
    %75 = vector.broadcast %74 : vector<16x1xf32> to vector<16x16xf32>
    %76 = arith.subf %72, %75 : vector<16x16xf32>
    %77 = math.exp %76 : vector<16x16xf32>
    %cst_31 = arith.constant dense<0.000000e+00> : vector<16xf32>
    %78 = vector.multi_reduction <add>, %77, %cst_31 [1] : vector<16x16xf32> to vector<16xf32>
    %79 = vector.shape_cast %78 : vector<16xf32> to vector<16x1xf32>
    %80 = vector.broadcast %79 : vector<16x1xf32> to vector<16x16xf32>
    %81 = arith.divf %77, %80 : vector<16x16xf32>
    %cst_32 = arith.constant dense<0.000000e+00> : vector<16x16xf32>
    %82 = tpu.matmul %81, %68, %cst_32 {dimension_numbers = #tpu.dot_dimension_numbers<[1], [0], [0], [1], [0, 0, 1, 1], [], []>} : vector<16x16xf32>, vector<16x16xf32>, vector<16x16xf32> -> vector<16x16xf32>
    %c0_33 = arith.constant 0 : index
    %c1 = arith.constant 1 : index
    %c0_34 = arith.constant 0 : index
    %c0_35 = arith.constant 0 : index
    %83 = vector.load %arg4[%c0_33, %c1, %c0_34, %c0_35] : memref<2x2x16x32xf32, #tpu.memory_space<vmem>>, vector<1x1x16x32xf32>
    %84 = vector.shape_cast %83 : vector<1x1x16x32xf32> to vector<16x32xf32>
    %cst_36 = arith.constant dense<0.000000e+00> : vector<16x32xf32>
    %85 = tpu.matmul %82, %84, %cst_36 {dimension_numbers = #tpu.dot_dimension_numbers<[1], [0], [0], [1], [0, 0, 1, 1], [], []>} : vector<16x16xf32>, vector<16x32xf32>, vector<16x32xf32> -> vector<16x32xf32>
    %86 = arith.addf %65, %85 : vector<16x32xf32>
    %87 = vector.broadcast %34 : vector<1x32xf32> to vector<16x32xf32>
    %88 = arith.addf %86, %87 : vector<16x32xf32>
    %89 = arith.addf %30, %88 : vector<16x32xf32>
    %cst_37 = arith.constant dense<0.000000e+00> : vector<16xf32>
    %90 = vector.multi_reduction <add>, %89, %cst_37 [1] : vector<16x32xf32> to vector<16xf32>
    %91 = vector.shape_cast %90 : vector<16xf32> to vector<16x1xf32>
    %cst_38 = arith.constant 3.200000e+01 : f32
    %92 = vector.broadcast %cst_38 : f32 to vector<16x1xf32>
    %93 = arith.divf %91, %92 : vector<16x1xf32>
    %94 = vector.broadcast %93 : vector<16x1xf32> to vector<16x32xf32>
    %95 = arith.subf %89, %94 : vector<16x32xf32>
    %96 = arith.mulf %95, %95 : vector<16x32xf32>
    %cst_39 = arith.constant dense<0.000000e+00> : vector<16xf32>
    %97 = vector.multi_reduction <add>, %96, %cst_39 [1] : vector<16x32xf32> to vector<16xf32>
    %98 = vector.shape_cast %97 : vector<16xf32> to vector<16x1xf32>
    %cst_40 = arith.constant 3.200000e+01 : f32
    %99 = vector.broadcast %cst_40 : f32 to vector<16x1xf32>
    %100 = arith.divf %98, %99 : vector<16x1xf32>
    %101 = vector.broadcast %93 : vector<16x1xf32> to vector<16x32xf32>
    %102 = arith.subf %89, %101 : vector<16x32xf32>
    %cst_41 = arith.constant 9.99999996E-13 : f32
    %103 = vector.broadcast %cst_41 : f32 to vector<16x1xf32>
    %104 = arith.addf %100, %103 : vector<16x1xf32>
    %105 = math.rsqrt %104 : vector<16x1xf32>
    %106 = vector.broadcast %105 : vector<16x1xf32> to vector<16x32xf32>
    %107 = arith.mulf %102, %106 : vector<16x32xf32>
    %108 = vector.broadcast %35 : vector<1x32xf32> to vector<16x32xf32>
    %109 = arith.mulf %107, %108 : vector<16x32xf32>
    %110 = vector.broadcast %36 : vector<1x32xf32> to vector<16x32xf32>
    %111 = arith.addf %109, %110 : vector<16x32xf32>
    %c0_42 = arith.constant 0 : index
    %c0_43 = arith.constant 0 : index
    %c0_44 = arith.constant 0 : index
    %112 = vector.load %arg5[%c0_42, %c0_43, %c0_44] : memref<2x32x64xf32, #tpu.memory_space<vmem>>, vector<1x32x64xf32>
    %113 = vector.shape_cast %112 : vector<1x32x64xf32> to vector<32x64xf32>
    %c0_45 = arith.constant 0 : index
    %c0_46 = arith.constant 0 : index
    %c0_47 = arith.constant 0 : index
    %114 = vector.load %arg6[%c0_45, %c0_46, %c0_47] : memref<2x64x32xf32, #tpu.memory_space<vmem>>, vector<1x64x32xf32>
    %115 = vector.shape_cast %114 : vector<1x64x32xf32> to vector<64x32xf32>
    %cst_48 = arith.constant dense<0.000000e+00> : vector<16x64xf32>
    %116 = tpu.matmul %111, %113, %cst_48 {dimension_numbers = #tpu.dot_dimension_numbers<[1], [0], [0], [1], [0, 0, 1, 1], [], []>} : vector<16x32xf32>, vector<32x64xf32>, vector<16x64xf32> -> vector<16x64xf32>
    %117 = vector.broadcast %37 : vector<1x64xf32> to vector<16x64xf32>
    %118 = arith.addf %116, %117 : vector<16x64xf32>
    %cst_49 = arith.constant 5.000000e-01 : f32
    %119 = vector.broadcast %cst_49 : f32 to vector<16x64xf32>
    %120 = arith.mulf %119, %118 : vector<16x64xf32>
    %cst_50 = arith.constant 4.471500e-02 : f32
    %121 = vector.broadcast %cst_50 : f32 to vector<16x64xf32>
    %122 = arith.mulf %121, %118 : vector<16x64xf32>
    %123 = arith.mulf %122, %118 : vector<16x64xf32>
    %124 = arith.mulf %123, %118 : vector<16x64xf32>
    %125 = arith.addf %118, %124 : vector<16x64xf32>
    %cst_51 = arith.constant 0.797884583 : f32
    %126 = vector.broadcast %cst_51 : f32 to vector<16x64xf32>
    %127 = arith.mulf %126, %125 : vector<16x64xf32>
    %128 = math.tanh %127 : vector<16x64xf32>
    %cst_52 = arith.constant 1.000000e+00 : f32
    %129 = vector.broadcast %cst_52 : f32 to vector<16x64xf32>
    %130 = arith.addf %129, %128 : vector<16x64xf32>
    %131 = arith.mulf %120, %130 : vector<16x64xf32>
    %cst_53 = arith.constant dense<0.000000e+00> : vector<16x32xf32>
    %132 = tpu.matmul %131, %115, %cst_53 {dimension_numbers = #tpu.dot_dimension_numbers<[1], [0], [0], [1], [0, 0, 1, 1], [], []>} : vector<16x64xf32>, vector<64x32xf32>, vector<16x32xf32> -> vector<16x32xf32>
    %133 = vector.broadcast %38 : vector<1x32xf32> to vector<16x32xf32>
    %134 = arith.addf %132, %133 : vector<16x32xf32>
    %135 = arith.addf %111, %134 : vector<16x32xf32>
    %cst_54 = arith.constant dense<0.000000e+00> : vector<16xf32>
    %136 = vector.multi_reduction <add>, %135, %cst_54 [1] : vector<16x32xf32> to vector<16xf32>
    %137 = vector.shape_cast %136 : vector<16xf32> to vector<16x1xf32>
    %cst_55 = arith.constant 3.200000e+01 : f32
    %138 = vector.broadcast %cst_55 : f32 to vector<16x1xf32>
    %139 = arith.divf %137, %138 : vector<16x1xf32>
    %140 = vector.broadcast %139 : vector<16x1xf32> to vector<16x32xf32>
    %141 = arith.subf %135, %140 : vector<16x32xf32>
    %142 = arith.mulf %141, %141 : vector<16x32xf32>
    %cst_56 = arith.constant dense<0.000000e+00> : vector<16xf32>
    %143 = vector.multi_reduction <add>, %142, %cst_56 [1] : vector<16x32xf32> to vector<16xf32>
    %144 = vector.shape_cast %143 : vector<16xf32> to vector<16x1xf32>
    %cst_57 = arith.constant 3.200000e+01 : f32
    %145 = vector.broadcast %cst_57 : f32 to vector<16x1xf32>
    %146 = arith.divf %144, %145 : vector<16x1xf32>
    %147 = vector.broadcast %139 : vector<16x1xf32> to vector<16x32xf32>
    %148 = arith.subf %135, %147 : vector<16x32xf32>
    %cst_58 = arith.constant 9.99999996E-13 : f32
    %149 = vector.broadcast %cst_58 : f32 to vector<16x1xf32>
    %150 = arith.addf %146, %149 : vector<16x1xf32>
    %151 = math.rsqrt %150 : vector<16x1xf32>
    %152 = vector.broadcast %151 : vector<16x1xf32> to vector<16x32xf32>
    %153 = arith.mulf %148, %152 : vector<16x32xf32>
    %154 = vector.broadcast %39 : vector<1x32xf32> to vector<16x32xf32>
    %155 = arith.mulf %153, %154 : vector<16x32xf32>
    %156 = vector.broadcast %40 : vector<1x32xf32> to vector<16x32xf32>
    %157 = arith.addf %155, %156 : vector<16x32xf32>
    %c1_59 = arith.constant 1 : index
    %c0_60 = arith.constant 0 : index
    %c0_61 = arith.constant 0 : index
    %158 = vector.load %arg7[%c1_59, %c0_60, %c0_61] : memref<3x8x128xf32, #tpu.memory_space<vmem>>, vector<1x8x128xf32>
    %159 = vector.shape_cast %158 : vector<1x8x128xf32> to vector<8x128xf32>
    %160 = vector.extract_strided_slice %159 {offsets = [0, 0], sizes = [1, 96], strides = [1, 1]} : vector<8x128xf32> to vector<1x96xf32>
    %161 = vector.extract_strided_slice %159 {offsets = [1, 0], sizes = [1, 32], strides = [1, 1]} : vector<8x128xf32> to vector<1x32xf32>
    %162 = vector.extract_strided_slice %159 {offsets = [2, 0], sizes = [1, 32], strides = [1, 1]} : vector<8x128xf32> to vector<1x32xf32>
    %163 = vector.extract_strided_slice %159 {offsets = [3, 0], sizes = [1, 32], strides = [1, 1]} : vector<8x128xf32> to vector<1x32xf32>
    %164 = vector.extract_strided_slice %159 {offsets = [4, 0], sizes = [1, 64], strides = [1, 1]} : vector<8x128xf32> to vector<1x64xf32>
    %165 = vector.extract_strided_slice %159 {offsets = [5, 0], sizes = [1, 32], strides = [1, 1]} : vector<8x128xf32> to vector<1x32xf32>
    %166 = vector.extract_strided_slice %159 {offsets = [6, 0], sizes = [1, 32], strides = [1, 1]} : vector<8x128xf32> to vector<1x32xf32>
    %167 = vector.extract_strided_slice %159 {offsets = [7, 0], sizes = [1, 32], strides = [1, 1]} : vector<8x128xf32> to vector<1x32xf32>
    %c1_62 = arith.constant 1 : index
    %c0_63 = arith.constant 0 : index
    %c0_64 = arith.constant 0 : index
    %168 = vector.load %arg3[%c1_62, %c0_63, %c0_64] : memref<2x32x96xf32, #tpu.memory_space<vmem>>, vector<1x32x96xf32>
    %169 = vector.shape_cast %168 : vector<1x32x96xf32> to vector<32x96xf32>
    %cst_65 = arith.constant dense<0.000000e+00> : vector<16x96xf32>
    %170 = tpu.matmul %157, %169, %cst_65 {dimension_numbers = #tpu.dot_dimension_numbers<[1], [0], [0], [1], [0, 0, 1, 1], [], []>} : vector<16x32xf32>, vector<32x96xf32>, vector<16x96xf32> -> vector<16x96xf32>
    %171 = vector.broadcast %160 : vector<1x96xf32> to vector<16x96xf32>
    %172 = arith.addf %170, %171 : vector<16x96xf32>
    %173 = vector.extract_strided_slice %172 {offsets = [0, 0], sizes = [16, 16], strides = [1, 1]} : vector<16x96xf32> to vector<16x16xf32>
    %174 = vector.extract_strided_slice %172 {offsets = [0, 32], sizes = [16, 16], strides = [1, 1]} : vector<16x96xf32> to vector<16x16xf32>
    %175 = vector.extract_strided_slice %172 {offsets = [0, 64], sizes = [16, 16], strides = [1, 1]} : vector<16x96xf32> to vector<16x16xf32>
    %cst_66 = arith.constant dense<0.000000e+00> : vector<16x16xf32>
    %176 = tpu.matmul %173, %174, %cst_66 {dimension_numbers = #tpu.dot_dimension_numbers<[1], [1], [0], [0], [0, 0, 1, 0], [], []>} : vector<16x16xf32>, vector<16x16xf32>, vector<16x16xf32> -> vector<16x16xf32>
    %cst_67 = arith.constant 2.500000e-01 : f32
    %177 = vector.broadcast %cst_67 : f32 to vector<16x16xf32>
    %178 = arith.mulf %176, %177 : vector<16x16xf32>
    %179 = arith.addf %178, %1 : vector<16x16xf32>
    %cst_68 = arith.constant dense<0xFF800000> : vector<16xf32>
    %180 = vector.multi_reduction <maximumf>, %179, %cst_68 [1] : vector<16x16xf32> to vector<16xf32>
    %181 = vector.shape_cast %180 : vector<16xf32> to vector<16x1xf32>
    %182 = vector.broadcast %181 : vector<16x1xf32> to vector<16x16xf32>
    %183 = arith.subf %179, %182 : vector<16x16xf32>
    %184 = math.exp %183 : vector<16x16xf32>
    %cst_69 = arith.constant dense<0.000000e+00> : vector<16xf32>
    %185 = vector.multi_reduction <add>, %184, %cst_69 [1] : vector<16x16xf32> to vector<16xf32>
    %186 = vector.shape_cast %185 : vector<16xf32> to vector<16x1xf32>
    %187 = vector.broadcast %186 : vector<16x1xf32> to vector<16x16xf32>
    %188 = arith.divf %184, %187 : vector<16x16xf32>
    %cst_70 = arith.constant dense<0.000000e+00> : vector<16x16xf32>
    %189 = tpu.matmul %188, %175, %cst_70 {dimension_numbers = #tpu.dot_dimension_numbers<[1], [0], [0], [1], [0, 0, 1, 1], [], []>} : vector<16x16xf32>, vector<16x16xf32>, vector<16x16xf32> -> vector<16x16xf32>
    %c1_71 = arith.constant 1 : index
    %c0_72 = arith.constant 0 : index
    %c0_73 = arith.constant 0 : index
    %c0_74 = arith.constant 0 : index
    %190 = vector.load %arg4[%c1_71, %c0_72, %c0_73, %c0_74] : memref<2x2x16x32xf32, #tpu.memory_space<vmem>>, vector<1x1x16x32xf32>
    %191 = vector.shape_cast %190 : vector<1x1x16x32xf32> to vector<16x32xf32>
    %cst_75 = arith.constant dense<0.000000e+00> : vector<16x32xf32>
    %192 = tpu.matmul %189, %191, %cst_75 {dimension_numbers = #tpu.dot_dimension_numbers<[1], [0], [0], [1], [0, 0, 1, 1], [], []>} : vector<16x16xf32>, vector<16x32xf32>, vector<16x32xf32> -> vector<16x32xf32>
    %193 = vector.extract_strided_slice %172 {offsets = [0, 16], sizes = [16, 16], strides = [1, 1]} : vector<16x96xf32> to vector<16x16xf32>
    %194 = vector.extract_strided_slice %172 {offsets = [0, 48], sizes = [16, 16], strides = [1, 1]} : vector<16x96xf32> to vector<16x16xf32>
    %195 = vector.extract_strided_slice %172 {offsets = [0, 80], sizes = [16, 16], strides = [1, 1]} : vector<16x96xf32> to vector<16x16xf32>
    %cst_76 = arith.constant dense<0.000000e+00> : vector<16x16xf32>
    %196 = tpu.matmul %193, %194, %cst_76 {dimension_numbers = #tpu.dot_dimension_numbers<[1], [1], [0], [0], [0, 0, 1, 0], [], []>} : vector<16x16xf32>, vector<16x16xf32>, vector<16x16xf32> -> vector<16x16xf32>
    %cst_77 = arith.constant 2.500000e-01 : f32
    %197 = vector.broadcast %cst_77 : f32 to vector<16x16xf32>
    %198 = arith.mulf %196, %197 : vector<16x16xf32>
    %199 = arith.addf %198, %1 : vector<16x16xf32>
    %cst_78 = arith.constant dense<0xFF800000> : vector<16xf32>
    %200 = vector.multi_reduction <maximumf>, %199, %cst_78 [1] : vector<16x16xf32> to vector<16xf32>
    %201 = vector.shape_cast %200 : vector<16xf32> to vector<16x1xf32>
    %202 = vector.broadcast %201 : vector<16x1xf32> to vector<16x16xf32>
    %203 = arith.subf %199, %202 : vector<16x16xf32>
    %204 = math.exp %203 : vector<16x16xf32>
    %cst_79 = arith.constant dense<0.000000e+00> : vector<16xf32>
    %205 = vector.multi_reduction <add>, %204, %cst_79 [1] : vector<16x16xf32> to vector<16xf32>
    %206 = vector.shape_cast %205 : vector<16xf32> to vector<16x1xf32>
    %207 = vector.broadcast %206 : vector<16x1xf32> to vector<16x16xf32>
    %208 = arith.divf %204, %207 : vector<16x16xf32>
    %cst_80 = arith.constant dense<0.000000e+00> : vector<16x16xf32>
    %209 = tpu.matmul %208, %195, %cst_80 {dimension_numbers = #tpu.dot_dimension_numbers<[1], [0], [0], [1], [0, 0, 1, 1], [], []>} : vector<16x16xf32>, vector<16x16xf32>, vector<16x16xf32> -> vector<16x16xf32>
    %c1_81 = arith.constant 1 : index
    %c1_82 = arith.constant 1 : index
    %c0_83 = arith.constant 0 : index
    %c0_84 = arith.constant 0 : index
    %210 = vector.load %arg4[%c1_81, %c1_82, %c0_83, %c0_84] : memref<2x2x16x32xf32, #tpu.memory_space<vmem>>, vector<1x1x16x32xf32>
    %211 = vector.shape_cast %210 : vector<1x1x16x32xf32> to vector<16x32xf32>
    %cst_85 = arith.constant dense<0.000000e+00> : vector<16x32xf32>
    %212 = tpu.matmul %209, %211, %cst_85 {dimension_numbers = #tpu.dot_dimension_numbers<[1], [0], [0], [1], [0, 0, 1, 1], [], []>} : vector<16x16xf32>, vector<16x32xf32>, vector<16x32xf32> -> vector<16x32xf32>
    %213 = arith.addf %192, %212 : vector<16x32xf32>
    %214 = vector.broadcast %161 : vector<1x32xf32> to vector<16x32xf32>
    %215 = arith.addf %213, %214 : vector<16x32xf32>
    %216 = arith.addf %157, %215 : vector<16x32xf32>
    %cst_86 = arith.constant dense<0.000000e+00> : vector<16xf32>
    %217 = vector.multi_reduction <add>, %216, %cst_86 [1] : vector<16x32xf32> to vector<16xf32>
    %218 = vector.shape_cast %217 : vector<16xf32> to vector<16x1xf32>
    %cst_87 = arith.constant 3.200000e+01 : f32
    %219 = vector.broadcast %cst_87 : f32 to vector<16x1xf32>
    %220 = arith.divf %218, %219 : vector<16x1xf32>
    %221 = vector.broadcast %220 : vector<16x1xf32> to vector<16x32xf32>
    %222 = arith.subf %216, %221 : vector<16x32xf32>
    %223 = arith.mulf %222, %222 : vector<16x32xf32>
    %cst_88 = arith.constant dense<0.000000e+00> : vector<16xf32>
    %224 = vector.multi_reduction <add>, %223, %cst_88 [1] : vector<16x32xf32> to vector<16xf32>
    %225 = vector.shape_cast %224 : vector<16xf32> to vector<16x1xf32>
    %cst_89 = arith.constant 3.200000e+01 : f32
    %226 = vector.broadcast %cst_89 : f32 to vector<16x1xf32>
    %227 = arith.divf %225, %226 : vector<16x1xf32>
    %228 = vector.broadcast %220 : vector<16x1xf32> to vector<16x32xf32>
    %229 = arith.subf %216, %228 : vector<16x32xf32>
    %cst_90 = arith.constant 9.99999996E-13 : f32
    %230 = vector.broadcast %cst_90 : f32 to vector<16x1xf32>
    %231 = arith.addf %227, %230 : vector<16x1xf32>
    %232 = math.rsqrt %231 : vector<16x1xf32>
    %233 = vector.broadcast %232 : vector<16x1xf32> to vector<16x32xf32>
    %234 = arith.mulf %229, %233 : vector<16x32xf32>
    %235 = vector.broadcast %162 : vector<1x32xf32> to vector<16x32xf32>
    %236 = arith.mulf %234, %235 : vector<16x32xf32>
    %237 = vector.broadcast %163 : vector<1x32xf32> to vector<16x32xf32>
    %238 = arith.addf %236, %237 : vector<16x32xf32>
    %c1_91 = arith.constant 1 : index
    %c0_92 = arith.constant 0 : index
    %c0_93 = arith.constant 0 : index
    %239 = vector.load %arg5[%c1_91, %c0_92, %c0_93] : memref<2x32x64xf32, #tpu.memory_space<vmem>>, vector<1x32x64xf32>
    %240 = vector.shape_cast %239 : vector<1x32x64xf32> to vector<32x64xf32>
    %c1_94 = arith.constant 1 : index
    %c0_95 = arith.constant 0 : index
    %c0_96 = arith.constant 0 : index
    %241 = vector.load %arg6[%c1_94, %c0_95, %c0_96] : memref<2x64x32xf32, #tpu.memory_space<vmem>>, vector<1x64x32xf32>
    %242 = vector.shape_cast %241 : vector<1x64x32xf32> to vector<64x32xf32>
    %cst_97 = arith.constant dense<0.000000e+00> : vector<16x64xf32>
    %243 = tpu.matmul %238, %240, %cst_97 {dimension_numbers = #tpu.dot_dimension_numbers<[1], [0], [0], [1], [0, 0, 1, 1], [], []>} : vector<16x32xf32>, vector<32x64xf32>, vector<16x64xf32> -> vector<16x64xf32>
    %244 = vector.broadcast %164 : vector<1x64xf32> to vector<16x64xf32>
    %245 = arith.addf %243, %244 : vector<16x64xf32>
    %cst_98 = arith.constant 5.000000e-01 : f32
    %246 = vector.broadcast %cst_98 : f32 to vector<16x64xf32>
    %247 = arith.mulf %246, %245 : vector<16x64xf32>
    %cst_99 = arith.constant 4.471500e-02 : f32
    %248 = vector.broadcast %cst_99 : f32 to vector<16x64xf32>
    %249 = arith.mulf %248, %245 : vector<16x64xf32>
    %250 = arith.mulf %249, %245 : vector<16x64xf32>
    %251 = arith.mulf %250, %245 : vector<16x64xf32>
    %252 = arith.addf %245, %251 : vector<16x64xf32>
    %cst_100 = arith.constant 0.797884583 : f32
    %253 = vector.broadcast %cst_100 : f32 to vector<16x64xf32>
    %254 = arith.mulf %253, %252 : vector<16x64xf32>
    %255 = math.tanh %254 : vector<16x64xf32>
    %cst_101 = arith.constant 1.000000e+00 : f32
    %256 = vector.broadcast %cst_101 : f32 to vector<16x64xf32>
    %257 = arith.addf %256, %255 : vector<16x64xf32>
    %258 = arith.mulf %247, %257 : vector<16x64xf32>
    %cst_102 = arith.constant dense<0.000000e+00> : vector<16x32xf32>
    %259 = tpu.matmul %258, %242, %cst_102 {dimension_numbers = #tpu.dot_dimension_numbers<[1], [0], [0], [1], [0, 0, 1, 1], [], []>} : vector<16x64xf32>, vector<64x32xf32>, vector<16x32xf32> -> vector<16x32xf32>
    %260 = vector.broadcast %165 : vector<1x32xf32> to vector<16x32xf32>
    %261 = arith.addf %259, %260 : vector<16x32xf32>
    %262 = arith.addf %238, %261 : vector<16x32xf32>
    %cst_103 = arith.constant dense<0.000000e+00> : vector<16xf32>
    %263 = vector.multi_reduction <add>, %262, %cst_103 [1] : vector<16x32xf32> to vector<16xf32>
    %264 = vector.shape_cast %263 : vector<16xf32> to vector<16x1xf32>
    %cst_104 = arith.constant 3.200000e+01 : f32
    %265 = vector.broadcast %cst_104 : f32 to vector<16x1xf32>
    %266 = arith.divf %264, %265 : vector<16x1xf32>
    %267 = vector.broadcast %266 : vector<16x1xf32> to vector<16x32xf32>
    %268 = arith.subf %262, %267 : vector<16x32xf32>
    %269 = arith.mulf %268, %268 : vector<16x32xf32>
    %cst_105 = arith.constant dense<0.000000e+00> : vector<16xf32>
    %270 = vector.multi_reduction <add>, %269, %cst_105 [1] : vector<16x32xf32> to vector<16xf32>
    %271 = vector.shape_cast %270 : vector<16xf32> to vector<16x1xf32>
    %cst_106 = arith.constant 3.200000e+01 : f32
    %272 = vector.broadcast %cst_106 : f32 to vector<16x1xf32>
    %273 = arith.divf %271, %272 : vector<16x1xf32>
    %274 = vector.broadcast %266 : vector<16x1xf32> to vector<16x32xf32>
    %275 = arith.subf %262, %274 : vector<16x32xf32>
    %cst_107 = arith.constant 9.99999996E-13 : f32
    %276 = vector.broadcast %cst_107 : f32 to vector<16x1xf32>
    %277 = arith.addf %273, %276 : vector<16x1xf32>
    %278 = math.rsqrt %277 : vector<16x1xf32>
    %279 = vector.broadcast %278 : vector<16x1xf32> to vector<16x32xf32>
    %280 = arith.mulf %275, %279 : vector<16x32xf32>
    %281 = vector.broadcast %166 : vector<1x32xf32> to vector<16x32xf32>
    %282 = arith.mulf %280, %281 : vector<16x32xf32>
    %283 = vector.broadcast %167 : vector<1x32xf32> to vector<16x32xf32>
    %284 = arith.addf %282, %283 : vector<16x32xf32>
    %285 = tpu.iota {dimensions = array<i32: 1>} : vector<2x16xi32>
    %286 = tpu.iota {dimensions = array<i32: 0>} : vector<2x16xi32>
    %c8_i32 = arith.constant 8 : i32
    %287 = vector.broadcast %c8_i32 : i32 to vector<2x16xi32>
    %288 = arith.muli %286, %287 : vector<2x16xi32>
    %289 = arith.cmpi sge, %285, %288 : vector<2x16xi32>
    %c8_i32_108 = arith.constant 8 : i32
    %290 = vector.broadcast %c8_i32_108 : i32 to vector<2x16xi32>
    %291 = arith.muli %286, %290 : vector<2x16xi32>
    %c8_i32_109 = arith.constant 8 : i32
    %292 = vector.broadcast %c8_i32_109 : i32 to vector<2x16xi32>
    %293 = arith.addi %291, %292 : vector<2x16xi32>
    %294 = arith.cmpi slt, %285, %293 : vector<2x16xi32>
    %295 = arith.andi %289, %294 : vector<2x16xi1>
    %cst_110 = arith.constant 1.250000e-01 : f32
    %cst_111 = arith.constant 0.000000e+00 : f32
    %296 = vector.broadcast %cst_110 : f32 to vector<2x16xf32>
    %297 = vector.broadcast %cst_111 : f32 to vector<2x16xf32>
    %298 = arith.select %295, %296, %297 : vector<2x16xi1>, vector<2x16xf32>
    %cst_112 = arith.constant dense<0.000000e+00> : vector<2x32xf32>
    %299 = tpu.matmul %298, %30, %cst_112 {dimension_numbers = #tpu.dot_dimension_numbers<[1], [0], [0], [1], [0, 0, 1, 1], [], []>} : vector<2x16xf32>, vector<16x32xf32>, vector<2x32xf32> -> vector<2x32xf32>
    %c0_113 = arith.constant 0 : index
    %c0_114 = arith.constant 0 : index
    %c0_115 = arith.constant 0 : index
    %300 = vector.load %arg8[%c0_113, %c0_114, %c0_115] : memref<3x32x16xf32, #tpu.memory_space<vmem>>, vector<1x32x16xf32>
    %301 = vector.shape_cast %300 : vector<1x32x16xf32> to vector<32x16xf32>
    %cst_116 = arith.constant dense<0.000000e+00> : vector<2x16xf32>
    %302 = tpu.matmul %299, %301, %cst_116 {dimension_numbers = #tpu.dot_dimension_numbers<[1], [0], [0], [1], [0, 0, 1, 1], [], []>} : vector<2x32xf32>, vector<32x16xf32>, vector<2x16xf32> -> vector<2x16xf32>
    %cst_117 = arith.constant dense<0.000000e+00> : vector<2x32xf32>
    %303 = tpu.matmul %298, %284, %cst_117 {dimension_numbers = #tpu.dot_dimension_numbers<[1], [0], [0], [1], [0, 0, 1, 1], [], []>} : vector<2x16xf32>, vector<16x32xf32>, vector<2x32xf32> -> vector<2x32xf32>
    %c1_118 = arith.constant 1 : index
    %c0_119 = arith.constant 0 : index
    %c0_120 = arith.constant 0 : index
    %304 = vector.load %arg8[%c1_118, %c0_119, %c0_120] : memref<3x32x16xf32, #tpu.memory_space<vmem>>, vector<1x32x16xf32>
    %305 = vector.shape_cast %304 : vector<1x32x16xf32> to vector<32x16xf32>
    %cst_121 = arith.constant dense<0.000000e+00> : vector<2x16xf32>
    %306 = tpu.matmul %303, %305, %cst_121 {dimension_numbers = #tpu.dot_dimension_numbers<[1], [0], [0], [1], [0, 0, 1, 1], [], []>} : vector<2x32xf32>, vector<32x16xf32>, vector<2x16xf32> -> vector<2x16xf32>
    %307 = arith.addf %302, %306 : vector<2x16xf32>
    %cst_122 = arith.constant dense<0.000000e+00> : vector<2x32xf32>
    %308 = tpu.matmul %298, %157, %cst_122 {dimension_numbers = #tpu.dot_dimension_numbers<[1], [0], [0], [1], [0, 0, 1, 1], [], []>} : vector<2x16xf32>, vector<16x32xf32>, vector<2x32xf32> -> vector<2x32xf32>
    %c2_123 = arith.constant 2 : index
    %c0_124 = arith.constant 0 : index
    %c0_125 = arith.constant 0 : index
    %309 = vector.load %arg8[%c2_123, %c0_124, %c0_125] : memref<3x32x16xf32, #tpu.memory_space<vmem>>, vector<1x32x16xf32>
    %310 = vector.shape_cast %309 : vector<1x32x16xf32> to vector<32x16xf32>
    %cst_126 = arith.constant dense<0.000000e+00> : vector<2x16xf32>
    %311 = tpu.matmul %308, %310, %cst_126 {dimension_numbers = #tpu.dot_dimension_numbers<[1], [0], [0], [1], [0, 0, 1, 1], [], []>} : vector<2x32xf32>, vector<32x16xf32>, vector<2x16xf32> -> vector<2x16xf32>
    %312 = arith.addf %307, %311 : vector<2x16xf32>
    %313 = vector.broadcast %6 : vector<1x16xf32> to vector<2x16xf32>
    %314 = arith.addf %312, %313 : vector<2x16xf32>
    %315 = arith.mulf %314, %314 : vector<2x16xf32>
    %cst_127 = arith.constant dense<0.000000e+00> : vector<2xf32>
    %316 = vector.multi_reduction <add>, %315, %cst_127 [1] : vector<2x16xf32> to vector<2xf32>
    %317 = vector.shape_cast %316 : vector<2xf32> to vector<2x1xf32>
    %318 = math.sqrt %317 : vector<2x1xf32>
    %cst_128 = arith.constant 9.99999996E-13 : f32
    %319 = vector.broadcast %cst_128 : f32 to vector<2x1xf32>
    %320 = arith.maximumf %318, %319 : vector<2x1xf32>
    %321 = vector.broadcast %320 : vector<2x1xf32> to vector<2x16xf32>
    %322 = arith.divf %314, %321 : vector<2x16xf32>
    %c0_129 = arith.constant 0 : index
    %c0_130 = arith.constant 0 : index
    %c0_131 = arith.constant 0 : index
    %323 = vector.load %arg9[%c0_129, %c0_130, %c0_131] : memref<1x2x16xf32, #tpu.memory_space<vmem>>, vector<1x2x16xf32>
    %324 = vector.shape_cast %323 : vector<1x2x16xf32> to vector<2x16xf32>
    %325 = vector.shape_cast %322 : vector<2x16xf32> to vector<1x2x16xf32>
    tpu.vector_store %arg9[%c0_129, %c0_130, %c0_131], %325 {strides = array<i32>} : memref<1x2x16xf32, #tpu.memory_space<vmem>>, vector<1x2x16xf32>,
    return
  }
  func.func @transform_0(%arg0: i32) -> (i32, i32, i32) {
    %c0_i32 = arith.constant 0 : i32
    %c0_i32_0 = arith.constant 0 : i32
    %c0_i32_1 = arith.constant 0 : i32
    return %arg0, %c0_i32, %c0_i32_0 : i32, i32, i32
  }
  func.func @transform_1(%arg0: i32) -> (i32, i32, i32) {
    %c0_i32 = arith.constant 0 : i32
    %c0_i32_0 = arith.constant 0 : i32
    %c0_i32_1 = arith.constant 0 : i32
    return %arg0, %c0_i32, %c0_i32_0 : i32, i32, i32
  }
  func.func @transform_2(%arg0: i32) -> (i32, i32, i32) {
    %c0_i32 = arith.constant 0 : i32
    %c0_i32_0 = arith.constant 0 : i32
    %c0_i32_1 = arith.constant 0 : i32
    %c0_i32_2 = arith.constant 0 : i32
    return %c0_i32, %c0_i32_0, %c0_i32_1 : i32, i32, i32
  }
  func.func @transform_3(%arg0: i32) -> (i32, i32, i32, i32) {
    %c0_i32 = arith.constant 0 : i32
    %c0_i32_0 = arith.constant 0 : i32
    %c0_i32_1 = arith.constant 0 : i32
    %c0_i32_2 = arith.constant 0 : i32
    %c0_i32_3 = arith.constant 0 : i32
    return %c0_i32, %c0_i32_0, %c0_i32_1, %c0_i32_2 : i32, i32, i32, i32
  }
  func.func @transform_4(%arg0: i32) -> (i32, i32, i32) {
    %c0_i32 = arith.constant 0 : i32
    %c0_i32_0 = arith.constant 0 : i32
    %c0_i32_1 = arith.constant 0 : i32
    %c0_i32_2 = arith.constant 0 : i32
    return %c0_i32, %c0_i32_0, %c0_i32_1 : i32, i32, i32
  }
  func.func @transform_5(%arg0: i32) -> (i32, i32, i32) {
    %c0_i32 = arith.constant 0 : i32
    %c0_i32_0 = arith.constant 0 : i32
    %c0_i32_1 = arith.constant 0 : i32
    %c0_i32_2 = arith.constant 0 : i32
    return %c0_i32, %c0_i32_0, %c0_i32_1 : i32, i32, i32
  }
  func.func @transform_6(%arg0: i32) -> (i32, i32, i32) {
    %c0_i32 = arith.constant 0 : i32
    %c0_i32_0 = arith.constant 0 : i32
    %c0_i32_1 = arith.constant 0 : i32
    %c0_i32_2 = arith.constant 0 : i32
    return %c0_i32, %c0_i32_0, %c0_i32_1 : i32, i32, i32
  }
  func.func @transform_7(%arg0: i32) -> (i32, i32, i32) {
    %c0_i32 = arith.constant 0 : i32
    %c0_i32_0 = arith.constant 0 : i32
    %c0_i32_1 = arith.constant 0 : i32
    %c0_i32_2 = arith.constant 0 : i32
    return %c0_i32, %c0_i32_0, %c0_i32_1 : i32, i32, i32
  }
  func.func @transform_8(%arg0: i32) -> (i32, i32, i32) {
    %c0_i32 = arith.constant 0 : i32
    %c0_i32_0 = arith.constant 0 : i32
    %c0_i32_1 = arith.constant 0 : i32
    return %arg0, %c0_i32, %c0_i32_0 : i32, i32, i32
  }
}

</mosaic_0001>

<llo_original>
// kernel: forward.2
$region0: #{forward.2}
  #allocation0 [shape = 'u32[]', space=smem, size = 0x4, offset = 0x4, fixed_abs, tag = 'smem constant byte address 0x4 - core index']
  #allocation1 [shape = 'u32[72,128]{1,0:T(1,128)}', space=vmem, size = 0x9000, scoped, tag = 'internal scratch']
  %s0 = inlined_call_operand.vmem [shape: f32[2,16,32], index: 0, kind: input, shape index: {}]
  %s1 = inlined_call_operand.vmem [shape: f32[2,16,16], index: 1, kind: input, shape index: {}]
  %s2 = inlined_call_operand.vmem [shape: f32[2,32,96], index: 2, kind: input, shape index: {}]
  %s3 = inlined_call_operand.vmem [shape: f32[2,2,16,32], index: 3, kind: input, shape index: {}]
  %s4 = inlined_call_operand.vmem [shape: f32[2,32,64], index: 4, kind: input, shape index: {}]
  %s5 = inlined_call_operand.vmem [shape: f32[2,64,32], index: 5, kind: input, shape index: {}]
  %s6 = inlined_call_operand.vmem [shape: f32[3,8,128], index: 6, kind: input, shape index: {}]
  %s7 = inlined_call_operand.vmem [shape: f32[3,32,16], index: 7, kind: input, shape index: {}]
  %s8 = inlined_call_operand.vmem [shape: f32[2,2,16], index: 8, kind: output, shape index: {}]
  %s9 = sld [smem:[#allocation0]]
  $region65: #{forward.2} parent=0
    _
  %s11 = ssub.s32 1, %s9
  %s12 = scalar_select 0, %s11, %s9
  loop: start=0, step=1, limit=4
  $region2: #{forward.2} parent=0 // loop_pre_header
    _
  $region3: #{forward.2} parent=0 // loop_header
    %s14 = sphi 0, %s18
    %p15 = scmp.ge.s32.totalorder %s14, 4
    %s24 = sphi 0, %s26
    %s27 = sphi 0, %s24
    %s28 = sphi 0, %s27
    %s44 = sphi 0, %s28
    %s50 = sphi 0, %s52
    %s53 = sphi 0, %s50
    %s54 = sphi 0, %s53
    %s70 = sphi 0, %s54
    %s74 = sphi 0, %s74
    %s76 = sphi 0, %s74
    %s77 = sphi 0, %s76
    %s91 = sphi 0, %s77
    %s95 = sphi 0, %s95
    %s97 = sphi 0, %s95
    %s98 = sphi 0, %s97
    %s112 = sphi 0, %s98
    %s116 = sphi 0, %s116
    %s118 = sphi 0, %s116
    %s119 = sphi 0, %s118
    %s133 = sphi 0, %s119
    %s137 = sphi 0, %s137
    %s139 = sphi 0, %s137
    %s140 = sphi 0, %s139
    %s154 = sphi 0, %s140
    %s158 = sphi 0, %s158
    %s160 = sphi 0, %s158
    %s161 = sphi 0, %s160
    %s175 = sphi 0, %s161
    %s179 = sphi 0, %s179
    %s181 = sphi 0, %s179
    %s182 = sphi 0, %s181
    %s196 = sphi 0, %s182
    %s202 = sphi 0, %s204
    %s205 = sphi 0, %s202
    %s206 = sphi 0, %s205
    %s222 = sphi 0, %s206
  $region4: #{forward.2} parent=0 // loop_header_branch
    %17 = sbr.rel (%p15) target = $region8
  $region5: #{forward.2} parent=0 // loop_body
    %s19 = ssub.s32 %s14, 1
    %s20 = ssub.s32 %s14, 2
    %s21 = sadd.s32 %s14, 1
    %s22 = ssub.s32 %s14, %s21
    %p23 = scmp.eq.s32.totalorder %s22, 0
    %s25 = sadd.s32 %s24, 1
    %s26 = scalar_select %p23, %s24, %s25
    %p29 = pneg %p23
    %p30 = scmp.eq.s32.totalorder %s14, 1
    %p31 = por %p29, %p30
    %p32 = scmp.ne.s32.totalorder %s24, %s27
    %p33 = scmp.eq.s32.totalorder %s14, 0
    %p34 = por %p32, %p33
    %p35 = scmp.ne.s32.totalorder %s24, %s27
    %p36 = scmp.eq.s32.totalorder %s19, 1
    %p37 = por %p35, %p36
    %p38 = scmp.ne.s32.totalorder %s27, %s28
    %p39 = scmp.eq.s32.totalorder %s19, 0
    %p40 = por %p38, %p39
    %p41 = scmp.ne.s32.totalorder %s27, %s28
    %p42 = scmp.eq.s32.totalorder %s20, 1
    %p43 = por %p41, %p42
    %p45 = scmp.ne.s32.totalorder %s28, %s44
    %p46 = scmp.eq.s32.totalorder %s20, 0
    %p47 = por %p45, %p46
    %s48 = ssub.s32 %s14, %s21
    %p49 = scmp.eq.s32.totalorder %s48, 0
    %s51 = sadd.s32 %s50, 1
    %s52 = scalar_select %p49, %s50, %s51
    %p55 = pneg %p49
    %p56 = scmp.eq.s32.totalorder %s14, 1
    %p57 = por %p55, %p56
    %p58 = scmp.ne.s32.totalorder %s50, %s53
    %p59 = scmp.eq.s32.totalorder %s14, 0
    %p60 = por %p58, %p59
    %p61 = scmp.ne.s32.totalorder %s50, %s53
    %p62 = scmp.eq.s32.totalorder %s19, 1
    %p63 = por %p61, %p62
    %p64 = scmp.ne.s32.totalorder %s53, %s54
    %p65 = scmp.eq.s32.totalorder %s19, 0
    %p66 = por %p64, %p65
    %p67 = scmp.ne.s32.totalorder %s53, %s54
    %p68 = scmp.eq.s32.totalorder %s20, 1
    %p69 = por %p67, %p68
    %p71 = scmp.ne.s32.totalorder %s54, %s70
    %p72 = scmp.eq.s32.totalorder %s20, 0
    %p73 = por %p71, %p72
    %s75 = sadd.s32 %s74, 1
    %p78 = scmp.eq.s32.totalorder %s14, 1
    %p79 = scmp.ne.s32.totalorder %s74, %s76
    %p80 = scmp.eq.s32.totalorder %s14, 0
    %p81 = por %p79, %p80
    %p82 = scmp.ne.s32.totalorder %s74, %s76
    %p83 = scmp.eq.s32.totalorder %s19, 1
    %p84 = por %p82, %p83
    %p85 = scmp.ne.s32.totalorder %s76, %s77
    %p86 = scmp.eq.s32.totalorder %s19, 0
    %p87 = por %p85, %p86
    %p88 = scmp.ne.s32.totalorder %s76, %s77
    %p89 = scmp.eq.s32.totalorder %s20, 1
    %p90 = por %p88, %p89
    %p92 = scmp.ne.s32.totalorder %s77, %s91
    %p93 = scmp.eq.s32.totalorder %s20, 0
    %p94 = por %p92, %p93
    %s96 = sadd.s32 %s95, 1
    %p99 = scmp.eq.s32.totalorder %s14, 1
    %p100 = scmp.ne.s32.totalorder %s95, %s97
    %p101 = scmp.eq.s32.totalorder %s14, 0
    %p102 = por %p100, %p101
    %p103 = scmp.ne.s32.totalorder %s95, %s97
    %p104 = scmp.eq.s32.totalorder %s19, 1
    %p105 = por %p103, %p104
    %p106 = scmp.ne.s32.totalorder %s97, %s98
    %p107 = scmp.eq.s32.totalorder %s19, 0
    %p108 = por %p106, %p107
    %p109 = scmp.ne.s32.totalorder %s97, %s98
    %p110 = scmp.eq.s32.totalorder %s20, 1
    %p111 = por %p109, %p110
    %p113 = scmp.ne.s32.totalorder %s98, %s112
    %p114 = scmp.eq.s32.totalorder %s20, 0
    %p115 = por %p113, %p114
    %s117 = sadd.s32 %s116, 1
    %p120 = scmp.eq.s32.totalorder %s14, 1
    %p121 = scmp.ne.s32.totalorder %s116, %s118
    %p122 = scmp.eq.s32.totalorder %s14, 0
    %p123 = por %p121, %p122
    %p124 = scmp.ne.s32.totalorder %s116, %s118
    %p125 = scmp.eq.s32.totalorder %s19, 1
    %p126 = por %p124, %p125
    %p127 = scmp.ne.s32.totalorder %s118, %s119
    %p128 = scmp.eq.s32.totalorder %s19, 0
    %p129 = por %p127, %p128
    %p130 = scmp.ne.s32.totalorder %s118, %s119
    %p131 = scmp.eq.s32.totalorder %s20, 1
    %p132 = por %p130, %p131
    %p134 = scmp.ne.s32.totalorder %s119, %s133
    %p135 = scmp.eq.s32.totalorder %s20, 0
    %p136 = por %p134, %p135
    %s138 = sadd.s32 %s137, 1
    %p141 = scmp.eq.s32.totalorder %s14, 1
    %p142 = scmp.ne.s32.totalorder %s137, %s139
    %p143 = scmp.eq.s32.totalorder %s14, 0
    %p144 = por %p142, %p143
    %p145 = scmp.ne.s32.totalorder %s137, %s139
    %p146 = scmp.eq.s32.totalorder %s19, 1
    %p147 = por %p145, %p146
    %p148 = scmp.ne.s32.totalorder %s139, %s140
    %p149 = scmp.eq.s32.totalorder %s19, 0
    %p150 = por %p148, %p149
    %p151 = scmp.ne.s32.totalorder %s139, %s140
    %p152 = scmp.eq.s32.totalorder %s20, 1
    %p153 = por %p151, %p152
    %p155 = scmp.ne.s32.totalorder %s140, %s154
    %p156 = scmp.eq.s32.totalorder %s20, 0
    %p157 = por %p155, %p156
    %s159 = sadd.s32 %s158, 1
    %p162 = scmp.eq.s32.totalorder %s14, 1
    %p163 = scmp.ne.s32.totalorder %s158, %s160
    %p164 = scmp.eq.s32.totalorder %s14, 0
    %p165 = por %p163, %p164
    %p166 = scmp.ne.s32.totalorder %s158, %s160
    %p167 = scmp.eq.s32.totalorder %s19, 1
    %p168 = por %p166, %p167
    %p169 = scmp.ne.s32.totalorder %s160, %s161
    %p170 = scmp.eq.s32.totalorder %s19, 0
    %p171 = por %p169, %p170
    %p172 = scmp.ne.s32.totalorder %s160, %s161
    %p173 = scmp.eq.s32.totalorder %s20, 1
    %p174 = por %p172, %p173
    %p176 = scmp.ne.s32.totalorder %s161, %s175
    %p177 = scmp.eq.s32.totalorder %s20, 0
    %p178 = por %p176, %p177
    %s180 = sadd.s32 %s179, 1
    %p183 = scmp.eq.s32.totalorder %s14, 1
    %p184 = scmp.ne.s32.totalorder %s179, %s181
    %p185 = scmp.eq.s32.totalorder %s14, 0
    %p186 = por %p184, %p185
    %p187 = scmp.ne.s32.totalorder %s179, %s181
    %p188 = scmp.eq.s32.totalorder %s19, 1
    %p189 = por %p187, %p188
    %p190 = scmp.ne.s32.totalorder %s181, %s182
    %p191 = scmp.eq.s32.totalorder %s19, 0
    %p192 = por %p190, %p191
    %p193 = scmp.ne.s32.totalorder %s181, %s182
    %p194 = scmp.eq.s32.totalorder %s20, 1
    %p195 = por %p193, %p194
    %p197 = scmp.ne.s32.totalorder %s182, %s196
    %p198 = scmp.eq.s32.totalorder %s20, 0
    %p199 = por %p197, %p198
    %s200 = ssub.s32 %s14, %s21
    %p201 = scmp.eq.s32.totalorder %s200, 0
    %s203 = sadd.s32 %s202, 1
    %s204 = scalar_select %p201, %s202, %s203
    %p207 = pneg %p201
    %p208 = scmp.eq.s32.totalorder %s14, 1
    %p209 = por %p207, %p208
    %p210 = scmp.ne.s32.totalorder %s202, %s205
    %p211 = scmp.eq.s32.totalorder %s14, 0
    %p212 = por %p210, %p211
    %p213 = scmp.ne.s32.totalorder %s202, %s205
    %p214 = scmp.eq.s32.totalorder %s19, 1
    %p215 = por %p213, %p214
    %p216 = scmp.ne.s32.totalorder %s205, %s206
    %p217 = scmp.eq.s32.totalorder %s19, 0
    %p218 = por %p216, %p217
    %p219 = scmp.ne.s32.totalorder %s205, %s206
    %p220 = scmp.eq.s32.totalorder %s20, 1
    %p221 = por %p219, %p220
    %p223 = scmp.ne.s32.totalorder %s206, %s222
    %p224 = scmp.eq.s32.totalorder %s20, 0
    %p225 = por %p223, %p224
    %p226 = scmp.le.s32.totalorder 1, %s14
    %p227 = scmp.lt.s32.totalorder %s14, 3
    %p228 = pnand %p226, %p227
    %p229 = pneg %p228
    // Predicated region
    $region9: #{forward.2} parent=5 // pred_check
      _
    $region10: #{forward.2} parent=5 // pred_check_branch
      %231 = sbr.rel (%p228) target = $region12
    $region11: #{forward.2} parent=5 // pred_region
      %s232 = ssub.s32 %s14, 1
      // Predicated region
      $region13: #{forward.2} parent=11 // pred_check
        %p233 = pneg %p87
      $region14: #{forward.2} parent=11 // pred_check_branch
        %235 = sbr.rel (%p233) target = $region16
      $region15: #{forward.2} parent=11 // pred_region
        _
      $region16: #{forward.2} parent=11 // pred_fallthru
        _
      // Predicated region
      $region17: #{forward.2} parent=11 // pred_check
        %p236 = pneg %p108
      $region18: #{forward.2} parent=11 // pred_check_branch
        %238 = sbr.rel (%p236) target = $region20
      $region19: #{forward.2} parent=11 // pred_region
        _
      $region20: #{forward.2} parent=11 // pred_fallthru
        _
      // Predicated region
      $region21: #{forward.2} parent=11 // pred_check
        %p239 = pneg %p129
      $region22: #{forward.2} parent=11 // pred_check_branch
        %241 = sbr.rel (%p239) target = $region24
      $region23: #{forward.2} parent=11 // pred_region
        _
      $region24: #{forward.2} parent=11 // pred_fallthru
        _
      // Predicated region
      $region25: #{forward.2} parent=11 // pred_check
        %p242 = pneg %p150
      $region26: #{forward.2} parent=11 // pred_check_branch
        %244 = sbr.rel (%p242) target = $region28
      $region27: #{forward.2} parent=11 // pred_region
        _
      $region28: #{forward.2} parent=11 // pred_fallthru
        _
      // Predicated region
      $region29: #{forward.2} parent=11 // pred_check
        %p245 = pneg %p171
      $region30: #{forward.2} parent=11 // pred_check_branch
        %247 = sbr.rel (%p245) target = $region32
      $region31: #{forward.2} parent=11 // pred_region
        _
      $region32: #{forward.2} parent=11 // pred_fallthru
        _
      // Predicated region
      $region33: #{forward.2} parent=11 // pred_check
        %p248 = pneg %p192
      $region34: #{forward.2} parent=11 // pred_check_branch
        %250 = sbr.rel (%p248) target = $region36
      $region35: #{forward.2} parent=11 // pred_region
        _
      $region36: #{forward.2} parent=11 // pred_fallthru
        _
    $region12: #{forward.2} parent=5 // pred_fallthru
      _
    %p251 = scmp.lt.s32.totalorder %s14, 2
    // Predicated region
    $region37: #{forward.2} parent=5 // pred_check
      %p252 = pneg %p251
    $region38: #{forward.2} parent=5 // pred_check_branch
      %254 = sbr.rel (%p252) target = $region40
    $region39: #{forward.2} parent=5 // pred_region
      // Predicated region
      $region41: #{forward.2} parent=39 // pred_check
        %p255 = pneg %p34
      $region42: #{forward.2} parent=39 // pred_check_branch
        %257 = sbr.rel (%p255) target = $region44
      $region43: #{forward.2} parent=39 // pred_region
        %p258 = scmp.lt.s32.totalorder %s14, 1
        %s259 = scalar_select %p258, %s14, 1
        %s260 = smul.addr %s259, 2
        %s261 = smul.addr %s260, 8
        %s262 = scalar_lea.vmem %s0, %s261
      $region44: #{forward.2} parent=39 // pred_fallthru
        _
      // Predicated region
      $region45: #{forward.2} parent=39 // pred_check
        %p263 = pneg %p60
      $region46: #{forward.2} parent=39 // pred_check_branch
        %265 = sbr.rel (%p263) target = $region48
      $region47: #{forward.2} parent=39 // pred_region
        %p266 = scmp.lt.s32.totalorder %s14, 1
        %s267 = scalar_select %p266, %s14, 1
        %s268 = smul.addr %s267, 2
        %s269 = smul.addr %s268, 8
        %s270 = scalar_lea.vmem %s1, %s269
      $region48: #{forward.2} parent=39 // pred_fallthru
        _
    $region40: #{forward.2} parent=5 // pred_fallthru
      _
    %p271 = scmp.le.s32.totalorder 1, %s14
    %p272 = scmp.lt.s32.totalorder %s14, 3
    %p273 = pnand %p271, %p272
    %p274 = pneg %p273
    // Predicated region
    $region49: #{forward.2} parent=5 // pred_check
      _
    $region50: #{forward.2} parent=5 // pred_check_branch
      %276 = sbr.rel (%p273) target = $region52
    $region51: #{forward.2} parent=5 // pred_region
      %s277 = ssub.s32 %s14, 1
      %p278 = scmp.lt.s32.totalorder %s19, 1
      %s279 = scalar_select %p278, %s19, 1
      %s280 = smul.addr %s279, 2
      %s281 = smul.addr %s280, 8
      %s282 = scalar_lea.vmem %s0, %s281
      %p283 = pneg %p40
      %p284 = pneg %p37
      %p285 = scmp.lt.s32.totalorder %s19, 1
      %s286 = scalar_select %p285, %s19, 1
      %s287 = smul.addr %s286, 2
      %s288 = smul.addr %s287, 8
      %s289 = scalar_lea.vmem %s1, %s288
      %p290 = pneg %p66
      %p291 = pneg %p63
      %p292 = pneg %p87
      %p293 = pneg %p84
      %p294 = pneg %p108
      %p295 = pneg %p105
      %p296 = pneg %p129
      %p297 = pneg %p126
      %p298 = pneg %p150
      %p299 = pneg %p147
      %p300 = pneg %p171
      %p301 = pneg %p168
      %p302 = pneg %p192
      %p303 = pneg %p189
      %p304 = pneg %p218
      %p305 = pneg %p215
      %p306 = scmp.lt.s32.totalorder %s19, 1
      %s307 = scalar_select %p306, %s19, 1
      %s308 = smul.addr %s307, 2
      %s309 = scalar_lea.vmem %s8, %s308
      %p310 = scmp.lt.s32.totalorder %s19, 1
      %s311 = scalar_select %p310, %s19, 1
      %s312 = smul.addr %s311, 2
      %s313 = smul.addr %s312, 8
      %s314 = scalar_lea.vmem %s0, %s313
      %p315 = scmp.lt.s32.totalorder %s19, 1
      %s316 = scalar_select %p315, %s19, 1
      %s317 = smul.addr %s316, 2
      %s318 = smul.addr %s317, 8
      %s319 = scalar_lea.vmem %s1, %s318
      %p320 = scmp.lt.s32.totalorder %s19, 1
      %s321 = scalar_select %p320, %s19, 1
      %s322 = smul.addr %s321, 2
      %s323 = scalar_lea.vmem %s8, %s322
      %v324 = vld [vmem:[%s319] sm:$0xff]
      %v325 = vld [vmem:[%s319 + $0x8] sm:$0xff]
      %s326 = scalar_lea.vmem %s6, 16
      %v327 = vld [vmem:[%s326] sm:$0xff]
      %v328 = vld [vmem:[%s314] sm:$0xff]
      %v329 = vld [vmem:[%s314 + $0x8] sm:$0xff]
      %vm330 = vcmask 261120
      %v331 = vsel %vm330, %v328, 0.0
      %332 = vadd.xlane.f32.xlu0 %v331
      %v333 = vpop.xlane.xlu0 %332
      %v334 = vsel %vm330, %v329, 0.0
      %335 = vadd.xlane.f32.xlu0 %v334
      %v336 = vpop.xlane.xlu0 %335
      %v337 = vrcp.pop 32.0
      %v338 = vmul.f32 32.0, %v337
      %v339 = vsub.f32 1.0, %v338
      %v340 = vmul.f32 %v337, %v339
      %v341 = vadd.f32 %v337, %v340
      %vm342 = vweird.f32 %v337
      %v343 = vsel %vm342, %v337, %v341
      %v344 = vmul.f32 %v333, %v343
      %v345 = vmul.f32 %v336, %v343
      %v346 = vsub.f32 %v328, %v344
      %v347 = vsub.f32 %v329, %v345
      %v348 = vmul.f32 %v346, %v346
      %v349 = vmul.f32 %v347, %v347
      %v350 = vsel %vm330, %v348, 0.0
      %351 = vadd.xlane.f32.xlu0 %v350
      %v352 = vpop.xlane.xlu0 %351
      %v353 = vsel %vm330, %v349, 0.0
      %354 = vadd.xlane.f32.xlu0 %v353
      %v355 = vpop.xlane.xlu0 %354
      %v356 = vmul.f32 %v352, %v343
      %v357 = vmul.f32 %v355, %v343
      %v358 = vadd.f32 %v356, 1e-12
      %v359 = vadd.f32 %v357, 1e-12
      %v360 = vrsqrt.pop %v358
      %v361 = vmul.f32 %v360, %v358
      %v362 = vmul.f32 %v361, %v360
      %v363 = vmul.f32 0.5, %v362
      %v364 = vsub.f32 1.5, %v363
      %v365 = vmul.f32 %v360, %v364
      %vm366 = vweird.f32 %v358
      %vm367 = vweird.f32 %v360
      %vm368 = vmor %vm366, %vm367
      %v369 = vsel %vm368, %v360, %v365
      %v370 = vrsqrt.pop %v359
      %v371 = vmul.f32 %v370, %v359
      %v372 = vmul.f32 %v371, %v370
      %v373 = vmul.f32 0.5, %v372
      %v374 = vsub.f32 1.5, %v373
      %v375 = vmul.f32 %v370, %v374
      %vm376 = vweird.f32 %v359
      %vm377 = vweird.f32 %v370
      %vm378 = vmor %vm376, %vm377
      %v379 = vsel %vm378, %v370, %v375
      %v380 = vmul.f32 %v346, %v369
      %v381 = vmul.f32 %v347, %v379
      %v382 = vperm.slane %v327, 0
      %v383 = vmul.f32 %v380, %v382
      %v384 = vmul.f32 %v381, %v382
      %v385 = vperm.slane %v327, 1
      %v386 = vadd.f32 %v383, %v385
      %v387 = vadd.f32 %v384, %v385
      %v388 = vld [vmem:[%s6] sm:$0xff]
      %v389 = vld [vmem:[%s2] sm:$0xff]
      %v390 = vld [vmem:[%s2 + $0x8] sm:$0xff]
      %v391 = vld [vmem:[%s2 + $0x10] sm:$0xff]
      %v392 = vld [vmem:[%s2 + $0x18] sm:$0xff]
      %v393 = vperm.slane %v388, 0
      %v395 = vsel %vm330, %v386, 0
      %v398 = vsel %vm330, %v387, 0
      %400 = vmatpush.msra.mxu0 0.0
      %401 = vmatpush.msra.mxu0 0.0
      %402 = vmatpush.msra.mxu0 0.0
      %403 = vmatpush.msra.mxu0 0.0
      %404 = vmatpush.msra.mxu0 0.0
      %405 = vmatpush.msra.mxu0 0.0
      %406 = vmatpush.msra.mxu0 0.0
      %407 = vmatpush.msra.mxu0 0.0
      %408 = vmatpush.msra.mxu0 0.0
      %409 = vmatpush.msra.mxu0 0.0
      %410 = vmatpush.msra.mxu0 0.0
      %411 = vmatpush.msra.mxu0 0.0
      %412 = vmatpush.msra.mxu0 %v392
      %413 = vmatpush.msra.mxu0 %v391
      %414 = vmatpush.msra.mxu0 %v390
      %415 = vmatpush.msra.mxu0 %v389
      %416 = vmatmul.f32.gmra.mxu0 %v395
      %v417 = vpop.f32.mrf.mxu0
      %v418 = vadd.f32 %v393, %v417
      %419 = vmatmul.f32.gmra.mxu0 %v398
      %v420 = vpop.f32.mrf.mxu0
      %v421 = vadd.f32 %v393, %v420
      %422 = vdwg.mxu0
      %425 = vrot.lane.b32.xlu0 %v418, 96
      %v426 = vpop.permute.xlu0 %425
      %427 = vrot.lane.b32.xlu0 %v421, 96
      %v428 = vpop.permute.xlu0 %427
      %vm429 = vcmask 130048
      %v430 = vsel %vm429, %v418, 0
      %v432 = vsel %vm429, %v421, 0
      %v434 = vsel %vm429, %v426, 0
      %v436 = vsel %vm429, %v428, 0
      %438 = vmatpush.xpose.msra.mxu0 0.0
      %439 = vmatpush.xpose.msra.mxu0 0.0
      %440 = vmatpush.xpose.msra.mxu0 0.0
      %441 = vmatpush.xpose.msra.mxu0 0.0
      %442 = vmatpush.xpose.msra.mxu0 0.0
      %443 = vmatpush.xpose.msra.mxu0 0.0
      %444 = vmatpush.xpose.msra.mxu0 0.0
      %445 = vmatpush.xpose.msra.mxu0 0.0
      %446 = vmatpush.xpose.msra.mxu0 0.0
      %447 = vmatpush.xpose.msra.mxu0 0.0
      %448 = vmatpush.xpose.msra.mxu0 0.0
      %449 = vmatpush.xpose.msra.mxu0 0.0
      %450 = vmatpush.xpose.msra.mxu0 0.0
      %451 = vmatpush.xpose.msra.mxu0 0.0
      %452 = vmatpush.xpose.msra.mxu0 %v436
      %453 = vmatpush.xpose.msra.mxu0 %v434
      %454 = vmatmul.f32.gmra.mxu0 %v430
      %v455 = vpop.f32.mrf.mxu0
      %v456 = vadd.f32 0.0, %v455
      %457 = vmatmul.f32.gmra.mxu0 %v432
      %v458 = vpop.f32.mrf.mxu0
      %v459 = vadd.f32 0.0, %v458
      %460 = vdwg.mxu0
      %v461 = vmul.f32 %v456, 0.25
      %v462 = vmul.f32 %v459, 0.25
      %v463 = vadd.f32 %v461, %v324
      %v464 = vadd.f32 %v462, %v325
      %v465 = vsel %vm429, %v463, -inf
      %466 = vmax.xlane.f32.xlu0 %v465
      %v467 = vpop.xlane.xlu0 %466
      %v468 = vsel %vm429, %v464, -inf
      %469 = vmax.xlane.f32.xlu0 %v468
      %v470 = vpop.xlane.xlu0 %469
      %v471 = vsub.f32 %v463, %v467
      %v472 = vsub.f32 %v464, %v470
      %v473 = vmul.f32 %v471, 1.442695
      %v474 = vpow.pop %v473
      %v475 = vmul.f32 %v472, 1.442695
      %v476 = vpow.pop %v475
      %v477 = vsel %vm429, %v474, 0.0
      %478 = vadd.xlane.f32.xlu0 %v477
      %v479 = vpop.xlane.xlu0 %478
      %v480 = vsel %vm429, %v476, 0.0
      %481 = vadd.xlane.f32.xlu0 %v480
      %v482 = vpop.xlane.xlu0 %481
      %v483 = vrcp.pop %v479
      %v484 = vmul.f32 %v479, %v483
      %v485 = vsub.f32 1.0, %v484
      %v486 = vmul.f32 %v483, %v485
      %v487 = vadd.f32 %v483, %v486
      %vm488 = vweird.f32 %v479
      %vm489 = vweird.f32 %v483
      %vm490 = vmor %vm488, %vm489
      %v491 = vsel %vm490, %v483, %v487
      %v492 = vand.u32 2147483647, %v479
      %vm493 = vcmp.eq.f32.partialorder %v492, 8.507059e+37
      %v494 = vand.u32 %v479, 2147483648
      %v495 = vor.u32 1.1754944e-38, %v494
      %v496 = vsel %vm493, %v495, %v491
      %v497 = vmul.f32 %v474, %v496
      %v498 = vrcp.pop %v482
      %v499 = vmul.f32 %v482, %v498
      %v500 = vsub.f32 1.0, %v499
      %v501 = vmul.f32 %v498, %v500
      %v502 = vadd.f32 %v498, %v501
      %vm503 = vweird.f32 %v482
      %vm504 = vweird.f32 %v498
      %vm505 = vmor %vm503, %vm504
      %v506 = vsel %vm505, %v498, %v502
      %v507 = vand.u32 2147483647, %v482
      %vm508 = vcmp.eq.f32.partialorder %v507, 8.507059e+37
      %v509 = vand.u32 %v482, 2147483648
      %v510 = vor.u32 1.1754944e-38, %v509
      %v511 = vsel %vm508, %v510, %v506
      %v512 = vmul.f32 %v476, %v511
      %513 = vrot.lane.b32.xlu0 %v418, 64
      %v514 = vpop.permute.xlu0 %513
      %515 = vrot.lane.b32.xlu0 %v421, 64
      %v516 = vpop.permute.xlu0 %515
      %v520 = vsel %vm429, %v497, 0
      %v523 = vsel %vm429, %v512, 0
      %525 = vmatpush.msra.mxu0 0.0
      %526 = vmatpush.msra.mxu0 0.0
      %527 = vmatpush.msra.mxu0 0.0
      %528 = vmatpush.msra.mxu0 0.0
      %529 = vmatpush.msra.mxu0 0.0
      %530 = vmatpush.msra.mxu0 0.0
      %531 = vmatpush.msra.mxu0 0.0
      %532 = vmatpush.msra.mxu0 0.0
      %533 = vmatpush.msra.mxu0 0.0
      %534 = vmatpush.msra.mxu0 0.0
      %535 = vmatpush.msra.mxu0 0.0
      %536 = vmatpush.msra.mxu0 0.0
      %537 = vmatpush.msra.mxu0 0.0
      %538 = vmatpush.msra.mxu0 0.0
      %539 = vmatpush.msra.mxu0 %v516
      %540 = vmatpush.msra.mxu0 %v514
      %541 = vmatmul.f32.gmra.mxu0 %v520
      %v542 = vpop.f32.mrf.mxu0
      %v543 = vadd.f32 0.0, %v542
      %544 = vmatmul.f32.gmra.mxu0 %v523
      %v545 = vpop.f32.mrf.mxu0
      %v546 = vadd.f32 0.0, %v545
      %547 = vdwg.mxu0
      %v548 = vld [vmem:[%s3] sm:$0xff]
      %v549 = vld [vmem:[%s3 + $0x8] sm:$0xff]
      %550 = vrot.lane.b32.xlu0 %v418, 112
      %v551 = vpop.permute.xlu0 %550
      %552 = vrot.lane.b32.xlu0 %v421, 112
      %v553 = vpop.permute.xlu0 %552
      %554 = vrot.lane.b32.xlu0 %v418, 80
      %v555 = vpop.permute.xlu0 %554
      %556 = vrot.lane.b32.xlu0 %v421, 80
      %v557 = vpop.permute.xlu0 %556
      %v558 = vsel %vm429, %v551, 0
      %v560 = vsel %vm429, %v553, 0
      %v562 = vsel %vm429, %v555, 0
      %v564 = vsel %vm429, %v557, 0
      %566 = vmatpush.xpose.msra.mxu0 0.0
      %567 = vmatpush.xpose.msra.mxu0 0.0
      %568 = vmatpush.xpose.msra.mxu0 0.0
      %569 = vmatpush.xpose.msra.mxu0 0.0
      %570 = vmatpush.xpose.msra.mxu0 0.0
      %571 = vmatpush.xpose.msra.mxu0 0.0
      %572 = vmatpush.xpose.msra.mxu0 0.0
      %573 = vmatpush.xpose.msra.mxu0 0.0
      %574 = vmatpush.xpose.msra.mxu0 0.0
      %575 = vmatpush.xpose.msra.mxu0 0.0
      %576 = vmatpush.xpose.msra.mxu0 0.0
      %577 = vmatpush.xpose.msra.mxu0 0.0
      %578 = vmatpush.xpose.msra.mxu0 0.0
      %579 = vmatpush.xpose.msra.mxu0 0.0
      %580 = vmatpush.xpose.msra.mxu0 %v564
      %581 = vmatpush.xpose.msra.mxu0 %v562
      %582 = vmatmul.f32.gmra.mxu0 %v558
      %v583 = vpop.f32.mrf.mxu0
      %v584 = vadd.f32 0.0, %v583
      %585 = vmatmul.f32.gmra.mxu0 %v560
      %v586 = vpop.f32.mrf.mxu0
      %v587 = vadd.f32 0.0, %v586
      %588 = vdwg.mxu0
      %v589 = vmul.f32 %v584, 0.25
      %v590 = vmul.f32 %v587, 0.25
      %v591 = vadd.f32 %v589, %v324
      %v592 = vadd.f32 %v590, %v325
      %v593 = vsel %vm429, %v591, -inf
      %594 = vmax.xlane.f32.xlu0 %v593
      %v595 = vpop.xlane.xlu0 %594
      %v596 = vsel %vm429, %v592, -inf
      %597 = vmax.xlane.f32.xlu0 %v596
      %v598 = vpop.xlane.xlu0 %597
      %v599 = vsub.f32 %v591, %v595
      %v600 = vsub.f32 %v592, %v598
      %v601 = vmul.f32 %v599, 1.442695
      %v602 = vpow.pop %v601
      %v603 = vmul.f32 %v600, 1.442695
      %v604 = vpow.pop %v603
      %v605 = vsel %vm429, %v602, 0.0
      %606 = vadd.xlane.f32.xlu0 %v605
      %v607 = vpop.xlane.xlu0 %606
      %v608 = vsel %vm429, %v604, 0.0
      %609 = vadd.xlane.f32.xlu0 %v608
      %v610 = vpop.xlane.xlu0 %609
      %v611 = vrcp.pop %v607
      %v612 = vmul.f32 %v607, %v611
      %v613 = vsub.f32 1.0, %v612
      %v614 = vmul.f32 %v611, %v613
      %v615 = vadd.f32 %v611, %v614
      %vm616 = vweird.f32 %v607
      %vm617 = vweird.f32 %v611
      %vm618 = vmor %vm616, %vm617
      %v619 = vsel %vm618, %v611, %v615
      %v620 = vand.u32 2147483647, %v607
      %vm621 = vcmp.eq.f32.partialorder %v620, 8.507059e+37
      %v622 = vand.u32 %v607, 2147483648
      %v623 = vor.u32 1.1754944e-38, %v622
      %v624 = vsel %vm621, %v623, %v619
      %v625 = vmul.f32 %v602, %v624
      %v626 = vrcp.pop %v610
      %v627 = vmul.f32 %v610, %v626
      %v628 = vsub.f32 1.0, %v627
      %v629 = vmul.f32 %v626, %v628
      %v630 = vadd.f32 %v626, %v629
      %vm631 = vweird.f32 %v610
      %vm632 = vweird.f32 %v626
      %vm633 = vmor %vm631, %vm632
      %v634 = vsel %vm633, %v626, %v630
      %v635 = vand.u32 2147483647, %v610
      %vm636 = vcmp.eq.f32.partialorder %v635, 8.507059e+37
      %v637 = vand.u32 %v610, 2147483648
      %v638 = vor.u32 1.1754944e-38, %v637
      %v639 = vsel %vm636, %v638, %v634
      %v640 = vmul.f32 %v604, %v639
      %641 = vrot.lane.b32.xlu0 %v418, 48
      %v642 = vpop.permute.xlu0 %641
      %643 = vrot.lane.b32.xlu0 %v421, 48
      %v644 = vpop.permute.xlu0 %643
      %v648 = vsel %vm429, %v625, 0
      %v651 = vsel %vm429, %v640, 0
      %653 = vmatpush.msra.mxu0 0.0
      %654 = vmatpush.msra.mxu0 0.0
      %655 = vmatpush.msra.mxu0 0.0
      %656 = vmatpush.msra.mxu0 0.0
      %657 = vmatpush.msra.mxu0 0.0
      %658 = vmatpush.msra.mxu0 0.0
      %659 = vmatpush.msra.mxu0 0.0
      %660 = vmatpush.msra.mxu0 0.0
      %661 = vmatpush.msra.mxu0 0.0
      %662 = vmatpush.msra.mxu0 0.0
      %663 = vmatpush.msra.mxu0 0.0
      %664 = vmatpush.msra.mxu0 0.0
      %665 = vmatpush.msra.mxu0 0.0
      %666 = vmatpush.msra.mxu0 0.0
      %667 = vmatpush.msra.mxu0 %v644
      %668 = vmatpush.msra.mxu0 %v642
      %669 = vmatmul.f32.gmra.mxu0 %v648
      %v670 = vpop.f32.mrf.mxu0
      %v671 = vadd.f32 0.0, %v670
      %672 = vmatmul.f32.gmra.mxu0 %v651
      %v673 = vpop.f32.mrf.mxu0
      %v674 = vadd.f32 0.0, %v673
      %675 = vdwg.mxu0
      %s676 = scalar_lea.vmem %s3, 16
      %v677 = vld [vmem:[%s676] sm:$0xff]
      %v678 = vld [vmem:[%s676 + $0x8] sm:$0xff]
      %v680 = vsel %vm429, %v671, 0
      %v683 = vsel %vm429, %v674, 0
      %685 = vmatpush.msra.mxu0 0.0
      %686 = vmatpush.msra.mxu0 0.0
      %687 = vmatpush.msra.mxu0 0.0
      %688 = vmatpush.msra.mxu0 0.0
      %689 = vmatpush.msra.mxu0 0.0
      %690 = vmatpush.msra.mxu0 0.0
      %691 = vmatpush.msra.mxu0 0.0
      %692 = vmatpush.msra.mxu0 0.0
      %693 = vmatpush.msra.mxu0 0.0
      %694 = vmatpush.msra.mxu0 0.0
      %695 = vmatpush.msra.mxu0 0.0
      %696 = vmatpush.msra.mxu0 0.0
      %697 = vmatpush.msra.mxu0 0.0
      %698 = vmatpush.msra.mxu0 0.0
      %699 = vmatpush.msra.mxu0 %v678
      %700 = vmatpush.msra.mxu0 %v677
      %701 = vmatmul.f32.gmra.mxu0 %v680
      %v702 = vpop.f32.mrf.mxu0
      %v703 = vadd.f32 0.0, %v702
      %704 = vmatmul.f32.gmra.mxu0 %v683
      %v705 = vpop.f32.mrf.mxu0
      %v706 = vadd.f32 0.0, %v705
      %707 = vdwg.mxu0
      %v709 = vsel %vm429, %v543, 0
      %v712 = vsel %vm429, %v546, 0
      %714 = vmatpush.msra.mxu0 0.0
      %715 = vmatpush.msra.mxu0 0.0
      %716 = vmatpush.msra.mxu0 0.0
      %717 = vmatpush.msra.mxu0 0.0
      %718 = vmatpush.msra.mxu0 0.0
      %719 = vmatpush.msra.mxu0 0.0
      %720 = vmatpush.msra.mxu0 0.0
      %721 = vmatpush.msra.mxu0 0.0
      %722 = vmatpush.msra.mxu0 0.0
      %723 = vmatpush.msra.mxu0 0.0
      %724 = vmatpush.msra.mxu0 0.0
      %725 = vmatpush.msra.mxu0 0.0
      %726 = vmatpush.msra.mxu0 0.0
      %727 = vmatpush.msra.mxu0 0.0
      %728 = vmatpush.msra.mxu0 %v549
      %729 = vmatpush.msra.mxu0 %v548
      %730 = vmatmul.f32.gmra.mxu0 %v709
      %v731 = vpop.f32.mrf.mxu0
      %v732 = vadd.f32 %v703, %v731
      %733 = vmatmul.f32.gmra.mxu0 %v712
      %v734 = vpop.f32.mrf.mxu0
      %v735 = vadd.f32 %v706, %v734
      %736 = vdwg.mxu0
      %v737 = vperm.slane %v388, 1
      %v738 = vadd.f32 %v732, %v737
      %v739 = vadd.f32 %v735, %v737
      %v740 = vadd.f32 %v386, %v738
      %v741 = vadd.f32 %v387, %v739
      %v742 = vsel %vm330, %v740, 0.0
      %743 = vadd.xlane.f32.xlu0 %v742
      %v744 = vpop.xlane.xlu0 %743
      %v745 = vsel %vm330, %v741, 0.0
      %746 = vadd.xlane.f32.xlu0 %v745
      %v747 = vpop.xlane.xlu0 %746
      %v748 = vmul.f32 %v744, %v343
      %v749 = vmul.f32 %v747, %v343
      %v750 = vsub.f32 %v740, %v748
      %v751 = vsub.f32 %v741, %v749
      %v752 = vmul.f32 %v750, %v750
      %v753 = vmul.f32 %v751, %v751
      %v754 = vsel %vm330, %v752, 0.0
      %755 = vadd.xlane.f32.xlu0 %v754
      %v756 = vpop.xlane.xlu0 %755
      %v757 = vsel %vm330, %v753, 0.0
      %758 = vadd.xlane.f32.xlu0 %v757
      %v759 = vpop.xlane.xlu0 %758
      %v760 = vmul.f32 %v756, %v343
      %v761 = vmul.f32 %v759, %v343
      %v762 = vadd.f32 %v760, 1e-12
      %v763 = vadd.f32 %v761, 1e-12
      %v764 = vrsqrt.pop %v762
      %v765 = vmul.f32 %v764, %v762
      %v766 = vmul.f32 %v765, %v764
      %v767 = vmul.f32 0.5, %v766
      %v768 = vsub.f32 1.5, %v767
      %v769 = vmul.f32 %v764, %v768
      %vm770 = vweird.f32 %v762
      %vm771 = vweird.f32 %v764
      %vm772 = vmor %vm770, %vm771
      %v773 = vsel %vm772, %v764, %v769
      %v774 = vrsqrt.pop %v763
      %v775 = vmul.f32 %v774, %v763
      %v776 = vmul.f32 %v775, %v774
      %v777 = vmul.f32 0.5, %v776
      %v778 = vsub.f32 1.5, %v777
      %v779 = vmul.f32 %v774, %v778
      %vm780 = vweird.f32 %v763
      %vm781 = vweird.f32 %v774
      %vm782 = vmor %vm780, %vm781
      %v783 = vsel %vm782, %v774, %v779
      %v784 = vmul.f32 %v750, %v773
      %v785 = vmul.f32 %v751, %v783
      %v786 = vperm.slane %v388, 2
      %v787 = vmul.f32 %v784, %v786
      %v788 = vmul.f32 %v785, %v786
      %v789 = vperm.slane %v388, 3
      %v790 = vadd.f32 %v787, %v789
      %v791 = vadd.f32 %v788, %v789
      %v792 = vld [vmem:[%s4] sm:$0xff]
      %v793 = vld [vmem:[%s4 + $0x8] sm:$0xff]
      %v794 = vld [vmem:[%s4 + $0x10] sm:$0xff]
      %v795 = vld [vmem:[%s4 + $0x18] sm:$0xff]
      %v796 = vld [vmem:[%s5] sm:$0xff]
      %v797 = vld [vmem:[%s5 + $0x8] sm:$0xff]
      %v798 = vld [vmem:[%s5 + $0x10] sm:$0xff]
      %v799 = vld [vmem:[%s5 + $0x18] sm:$0xff]
      %v800 = vld [vmem:[%s5 + $0x20] sm:$0xff]
      %v801 = vld [vmem:[%s5 + $0x28] sm:$0xff]
      %v802 = vld [vmem:[%s5 + $0x30] sm:$0xff]
      %v803 = vld [vmem:[%s5 + $0x38] sm:$0xff]
      %v804 = vperm.slane %v388, 4
      %v806 = vsel %vm330, %v790, 0
      %v809 = vsel %vm330, %v791, 0
      %811 = vmatpush.msra.mxu0 0.0
      %812 = vmatpush.msra.mxu0 0.0
      %813 = vmatpush.msra.mxu0 0.0
      %814 = vmatpush.msra.mxu0 0.0
      %815 = vmatpush.msra.mxu0 0.0
      %816 = vmatpush.msra.mxu0 0.0
      %817 = vmatpush.msra.mxu0 0.0
      %818 = vmatpush.msra.mxu0 0.0
      %819 = vmatpush.msra.mxu0 0.0
      %820 = vmatpush.msra.mxu0 0.0
      %821 = vmatpush.msra.mxu0 0.0
      %822 = vmatpush.msra.mxu0 0.0
      %823 = vmatpush.msra.mxu0 %v795
      %824 = vmatpush.msra.mxu0 %v794
      %825 = vmatpush.msra.mxu0 %v793
      %826 = vmatpush.msra.mxu0 %v792
      %827 = vmatmul.f32.gmra.mxu0 %v806
      %v828 = vpop.f32.mrf.mxu0
      %v829 = vadd.f32 %v804, %v828
      %830 = vmatmul.f32.gmra.mxu0 %v809
      %v831 = vpop.f32.mrf.mxu0
      %v832 = vadd.f32 %v804, %v831
      %833 = vdwg.mxu0
      %v834 = vmul.f32 %v829, 0.5
      %v835 = vmul.f32 %v832, 0.5
      %v836 = vmul.f32 %v829, 0.044715
      %v837 = vmul.f32 %v832, 0.044715
      %v838 = vmul.f32 %v836, %v829
      %v839 = vmul.f32 %v837, %v832
      %v840 = vmul.f32 %v838, %v829
      %v841 = vmul.f32 %v839, %v832
      %v842 = vadd.f32 %v829, %v840
      %v843 = vadd.f32 %v832, %v841
      %v844 = vmul.f32 %v842, 0.7978846
      %v845 = vmul.f32 %v843, 0.7978846
      %v846 = vtanh.pop %v844
      %v847 = vtanh.pop %v845
      %v848 = vadd.f32 %v846, 1.0
      %v849 = vadd.f32 %v847, 1.0
      %v850 = vmul.f32 %v834, %v848
      %v851 = vmul.f32 %v835, %v849
      %v852 = vperm.slane %v388, 5
      %vm853 = vcmask 523264
      %v855 = vsel %vm853, %v850, 0
      %v858 = vsel %vm853, %v851, 0
      %860 = vmatpush.msra.mxu0 0.0
      %861 = vmatpush.msra.mxu0 0.0
      %862 = vmatpush.msra.mxu0 0.0
      %863 = vmatpush.msra.mxu0 0.0
      %864 = vmatpush.msra.mxu0 0.0
      %865 = vmatpush.msra.mxu0 0.0
      %866 = vmatpush.msra.mxu0 0.0
      %867 = vmatpush.msra.mxu0 0.0
      %868 = vmatpush.msra.mxu0 %v803
      %869 = vmatpush.msra.mxu0 %v802
      %870 = vmatpush.msra.mxu0 %v801
      %871 = vmatpush.msra.mxu0 %v800
      %872 = vmatpush.msra.mxu0 %v799
      %873 = vmatpush.msra.mxu0 %v798
      %874 = vmatpush.msra.mxu0 %v797
      %875 = vmatpush.msra.mxu0 %v796
      %876 = vmatmul.f32.gmra.mxu0 %v855
      %v877 = vpop.f32.mrf.mxu0
      %v878 = vadd.f32 %v852, %v877
      %879 = vmatmul.f32.gmra.mxu0 %v858
      %v880 = vpop.f32.mrf.mxu0
      %v881 = vadd.f32 %v852, %v880
      %882 = vdwg.mxu0
      %v883 = vadd.f32 %v790, %v878
      %v884 = vadd.f32 %v791, %v881
      %v885 = vsel %vm330, %v883, 0.0
      %886 = vadd.xlane.f32.xlu0 %v885
      %v887 = vpop.xlane.xlu0 %886
      %v888 = vsel %vm330, %v884, 0.0
      %889 = vadd.xlane.f32.xlu0 %v888
      %v890 = vpop.xlane.xlu0 %889
      %v891 = vmul.f32 %v887, %v343
      %v892 = vmul.f32 %v890, %v343
      %v893 = vsub.f32 %v883, %v891
      %v894 = vsub.f32 %v884, %v892
      %v895 = vmul.f32 %v893, %v893
      %v896 = vmul.f32 %v894, %v894
      %v897 = vsel %vm330, %v895, 0.0
      %898 = vadd.xlane.f32.xlu0 %v897
      %v899 = vpop.xlane.xlu0 %898
      %v900 = vsel %vm330, %v896, 0.0
      %901 = vadd.xlane.f32.xlu0 %v900
      %v902 = vpop.xlane.xlu0 %901
      %v903 = vmul.f32 %v899, %v343
      %v904 = vmul.f32 %v902, %v343
      %v905 = vadd.f32 %v903, 1e-12
      %v906 = vadd.f32 %v904, 1e-12
      %v907 = vrsqrt.pop %v905
      %v908 = vmul.f32 %v907, %v905
      %v909 = vmul.f32 %v908, %v907
      %v910 = vmul.f32 0.5, %v909
      %v911 = vsub.f32 1.5, %v910
      %v912 = vmul.f32 %v907, %v911
      %vm913 = vweird.f32 %v905
      %vm914 = vweird.f32 %v907
      %vm915 = vmor %vm913, %vm914
      %v916 = vsel %vm915, %v907, %v912
      %v917 = vrsqrt.pop %v906
      %v918 = vmul.f32 %v917, %v906
      %v919 = vmul.f32 %v918, %v917
      %v920 = vmul.f32 0.5, %v919
      %v921 = vsub.f32 1.5, %v920
      %v922 = vmul.f32 %v917, %v921
      %vm923 = vweird.f32 %v906
      %vm924 = vweird.f32 %v917
      %vm925 = vmor %vm923, %vm924
      %v926 = vsel %vm925, %v917, %v922
      %v927 = vmul.f32 %v893, %v916
      %v928 = vmul.f32 %v894, %v926
      %v929 = vperm.slane %v388, 6
      %v930 = vmul.f32 %v927, %v929
      %v931 = vmul.f32 %v928, %v929
      %v932 = vperm.slane %v388, 7
      %v933 = vadd.f32 %v930, %v932
      %v934 = vadd.f32 %v931, %v932
      %s935 = scalar_lea.vmem %s6, 8
      %v936 = vld [vmem:[%s935] sm:$0xff]
      %s937 = scalar_lea.vmem %s2, 32
      %v938 = vld [vmem:[%s937] sm:$0xff]
      %v939 = vld [vmem:[%s937 + $0x8] sm:$0xff]
      %v940 = vld [vmem:[%s937 + $0x10] sm:$0xff]
      %v941 = vld [vmem:[%s937 + $0x18] sm:$0xff]
      %v942 = vperm.slane %v936, 0
      %v944 = vsel %vm330, %v933, 0
      %v947 = vsel %vm330, %v934, 0
      %949 = vmatpush.msra.mxu0 0.0
      %950 = vmatpush.msra.mxu0 0.0
      %951 = vmatpush.msra.mxu0 0.0
      %952 = vmatpush.msra.mxu0 0.0
      %953 = vmatpush.msra.mxu0 0.0
      %954 = vmatpush.msra.mxu0 0.0
      %955 = vmatpush.msra.mxu0 0.0
      %956 = vmatpush.msra.mxu0 0.0
      %957 = vmatpush.msra.mxu0 0.0
      %958 = vmatpush.msra.mxu0 0.0
      %959 = vmatpush.msra.mxu0 0.0
      %960 = vmatpush.msra.mxu0 0.0
      %961 = vmatpush.msra.mxu0 %v941
      %962 = vmatpush.msra.mxu0 %v940
      %963 = vmatpush.msra.mxu0 %v939
      %964 = vmatpush.msra.mxu0 %v938
      %965 = vmatmul.f32.gmra.mxu0 %v944
      %v966 = vpop.f32.mrf.mxu0
      %v967 = vadd.f32 %v942, %v966
      %968 = vmatmul.f32.gmra.mxu0 %v947
      %v969 = vpop.f32.mrf.mxu0
      %v970 = vadd.f32 %v942, %v969
      %971 = vdwg.mxu0
      %974 = vrot.lane.b32.xlu0 %v967, 96
      %v975 = vpop.permute.xlu0 %974
      %976 = vrot.lane.b32.xlu0 %v970, 96
      %v977 = vpop.permute.xlu0 %976
      %v978 = vsel %vm429, %v967, 0
      %v980 = vsel %vm429, %v970, 0
      %v982 = vsel %vm429, %v975, 0
      %v984 = vsel %vm429, %v977, 0
      %986 = vmatpush.xpose.msra.mxu0 0.0
      %987 = vmatpush.xpose.msra.mxu0 0.0
      %988 = vmatpush.xpose.msra.mxu0 0.0
      %989 = vmatpush.xpose.msra.mxu0 0.0
      %990 = vmatpush.xpose.msra.mxu0 0.0
      %991 = vmatpush.xpose.msra.mxu0 0.0
      %992 = vmatpush.xpose.msra.mxu0 0.0
      %993 = vmatpush.xpose.msra.mxu0 0.0
      %994 = vmatpush.xpose.msra.mxu0 0.0
      %995 = vmatpush.xpose.msra.mxu0 0.0
      %996 = vmatpush.xpose.msra.mxu0 0.0
      %997 = vmatpush.xpose.msra.mxu0 0.0
      %998 = vmatpush.xpose.msra.mxu0 0.0
      %999 = vmatpush.xpose.msra.mxu0 0.0
      %1000 = vmatpush.xpose.msra.mxu0 %v984
      %1001 = vmatpush.xpose.msra.mxu0 %v982
      %1002 = vmatmul.f32.gmra.mxu0 %v978
      %v1003 = vpop.f32.mrf.mxu0
      %v1004 = vadd.f32 0.0, %v1003
      %1005 = vmatmul.f32.gmra.mxu0 %v980
      %v1006 = vpop.f32.mrf.mxu0
      %v1007 = vadd.f32 0.0, %v1006
      %1008 = vdwg.mxu0
      %v1009 = vmul.f32 %v1004, 0.25
      %v1010 = vmul.f32 %v1007, 0.25
      %v1011 = vadd.f32 %v1009, %v324
      %v1012 = vadd.f32 %v1010, %v325
      %v1013 = vsel %vm429, %v1011, -inf
      %1014 = vmax.xlane.f32.xlu0 %v1013
      %v1015 = vpop.xlane.xlu0 %1014
      %v1016 = vsel %vm429, %v1012, -inf
      %1017 = vmax.xlane.f32.xlu0 %v1016
      %v1018 = vpop.xlane.xlu0 %1017
      %v1019 = vsub.f32 %v1011, %v1015
      %v1020 = vsub.f32 %v1012, %v1018
      %v1021 = vmul.f32 %v1019, 1.442695
      %v1022 = vpow.pop %v1021
      %v1023 = vmul.f32 %v1020, 1.442695
      %v1024 = vpow.pop %v1023
      %v1025 = vsel %vm429, %v1022, 0.0
      %1026 = vadd.xlane.f32.xlu0 %v1025
      %v1027 = vpop.xlane.xlu0 %1026
      %v1028 = vsel %vm429, %v1024, 0.0
      %1029 = vadd.xlane.f32.xlu0 %v1028
      %v1030 = vpop.xlane.xlu0 %1029
      %v1031 = vrcp.pop %v1027
      %v1032 = vmul.f32 %v1027, %v1031
      %v1033 = vsub.f32 1.0, %v1032
      %v1034 = vmul.f32 %v1031, %v1033
      %v1035 = vadd.f32 %v1031, %v1034
      %vm1036 = vweird.f32 %v1027
      %vm1037 = vweird.f32 %v1031
      %vm1038 = vmor %vm1036, %vm1037
      %v1039 = vsel %vm1038, %v1031, %v1035
      %v1040 = vand.u32 2147483647, %v1027
      %vm1041 = vcmp.eq.f32.partialorder %v1040, 8.507059e+37
      %v1042 = vand.u32 %v1027, 2147483648
      %v1043 = vor.u32 1.1754944e-38, %v1042
      %v1044 = vsel %vm1041, %v1043, %v1039
      %v1045 = vmul.f32 %v1022, %v1044
      %v1046 = vrcp.pop %v1030
      %v1047 = vmul.f32 %v1030, %v1046
      %v1048 = vsub.f32 1.0, %v1047
      %v1049 = vmul.f32 %v1046, %v1048
      %v1050 = vadd.f32 %v1046, %v1049
      %vm1051 = vweird.f32 %v1030
      %vm1052 = vweird.f32 %v1046
      %vm1053 = vmor %vm1051, %vm1052
      %v1054 = vsel %vm1053, %v1046, %v1050
      %v1055 = vand.u32 2147483647, %v1030
      %vm1056 = vcmp.eq.f32.partialorder %v1055, 8.507059e+37
      %v1057 = vand.u32 %v1030, 2147483648
      %v1058 = vor.u32 1.1754944e-38, %v1057
      %v1059 = vsel %vm1056, %v1058, %v1054
      %v1060 = vmul.f32 %v1024, %v1059
      %1061 = vrot.lane.b32.xlu0 %v967, 64
      %v1062 = vpop.permute.xlu0 %1061
      %1063 = vrot.lane.b32.xlu0 %v970, 64
      %v1064 = vpop.permute.xlu0 %1063
      %v1068 = vsel %vm429, %v1045, 0
      %v1071 = vsel %vm429, %v1060, 0
      %1073 = vmatpush.msra.mxu0 0.0
      %1074 = vmatpush.msra.mxu0 0.0
      %1075 = vmatpush.msra.mxu0 0.0
      %1076 = vmatpush.msra.mxu0 0.0
      %1077 = vmatpush.msra.mxu0 0.0
      %1078 = vmatpush.msra.mxu0 0.0
      %1079 = vmatpush.msra.mxu0 0.0
      %1080 = vmatpush.msra.mxu0 0.0
      %1081 = vmatpush.msra.mxu0 0.0
      %1082 = vmatpush.msra.mxu0 0.0
      %1083 = vmatpush.msra.mxu0 0.0
      %1084 = vmatpush.msra.mxu0 0.0
      %1085 = vmatpush.msra.mxu0 0.0
      %1086 = vmatpush.msra.mxu0 0.0
      %1087 = vmatpush.msra.mxu0 %v1064
      %1088 = vmatpush.msra.mxu0 %v1062
      %1089 = vmatmul.f32.gmra.mxu0 %v1068
      %v1090 = vpop.f32.mrf.mxu0
      %v1091 = vadd.f32 0.0, %v1090
      %1092 = vmatmul.f32.gmra.mxu0 %v1071
      %v1093 = vpop.f32.mrf.mxu0
      %v1094 = vadd.f32 0.0, %v1093
      %1095 = vdwg.mxu0
      %s1096 = scalar_lea.vmem %s3, 32
      %v1097 = vld [vmem:[%s1096] sm:$0xff]
      %v1098 = vld [vmem:[%s1096 + $0x8] sm:$0xff]
      %1099 = vrot.lane.b32.xlu0 %v967, 112
      %v1100 = vpop.permute.xlu0 %1099
      %1101 = vrot.lane.b32.xlu0 %v970, 112
      %v1102 = vpop.permute.xlu0 %1101
      %1103 = vrot.lane.b32.xlu0 %v967, 80
      %v1104 = vpop.permute.xlu0 %1103
      %1105 = vrot.lane.b32.xlu0 %v970, 80
      %v1106 = vpop.permute.xlu0 %1105
      %v1107 = vsel %vm429, %v1100, 0
      %v1109 = vsel %vm429, %v1102, 0
      %v1111 = vsel %vm429, %v1104, 0
      %v1113 = vsel %vm429, %v1106, 0
      %1115 = vmatpush.xpose.msra.mxu0 0.0
      %1116 = vmatpush.xpose.msra.mxu0 0.0
      %1117 = vmatpush.xpose.msra.mxu0 0.0
      %1118 = vmatpush.xpose.msra.mxu0 0.0
      %1119 = vmatpush.xpose.msra.mxu0 0.0
      %1120 = vmatpush.xpose.msra.mxu0 0.0
      %1121 = vmatpush.xpose.msra.mxu0 0.0
      %1122 = vmatpush.xpose.msra.mxu0 0.0
      %1123 = vmatpush.xpose.msra.mxu0 0.0
      %1124 = vmatpush.xpose.msra.mxu0 0.0
      %1125 = vmatpush.xpose.msra.mxu0 0.0
      %1126 = vmatpush.xpose.msra.mxu0 0.0
      %1127 = vmatpush.xpose.msra.mxu0 0.0
      %1128 = vmatpush.xpose.msra.mxu0 0.0
      %1129 = vmatpush.xpose.msra.mxu0 %v1113
      %1130 = vmatpush.xpose.msra.mxu0 %v1111
      %1131 = vmatmul.f32.gmra.mxu0 %v1107
      %v1132 = vpop.f32.mrf.mxu0
      %v1133 = vadd.f32 0.0, %v1132
      %1134 = vmatmul.f32.gmra.mxu0 %v1109
      %v1135 = vpop.f32.mrf.mxu0
      %v1136 = vadd.f32 0.0, %v1135
      %1137 = vdwg.mxu0
      %v1138 = vmul.f32 %v1133, 0.25
      %v1139 = vmul.f32 %v1136, 0.25
      %v1140 = vadd.f32 %v1138, %v324
      %v1141 = vadd.f32 %v1139, %v325
      %v1142 = vsel %vm429, %v1140, -inf
      %1143 = vmax.xlane.f32.xlu0 %v1142
      %v1144 = vpop.xlane.xlu0 %1143
      %v1145 = vsel %vm429, %v1141, -inf
      %1146 = vmax.xlane.f32.xlu0 %v1145
      %v1147 = vpop.xlane.xlu0 %1146
      %v1148 = vsub.f32 %v1140, %v1144
      %v1149 = vsub.f32 %v1141, %v1147
      %v1150 = vmul.f32 %v1148, 1.442695
      %v1151 = vpow.pop %v1150
      %v1152 = vmul.f32 %v1149, 1.442695
      %v1153 = vpow.pop %v1152
      %v1154 = vsel %vm429, %v1151, 0.0
      %1155 = vadd.xlane.f32.xlu0 %v1154
      %v1156 = vpop.xlane.xlu0 %1155
      %v1157 = vsel %vm429, %v1153, 0.0
      %1158 = vadd.xlane.f32.xlu0 %v1157
      %v1159 = vpop.xlane.xlu0 %1158
      %v1160 = vrcp.pop %v1156
      %v1161 = vmul.f32 %v1156, %v1160
      %v1162 = vsub.f32 1.0, %v1161
      %v1163 = vmul.f32 %v1160, %v1162
      %v1164 = vadd.f32 %v1160, %v1163
      %vm1165 = vweird.f32 %v1156
      %vm1166 = vweird.f32 %v1160
      %vm1167 = vmor %vm1165, %vm1166
      %v1168 = vsel %vm1167, %v1160, %v1164
      %v1169 = vand.u32 2147483647, %v1156
      %vm1170 = vcmp.eq.f32.partialorder %v1169, 8.507059e+37
      %v1171 = vand.u32 %v1156, 2147483648
      %v1172 = vor.u32 1.1754944e-38, %v1171
      %v1173 = vsel %vm1170, %v1172, %v1168
      %v1174 = vmul.f32 %v1151, %v1173
      %v1175 = vrcp.pop %v1159
      %v1176 = vmul.f32 %v1159, %v1175
      %v1177 = vsub.f32 1.0, %v1176
      %v1178 = vmul.f32 %v1175, %v1177
      %v1179 = vadd.f32 %v1175, %v1178
      %vm1180 = vweird.f32 %v1159
      %vm1181 = vweird.f32 %v1175
      %vm1182 = vmor %vm1180, %vm1181
      %v1183 = vsel %vm1182, %v1175, %v1179
      %v1184 = vand.u32 2147483647, %v1159
      %vm1185 = vcmp.eq.f32.partialorder %v1184, 8.507059e+37
      %v1186 = vand.u32 %v1159, 2147483648
      %v1187 = vor.u32 1.1754944e-38, %v1186
      %v1188 = vsel %vm1185, %v1187, %v1183
      %v1189 = vmul.f32 %v1153, %v1188
      %1190 = vrot.lane.b32.xlu0 %v967, 48
      %v1191 = vpop.permute.xlu0 %1190
      %1192 = vrot.lane.b32.xlu0 %v970, 48
      %v1193 = vpop.permute.xlu0 %1192
      %v1197 = vsel %vm429, %v1174, 0
      %v1200 = vsel %vm429, %v1189, 0
      %1202 = vmatpush.msra.mxu0 0.0
      %1203 = vmatpush.msra.mxu0 0.0
      %1204 = vmatpush.msra.mxu0 0.0
      %1205 = vmatpush.msra.mxu0 0.0
      %1206 = vmatpush.msra.mxu0 0.0
      %1207 = vmatpush.msra.mxu0 0.0
      %1208 = vmatpush.msra.mxu0 0.0
      %1209 = vmatpush.msra.mxu0 0.0
      %1210 = vmatpush.msra.mxu0 0.0
      %1211 = vmatpush.msra.mxu0 0.0
      %1212 = vmatpush.msra.mxu0 0.0
      %1213 = vmatpush.msra.mxu0 0.0
      %1214 = vmatpush.msra.mxu0 0.0
      %1215 = vmatpush.msra.mxu0 0.0
      %1216 = vmatpush.msra.mxu0 %v1193
      %1217 = vmatpush.msra.mxu0 %v1191
      %1218 = vmatmul.f32.gmra.mxu0 %v1197
      %v1219 = vpop.f32.mrf.mxu0
      %v1220 = vadd.f32 0.0, %v1219
      %1221 = vmatmul.f32.gmra.mxu0 %v1200
      %v1222 = vpop.f32.mrf.mxu0
      %v1223 = vadd.f32 0.0, %v1222
      %1224 = vdwg.mxu0
      %s1225 = scalar_lea.vmem %s3, 48
      %v1226 = vld [vmem:[%s1225] sm:$0xff]
      %v1227 = vld [vmem:[%s1225 + $0x8] sm:$0xff]
      %v1229 = vsel %vm429, %v1220, 0
      %v1232 = vsel %vm429, %v1223, 0
      %1234 = vmatpush.msra.mxu0 0.0
      %1235 = vmatpush.msra.mxu0 0.0
      %1236 = vmatpush.msra.mxu0 0.0
      %1237 = vmatpush.msra.mxu0 0.0
      %1238 = vmatpush.msra.mxu0 0.0
      %1239 = vmatpush.msra.mxu0 0.0
      %1240 = vmatpush.msra.mxu0 0.0
      %1241 = vmatpush.msra.mxu0 0.0
      %1242 = vmatpush.msra.mxu0 0.0
      %1243 = vmatpush.msra.mxu0 0.0
      %1244 = vmatpush.msra.mxu0 0.0
      %1245 = vmatpush.msra.mxu0 0.0
      %1246 = vmatpush.msra.mxu0 0.0
      %1247 = vmatpush.msra.mxu0 0.0
      %1248 = vmatpush.msra.mxu0 %v1227
      %1249 = vmatpush.msra.mxu0 %v1226
      %1250 = vmatmul.f32.gmra.mxu0 %v1229
      %v1251 = vpop.f32.mrf.mxu0
      %v1252 = vadd.f32 0.0, %v1251
      %1253 = vmatmul.f32.gmra.mxu0 %v1232
      %v1254 = vpop.f32.mrf.mxu0
      %v1255 = vadd.f32 0.0, %v1254
      %1256 = vdwg.mxu0
      %v1258 = vsel %vm429, %v1091, 0
      %v1261 = vsel %vm429, %v1094, 0
      %1263 = vmatpush.msra.mxu0 0.0
      %1264 = vmatpush.msra.mxu0 0.0
      %1265 = vmatpush.msra.mxu0 0.0
      %1266 = vmatpush.msra.mxu0 0.0
      %1267 = vmatpush.msra.mxu0 0.0
      %1268 = vmatpush.msra.mxu0 0.0
      %1269 = vmatpush.msra.mxu0 0.0
      %1270 = vmatpush.msra.mxu0 0.0
      %1271 = vmatpush.msra.mxu0 0.0
      %1272 = vmatpush.msra.mxu0 0.0
      %1273 = vmatpush.msra.mxu0 0.0
      %1274 = vmatpush.msra.mxu0 0.0
      %1275 = vmatpush.msra.mxu0 0.0
      %1276 = vmatpush.msra.mxu0 0.0
      %1277 = vmatpush.msra.mxu0 %v1098
      %1278 = vmatpush.msra.mxu0 %v1097
      %1279 = vmatmul.f32.gmra.mxu0 %v1258
      %v1280 = vpop.f32.mrf.mxu0
      %v1281 = vadd.f32 %v1252, %v1280
      %1282 = vmatmul.f32.gmra.mxu0 %v1261
      %v1283 = vpop.f32.mrf.mxu0
      %v1284 = vadd.f32 %v1255, %v1283
      %1285 = vdwg.mxu0
      %v1286 = vperm.slane %v936, 1
      %v1287 = vadd.f32 %v1281, %v1286
      %v1288 = vadd.f32 %v1284, %v1286
      %v1289 = vadd.f32 %v933, %v1287
      %v1290 = vadd.f32 %v934, %v1288
      %v1291 = vsel %vm330, %v1289, 0.0
      %1292 = vadd.xlane.f32.xlu0 %v1291
      %v1293 = vpop.xlane.xlu0 %1292
      %v1294 = vsel %vm330, %v1290, 0.0
      %1295 = vadd.xlane.f32.xlu0 %v1294
      %v1296 = vpop.xlane.xlu0 %1295
      %v1297 = vmul.f32 %v1293, %v343
      %v1298 = vmul.f32 %v1296, %v343
      %v1299 = vsub.f32 %v1289, %v1297
      %v1300 = vsub.f32 %v1290, %v1298
      %v1301 = vmul.f32 %v1299, %v1299
      %v1302 = vmul.f32 %v1300, %v1300
      %v1303 = vsel %vm330, %v1301, 0.0
      %1304 = vadd.xlane.f32.xlu0 %v1303
      %v1305 = vpop.xlane.xlu0 %1304
      %v1306 = vsel %vm330, %v1302, 0.0
      %1307 = vadd.xlane.f32.xlu0 %v1306
      %v1308 = vpop.xlane.xlu0 %1307
      %v1309 = vmul.f32 %v1305, %v343
      %v1310 = vmul.f32 %v1308, %v343
      %v1311 = vadd.f32 %v1309, 1e-12
      %v1312 = vadd.f32 %v1310, 1e-12
      %v1313 = vrsqrt.pop %v1311
      %v1314 = vmul.f32 %v1313, %v1311
      %v1315 = vmul.f32 %v1314, %v1313
      %v1316 = vmul.f32 0.5, %v1315
      %v1317 = vsub.f32 1.5, %v1316
      %v1318 = vmul.f32 %v1313, %v1317
      %vm1319 = vweird.f32 %v1311
      %vm1320 = vweird.f32 %v1313
      %vm1321 = vmor %vm1319, %vm1320
      %v1322 = vsel %vm1321, %v1313, %v1318
      %v1323 = vrsqrt.pop %v1312
      %v1324 = vmul.f32 %v1323, %v1312
      %v1325 = vmul.f32 %v1324, %v1323
      %v1326 = vmul.f32 0.5, %v1325
      %v1327 = vsub.f32 1.5, %v1326
      %v1328 = vmul.f32 %v1323, %v1327
      %vm1329 = vweird.f32 %v1312
      %vm1330 = vweird.f32 %v1323
      %vm1331 = vmor %vm1329, %vm1330
      %v1332 = vsel %vm1331, %v1323, %v1328
      %v1333 = vmul.f32 %v1299, %v1322
      %v1334 = vmul.f32 %v1300, %v1332
      %v1335 = vperm.slane %v936, 2
      %v1336 = vmul.f32 %v1333, %v1335
      %v1337 = vmul.f32 %v1334, %v1335
      %v1338 = vperm.slane %v936, 3
      %v1339 = vadd.f32 %v1336, %v1338
      %v1340 = vadd.f32 %v1337, %v1338
      %s1341 = scalar_lea.vmem %s4, 32
      %v1342 = vld [vmem:[%s1341] sm:$0xff]
      %v1343 = vld [vmem:[%s1341 + $0x8] sm:$0xff]
      %v1344 = vld [vmem:[%s1341 + $0x10] sm:$0xff]
      %v1345 = vld [vmem:[%s1341 + $0x18] sm:$0xff]
      %s1346 = scalar_lea.vmem %s5, 64
      %v1347 = vld [vmem:[%s1346] sm:$0xff]
      %v1348 = vld [vmem:[%s1346 + $0x8] sm:$0xff]
      %v1349 = vld [vmem:[%s1346 + $0x10] sm:$0xff]
      %v1350 = vld [vmem:[%s1346 + $0x18] sm:$0xff]
      %v1351 = vld [vmem:[%s1346 + $0x20] sm:$0xff]
      %v1352 = vld [vmem:[%s1346 + $0x28] sm:$0xff]
      %v1353 = vld [vmem:[%s1346 + $0x30] sm:$0xff]
      %v1354 = vld [vmem:[%s1346 + $0x38] sm:$0xff]
      %v1355 = vperm.slane %v936, 4
      %v1357 = vsel %vm330, %v1339, 0
      %v1360 = vsel %vm330, %v1340, 0
      %1362 = vmatpush.msra.mxu0 0.0
      %1363 = vmatpush.msra.mxu0 0.0
      %1364 = vmatpush.msra.mxu0 0.0
      %1365 = vmatpush.msra.mxu0 0.0
      %1366 = vmatpush.msra.mxu0 0.0
      %1367 = vmatpush.msra.mxu0 0.0
      %1368 = vmatpush.msra.mxu0 0.0
      %1369 = vmatpush.msra.mxu0 0.0
      %1370 = vmatpush.msra.mxu0 0.0
      %1371 = vmatpush.msra.mxu0 0.0
      %1372 = vmatpush.msra.mxu0 0.0
      %1373 = vmatpush.msra.mxu0 0.0
      %1374 = vmatpush.msra.mxu0 %v1345
      %1375 = vmatpush.msra.mxu0 %v1344
      %1376 = vmatpush.msra.mxu0 %v1343
      %1377 = vmatpush.msra.mxu0 %v1342
      %1378 = vmatmul.f32.gmra.mxu0 %v1357
      %v1379 = vpop.f32.mrf.mxu0
      %v1380 = vadd.f32 %v1355, %v1379
      %1381 = vmatmul.f32.gmra.mxu0 %v1360
      %v1382 = vpop.f32.mrf.mxu0
      %v1383 = vadd.f32 %v1355, %v1382
      %1384 = vdwg.mxu0
      %v1385 = vmul.f32 %v1380, 0.5
      %v1386 = vmul.f32 %v1383, 0.5
      %v1387 = vmul.f32 %v1380, 0.044715
      %v1388 = vmul.f32 %v1383, 0.044715
      %v1389 = vmul.f32 %v1387, %v1380
      %v1390 = vmul.f32 %v1388, %v1383
      %v1391 = vmul.f32 %v1389, %v1380
      %v1392 = vmul.f32 %v1390, %v1383
      %v1393 = vadd.f32 %v1380, %v1391
      %v1394 = vadd.f32 %v1383, %v1392
      %v1395 = vmul.f32 %v1393, 0.7978846
      %v1396 = vmul.f32 %v1394, 0.7978846
      %v1397 = vtanh.pop %v1395
      %v1398 = vtanh.pop %v1396
      %v1399 = vadd.f32 %v1397, 1.0
      %v1400 = vadd.f32 %v1398, 1.0
      %v1401 = vmul.f32 %v1385, %v1399
      %v1402 = vmul.f32 %v1386, %v1400
      %v1403 = vperm.slane %v936, 5
      %v1405 = vsel %vm853, %v1401, 0
      %v1408 = vsel %vm853, %v1402, 0
      %1410 = vmatpush.msra.mxu0 0.0
      %1411 = vmatpush.msra.mxu0 0.0
      %1412 = vmatpush.msra.mxu0 0.0
      %1413 = vmatpush.msra.mxu0 0.0
      %1414 = vmatpush.msra.mxu0 0.0
      %1415 = vmatpush.msra.mxu0 0.0
      %1416 = vmatpush.msra.mxu0 0.0
      %1417 = vmatpush.msra.mxu0 0.0
      %1418 = vmatpush.msra.mxu0 %v1354
      %1419 = vmatpush.msra.mxu0 %v1353
      %1420 = vmatpush.msra.mxu0 %v1352
      %1421 = vmatpush.msra.mxu0 %v1351
      %1422 = vmatpush.msra.mxu0 %v1350
      %1423 = vmatpush.msra.mxu0 %v1349
      %1424 = vmatpush.msra.mxu0 %v1348
      %1425 = vmatpush.msra.mxu0 %v1347
      %1426 = vmatmul.f32.gmra.mxu0 %v1405
      %v1427 = vpop.f32.mrf.mxu0
      %v1428 = vadd.f32 %v1403, %v1427
      %1429 = vmatmul.f32.gmra.mxu0 %v1408
      %v1430 = vpop.f32.mrf.mxu0
      %v1431 = vadd.f32 %v1403, %v1430
      %1432 = vdwg.mxu0
      %v1433 = vadd.f32 %v1339, %v1428
      %v1434 = vadd.f32 %v1340, %v1431
      %v1435 = vsel %vm330, %v1433, 0.0
      %1436 = vadd.xlane.f32.xlu0 %v1435
      %v1437 = vpop.xlane.xlu0 %1436
      %v1438 = vsel %vm330, %v1434, 0.0
      %1439 = vadd.xlane.f32.xlu0 %v1438
      %v1440 = vpop.xlane.xlu0 %1439
      %v1441 = vmul.f32 %v1437, %v343
      %v1442 = vmul.f32 %v1440, %v343
      %v1443 = vsub.f32 %v1433, %v1441
      %v1444 = vsub.f32 %v1434, %v1442
      %v1445 = vmul.f32 %v1443, %v1443
      %v1446 = vmul.f32 %v1444, %v1444
      %v1447 = vsel %vm330, %v1445, 0.0
      %1448 = vadd.xlane.f32.xlu0 %v1447
      %v1449 = vpop.xlane.xlu0 %1448
      %v1450 = vsel %vm330, %v1446, 0.0
      %1451 = vadd.xlane.f32.xlu0 %v1450
      %v1452 = vpop.xlane.xlu0 %1451
      %v1453 = vmul.f32 %v1449, %v343
      %v1454 = vmul.f32 %v1452, %v343
      %v1455 = vadd.f32 %v1453, 1e-12
      %v1456 = vadd.f32 %v1454, 1e-12
      %v1457 = vrsqrt.pop %v1455
      %v1458 = vmul.f32 %v1457, %v1455
      %v1459 = vmul.f32 %v1458, %v1457
      %v1460 = vmul.f32 0.5, %v1459
      %v1461 = vsub.f32 1.5, %v1460
      %v1462 = vmul.f32 %v1457, %v1461
      %vm1463 = vweird.f32 %v1455
      %vm1464 = vweird.f32 %v1457
      %vm1465 = vmor %vm1463, %vm1464
      %v1466 = vsel %vm1465, %v1457, %v1462
      %v1467 = vrsqrt.pop %v1456
      %v1468 = vmul.f32 %v1467, %v1456
      %v1469 = vmul.f32 %v1468, %v1467
      %v1470 = vmul.f32 0.5, %v1469
      %v1471 = vsub.f32 1.5, %v1470
      %v1472 = vmul.f32 %v1467, %v1471
      %vm1473 = vweird.f32 %v1456
      %vm1474 = vweird.f32 %v1467
      %vm1475 = vmor %vm1473, %vm1474
      %v1476 = vsel %vm1475, %v1467, %v1472
      %v1477 = vmul.f32 %v1443, %v1466
      %v1478 = vmul.f32 %v1444, %v1476
      %v1479 = vperm.slane %v936, 6
      %v1480 = vmul.f32 %v1477, %v1479
      %v1481 = vmul.f32 %v1478, %v1479
      %v1482 = vperm.slane %v936, 7
      %v1483 = vadd.f32 %v1480, %v1482
      %v1484 = vadd.f32 %v1481, %v1482
      %v1485 = vlaneseq
      %v1486 = vand.u32 %v1485, 127
      %v1487 = vlaneseq
      %v1488 = vshrl.u32 %v1487, 7
      %v1489 = vmul.u32 %v1488, 8
      %vm1490 = vcmp.ge.s32.totalorder %v1486, %v1489
      %v1491 = vadd.s32 %v1489, 8
      %vm1492 = vcmp.lt.s32.totalorder %v1486, %v1491
      %vm1493 = vmand %vm1490, %vm1492
      %v1494 = vsel %vm1493, 0.125, 0.0
      %v1496 = vsel %vm429, %v1494, 0
      %1498 = vmatpush.msra.mxu0 0.0
      %1499 = vmatpush.msra.mxu0 0.0
      %1500 = vmatpush.msra.mxu0 0.0
      %1501 = vmatpush.msra.mxu0 0.0
      %1502 = vmatpush.msra.mxu0 0.0
      %1503 = vmatpush.msra.mxu0 0.0
      %1504 = vmatpush.msra.mxu0 0.0
      %1505 = vmatpush.msra.mxu0 0.0
      %1506 = vmatpush.msra.mxu0 0.0
      %1507 = vmatpush.msra.mxu0 0.0
      %1508 = vmatpush.msra.mxu0 0.0
      %1509 = vmatpush.msra.mxu0 0.0
      %1510 = vmatpush.msra.mxu0 0.0
      %1511 = vmatpush.msra.mxu0 0.0
      %1512 = vmatpush.msra.mxu0 %v387
      %1513 = vmatpush.msra.mxu0 %v386
      %1514 = vmatmul.f32.gmra.mxu0 %v1496
      %v1515 = vpop.f32.mrf.mxu0
      %v1516 = vadd.f32 0.0, %v1515
      %1517 = vdwg.mxu0
      %v1518 = vld [vmem:[%s7] sm:$0xff]
      %v1519 = vld [vmem:[%s7 + $0x8] sm:$0xff]
      %v1520 = vld [vmem:[%s7 + $0x10] sm:$0xff]
      %v1521 = vld [vmem:[%s7 + $0x18] sm:$0xff]
      %1522 = vmatpush.msra.mxu0 0.0
      %1523 = vmatpush.msra.mxu0 0.0
      %1524 = vmatpush.msra.mxu0 0.0
      %1525 = vmatpush.msra.mxu0 0.0
      %1526 = vmatpush.msra.mxu0 0.0
      %1527 = vmatpush.msra.mxu0 0.0
      %1528 = vmatpush.msra.mxu0 0.0
      %1529 = vmatpush.msra.mxu0 0.0
      %1530 = vmatpush.msra.mxu0 0.0
      %1531 = vmatpush.msra.mxu0 0.0
      %1532 = vmatpush.msra.mxu0 0.0
      %1533 = vmatpush.msra.mxu0 0.0
      %1534 = vmatpush.msra.mxu0 0.0
      %1535 = vmatpush.msra.mxu0 0.0
      %1536 = vmatpush.msra.mxu0 %v1484
      %1537 = vmatpush.msra.mxu0 %v1483
      %1538 = vmatmul.f32.gmra.mxu0 %v1496
      %v1539 = vpop.f32.mrf.mxu0
      %v1540 = vadd.f32 0.0, %v1539
      %1541 = vdwg.mxu0
      %s1542 = scalar_lea.vmem %s7, 32
      %v1543 = vld [vmem:[%s1542] sm:$0xff]
      %v1544 = vld [vmem:[%s1542 + $0x8] sm:$0xff]
      %v1545 = vld [vmem:[%s1542 + $0x10] sm:$0xff]
      %v1546 = vld [vmem:[%s1542 + $0x18] sm:$0xff]
      %v1548 = vsel %vm330, %v1540, 0
      %1550 = vmatpush.msra.mxu0 0.0
      %1551 = vmatpush.msra.mxu0 0.0
      %1552 = vmatpush.msra.mxu0 0.0
      %1553 = vmatpush.msra.mxu0 0.0
      %1554 = vmatpush.msra.mxu0 0.0
      %1555 = vmatpush.msra.mxu0 0.0
      %1556 = vmatpush.msra.mxu0 0.0
      %1557 = vmatpush.msra.mxu0 0.0
      %1558 = vmatpush.msra.mxu0 0.0
      %1559 = vmatpush.msra.mxu0 0.0
      %1560 = vmatpush.msra.mxu0 0.0
      %1561 = vmatpush.msra.mxu0 0.0
      %1562 = vmatpush.msra.mxu0 %v1546
      %1563 = vmatpush.msra.mxu0 %v1545
      %1564 = vmatpush.msra.mxu0 %v1544
      %1565 = vmatpush.msra.mxu0 %v1543
      %1566 = vmatmul.f32.gmra.mxu0 %v1548
      %v1567 = vpop.f32.mrf.mxu0
      %v1568 = vadd.f32 0.0, %v1567
      %1569 = vdwg.mxu0
      %v1571 = vsel %vm330, %v1516, 0
      %1573 = vmatpush.msra.mxu0 0.0
      %1574 = vmatpush.msra.mxu0 0.0
      %1575 = vmatpush.msra.mxu0 0.0
      %1576 = vmatpush.msra.mxu0 0.0
      %1577 = vmatpush.msra.mxu0 0.0
      %1578 = vmatpush.msra.mxu0 0.0
      %1579 = vmatpush.msra.mxu0 0.0
      %1580 = vmatpush.msra.mxu0 0.0
      %1581 = vmatpush.msra.mxu0 0.0
      %1582 = vmatpush.msra.mxu0 0.0
      %1583 = vmatpush.msra.mxu0 0.0
      %1584 = vmatpush.msra.mxu0 0.0
      %1585 = vmatpush.msra.mxu0 %v1521
      %1586 = vmatpush.msra.mxu0 %v1520
      %1587 = vmatpush.msra.mxu0 %v1519
      %1588 = vmatpush.msra.mxu0 %v1518
      %1589 = vmatmul.f32.gmra.mxu0 %v1571
      %v1590 = vpop.f32.mrf.mxu0
      %v1591 = vadd.f32 %v1568, %v1590
      %1592 = vdwg.mxu0
      %1593 = vmatpush.msra.mxu0 0.0
      %1594 = vmatpush.msra.mxu0 0.0
      %1595 = vmatpush.msra.mxu0 0.0
      %1596 = vmatpush.msra.mxu0 0.0
      %1597 = vmatpush.msra.mxu0 0.0
      %1598 = vmatpush.msra.mxu0 0.0
      %1599 = vmatpush.msra.mxu0 0.0
      %1600 = vmatpush.msra.mxu0 0.0
      %1601 = vmatpush.msra.mxu0 0.0
      %1602 = vmatpush.msra.mxu0 0.0
      %1603 = vmatpush.msra.mxu0 0.0
      %1604 = vmatpush.msra.mxu0 0.0
      %1605 = vmatpush.msra.mxu0 0.0
      %1606 = vmatpush.msra.mxu0 0.0
      %1607 = vmatpush.msra.mxu0 %v934
      %1608 = vmatpush.msra.mxu0 %v933
      %1609 = vmatmul.f32.gmra.mxu0 %v1496
      %v1610 = vpop.f32.mrf.mxu0
      %v1611 = vadd.f32 0.0, %v1610
      %1612 = vdwg.mxu0
      %s1613 = scalar_lea.vmem %s7, 64
      %v1614 = vld [vmem:[%s1613] sm:$0xff]
      %v1615 = vld [vmem:[%s1613 + $0x8] sm:$0xff]
      %v1616 = vld [vmem:[%s1613 + $0x10] sm:$0xff]
      %v1617 = vld [vmem:[%s1613 + $0x18] sm:$0xff]
      %v1619 = vsel %vm330, %v1611, 0
      %1621 = vmatpush.msra.mxu0 0.0
      %1622 = vmatpush.msra.mxu0 0.0
      %1623 = vmatpush.msra.mxu0 0.0
      %1624 = vmatpush.msra.mxu0 0.0
      %1625 = vmatpush.msra.mxu0 0.0
      %1626 = vmatpush.msra.mxu0 0.0
      %1627 = vmatpush.msra.mxu0 0.0
      %1628 = vmatpush.msra.mxu0 0.0
      %1629 = vmatpush.msra.mxu0 0.0
      %1630 = vmatpush.msra.mxu0 0.0
      %1631 = vmatpush.msra.mxu0 0.0
      %1632 = vmatpush.msra.mxu0 0.0
      %1633 = vmatpush.msra.mxu0 %v1617
      %1634 = vmatpush.msra.mxu0 %v1616
      %1635 = vmatpush.msra.mxu0 %v1615
      %1636 = vmatpush.msra.mxu0 %v1614
      %1637 = vmatmul.f32.gmra.mxu0 %v1619
      %v1638 = vpop.f32.mrf.mxu0
      %v1639 = vadd.f32 0.0, %v1638
      %1640 = vdwg.mxu0
      %v1641 = vadd.f32 %v1591, %v1639
      %v1642 = vperm.slane %v327, 2
      %v1643 = vadd.f32 %v1641, %v1642
      %v1644 = vmul.f32 %v1643, %v1643
      %vm1645 = vcmask 123904
      %v1646 = vsel %vm1645, %v1644, 0.0
      %1647 = vadd.xlane.f32.xlu0 %v1646
      %v1648 = vpop.xlane.xlu0 %1647
      %v1649 = vrsqrt.pop %v1648
      %v1650 = vmul.f32 %v1649, %v1648
      %v1651 = vmul.f32 %v1650, %v1649
      %v1652 = vmul.f32 0.5, %v1651
      %v1653 = vsub.f32 1.5, %v1652
      %v1654 = vmul.f32 %v1649, %v1653
      %v1655 = vmul.f32 %v1648, %v1654
      %vm1656 = vcmp.eq.f32.partialorder %v1648, inf
      %v1657 = vsel %vm1656, %v1648, %v1655
      %vm1658 = vcmp.eq.f32.partialorder %v1648, 0.0
      %v1659 = vand.u32 %v1648, 2147483648
      %v1660 = vsel %vm1658, %v1659, %v1657
      %v1661 = vmax.f32 %v1660, 1e-12
      %v1662 = vrcp.pop %v1661
      %v1663 = vmul.f32 %v1661, %v1662
      %v1664 = vsub.f32 1.0, %v1663
      %v1665 = vmul.f32 %v1662, %v1664
      %v1666 = vadd.f32 %v1662, %v1665
      %vm1667 = vweird.f32 %v1661
      %vm1668 = vweird.f32 %v1662
      %vm1669 = vmor %vm1667, %vm1668
      %v1670 = vsel %vm1669, %v1662, %v1666
      %v1671 = vand.u32 2147483647, %v1661
      %vm1672 = vcmp.eq.f32.partialorder %v1671, 8.507059e+37
      %v1673 = vand.u32 %v1661, 2147483648
      %v1674 = vor.u32 1.1754944e-38, %v1673
      %v1675 = vsel %vm1672, %v1674, %v1670
      %v1676 = vmul.f32 %v1643, %v1675
      %1677 = vst.msk [vmem:[%s323] sm:$0x3] %vm1645, %v1676
      %p1678 = scmp.lt.s32.totalorder %s19, 1
      %s1679 = scalar_select %p1678, %s19, 1
      %s1680 = smul.addr %s1679, 2
      %s1681 = scalar_lea.vmem %s8, %s1680
      // Predicated region
      $region53: #{forward.2} parent=51 // pred_check
        %p1682 = pneg %p215
      $region54: #{forward.2} parent=51 // pred_check_branch
        %1684 = sbr.rel (%p1682) target = $region56
      $region55: #{forward.2} parent=51 // pred_region
        _
      $region56: #{forward.2} parent=51 // pred_fallthru
        _
    $region52: #{forward.2} parent=5 // pred_fallthru
      _
    %p1685 = scmp.le.s32.totalorder 2, %s14
    // Predicated region
    $region57: #{forward.2} parent=5 // pred_check
      %p1686 = pneg %p1685
    $region58: #{forward.2} parent=5 // pred_check_branch
      %1688 = sbr.rel (%p1686) target = $region60
    $region59: #{forward.2} parent=5 // pred_region
      %s1689 = ssub.s32 %s14, 2
      // Predicated region
      $region61: #{forward.2} parent=59 // pred_check
        %p1690 = pneg %p221
      $region62: #{forward.2} parent=59 // pred_check_branch
        %1692 = sbr.rel (%p1690) target = $region64
      $region63: #{forward.2} parent=59 // pred_region
        %p1693 = scmp.lt.s32.totalorder %s20, 1
        %s1694 = scalar_select %p1693, %s20, 1
        %s1695 = smul.addr %s1694, 2
        %s1696 = scalar_lea.vmem %s8, %s1695
      $region64: #{forward.2} parent=59 // pred_fallthru
        _
    $region60: #{forward.2} parent=5 // pred_fallthru
      _
  $region6: #{forward.2} parent=0 // loop_footer
    %s18 = sadd.s32 1, %s14
  $region7: #{forward.2} parent=0 // loop_footer_branch
    %13 = sbr.rel target = $region3
  $region8: #{forward.2} parent=0 // loop_exit
    _

// kernel: forward.3
$region0: #{forward.3}
  #allocation0 [shape = 'u32[]', space=smem, size = 0x4, offset = 0x4, fixed_abs, tag = 'smem constant byte address 0x4 - core index']
  #allocation1 [shape = 'u32[72,128]{1,0:T(1,128)}', space=vmem, size = 0x9000, scoped, tag = 'internal scratch']
  %s0 = inlined_call_operand.vmem [shape: f32[2,34,65], index: 0, kind: input, shape index: {}]
  %s1 = inlined_call_operand.vmem [shape: f32[34,34], index: 1, kind: input, shape index: {}]
  %s2 = inlined_call_operand.vmem [shape: f32[2,65,32], index: 2, kind: input, shape index: {}]
  %s3 = inlined_call_operand.vmem [shape: f32[2,2,32,96], index: 3, kind: input, shape index: {}]
  %s4 = inlined_call_operand.vmem [shape: f32[2,2,2,16,32], index: 4, kind: input, shape index: {}]
  %s5 = inlined_call_operand.vmem [shape: f32[2,2,32,128], index: 5, kind: input, shape index: {}]
  %s6 = inlined_call_operand.vmem [shape: f32[2,2,128,32], index: 6, kind: input, shape index: {}]
  %s7 = inlined_call_operand.vmem [shape: f32[2,3,8,128], index: 7, kind: input, shape index: {}]
  %s8 = inlined_call_operand.vmem [shape: f32[2,2,32], index: 8, kind: output, shape index: {}]
  %s9 = sld [smem:[#allocation0]]
  $region65: #{forward.3} parent=0
    _
  %s11 = ssub.s32 1, %s9
  %s12 = scalar_select 0, %s11, %s9
  loop: start=0, step=1, limit=4
  $region2: #{forward.3} parent=0 // loop_pre_header
    _
  $region3: #{forward.3} parent=0 // loop_header
    %s14 = sphi 0, %s18
    %p15 = scmp.ge.s32.totalorder %s14, 4
    %s24 = sphi 0, %s26
    %s27 = sphi 0, %s24
    %s28 = sphi 0, %s27
    %s44 = sphi 0, %s28
    %s48 = sphi 0, %s48
    %s50 = sphi 0, %s48
    %s51 = sphi 0, %s50
    %s65 = sphi 0, %s51
    %s71 = sphi 0, %s73
    %s74 = sphi 0, %s71
    %s75 = sphi 0, %s74
    %s91 = sphi 0, %s75
    %s97 = sphi 0, %s99
    %s100 = sphi 0, %s97
    %s101 = sphi 0, %s100
    %s117 = sphi 0, %s101
    %s123 = sphi 0, %s125
    %s126 = sphi 0, %s123
    %s127 = sphi 0, %s126
    %s143 = sphi 0, %s127
    %s149 = sphi 0, %s151
    %s152 = sphi 0, %s149
    %s153 = sphi 0, %s152
    %s169 = sphi 0, %s153
    %s175 = sphi 0, %s177
    %s178 = sphi 0, %s175
    %s179 = sphi 0, %s178
    %s195 = sphi 0, %s179
    %s201 = sphi 0, %s203
    %s204 = sphi 0, %s201
    %s205 = sphi 0, %s204
    %s221 = sphi 0, %s205
    %s227 = sphi 0, %s229
    %s230 = sphi 0, %s227
    %s231 = sphi 0, %s230
    %s247 = sphi 0, %s231
  $region4: #{forward.3} parent=0 // loop_header_branch
    %17 = sbr.rel (%p15) target = $region8
  $region5: #{forward.3} parent=0 // loop_body
    %s19 = ssub.s32 %s14, 1
    %s20 = ssub.s32 %s14, 2
    %s21 = sadd.s32 %s14, 1
    %s22 = ssub.s32 %s14, %s21
    %p23 = scmp.eq.s32.totalorder %s22, 0
    %s25 = sadd.s32 %s24, 1
    %s26 = scalar_select %p23, %s24, %s25
    %p29 = pneg %p23
    %p30 = scmp.eq.s32.totalorder %s14, 1
    %p31 = por %p29, %p30
    %p32 = scmp.ne.s32.totalorder %s24, %s27
    %p33 = scmp.eq.s32.totalorder %s14, 0
    %p34 = por %p32, %p33
    %p35 = scmp.ne.s32.totalorder %s24, %s27
    %p36 = scmp.eq.s32.totalorder %s19, 1
    %p37 = por %p35, %p36
    %p38 = scmp.ne.s32.totalorder %s27, %s28
    %p39 = scmp.eq.s32.totalorder %s19, 0
    %p40 = por %p38, %p39
    %p41 = scmp.ne.s32.totalorder %s27, %s28
    %p42 = scmp.eq.s32.totalorder %s20, 1
    %p43 = por %p41, %p42
    %p45 = scmp.ne.s32.totalorder %s28, %s44
    %p46 = scmp.eq.s32.totalorder %s20, 0
    %p47 = por %p45, %p46
    %s49 = sadd.s32 %s48, 1
    %p52 = scmp.eq.s32.totalorder %s14, 1
    %p53 = scmp.ne.s32.totalorder %s48, %s50
    %p54 = scmp.eq.s32.totalorder %s14, 0
    %p55 = por %p53, %p54
    %p56 = scmp.ne.s32.totalorder %s48, %s50
    %p57 = scmp.eq.s32.totalorder %s19, 1
    %p58 = por %p56, %p57
    %p59 = scmp.ne.s32.totalorder %s50, %s51
    %p60 = scmp.eq.s32.totalorder %s19, 0
    %p61 = por %p59, %p60
    %p62 = scmp.ne.s32.totalorder %s50, %s51
    %p63 = scmp.eq.s32.totalorder %s20, 1
    %p64 = por %p62, %p63
    %p66 = scmp.ne.s32.totalorder %s51, %s65
    %p67 = scmp.eq.s32.totalorder %s20, 0
    %p68 = por %p66, %p67
    %s69 = ssub.s32 %s14, %s21
    %p70 = scmp.eq.s32.totalorder %s69, 0
    %s72 = sadd.s32 %s71, 1
    %s73 = scalar_select %p70, %s71, %s72
    %p76 = pneg %p70
    %p77 = scmp.eq.s32.totalorder %s14, 1
    %p78 = por %p76, %p77
    %p79 = scmp.ne.s32.totalorder %s71, %s74
    %p80 = scmp.eq.s32.totalorder %s14, 0
    %p81 = por %p79, %p80
    %p82 = scmp.ne.s32.totalorder %s71, %s74
    %p83 = scmp.eq.s32.totalorder %s19, 1
    %p84 = por %p82, %p83
    %p85 = scmp.ne.s32.totalorder %s74, %s75
    %p86 = scmp.eq.s32.totalorder %s19, 0
    %p87 = por %p85, %p86
    %p88 = scmp.ne.s32.totalorder %s74, %s75
    %p89 = scmp.eq.s32.totalorder %s20, 1
    %p90 = por %p88, %p89
    %p92 = scmp.ne.s32.totalorder %s75, %s91
    %p93 = scmp.eq.s32.totalorder %s20, 0
    %p94 = por %p92, %p93
    %s95 = ssub.s32 %s14, %s21
    %p96 = scmp.eq.s32.totalorder %s95, 0
    %s98 = sadd.s32 %s97, 1
    %s99 = scalar_select %p96, %s97, %s98
    %p102 = pneg %p96
    %p103 = scmp.eq.s32.totalorder %s14, 1
    %p104 = por %p102, %p103
    %p105 = scmp.ne.s32.totalorder %s97, %s100
    %p106 = scmp.eq.s32.totalorder %s14, 0
    %p107 = por %p105, %p106
    %p108 = scmp.ne.s32.totalorder %s97, %s100
    %p109 = scmp.eq.s32.totalorder %s19, 1
    %p110 = por %p108, %p109
    %p111 = scmp.ne.s32.totalorder %s100, %s101
    %p112 = scmp.eq.s32.totalorder %s19, 0
    %p113 = por %p111, %p112
    %p114 = scmp.ne.s32.totalorder %s100, %s101
    %p115 = scmp.eq.s32.totalorder %s20, 1
    %p116 = por %p114, %p115
    %p118 = scmp.ne.s32.totalorder %s101, %s117
    %p119 = scmp.eq.s32.totalorder %s20, 0
    %p120 = por %p118, %p119
    %s121 = ssub.s32 %s14, %s21
    %p122 = scmp.eq.s32.totalorder %s121, 0
    %s124 = sadd.s32 %s123, 1
    %s125 = scalar_select %p122, %s123, %s124
    %p128 = pneg %p122
    %p129 = scmp.eq.s32.totalorder %s14, 1
    %p130 = por %p128, %p129
    %p131 = scmp.ne.s32.totalorder %s123, %s126
    %p132 = scmp.eq.s32.totalorder %s14, 0
    %p133 = por %p131, %p132
    %p134 = scmp.ne.s32.totalorder %s123, %s126
    %p135 = scmp.eq.s32.totalorder %s19, 1
    %p136 = por %p134, %p135
    %p137 = scmp.ne.s32.totalorder %s126, %s127
    %p138 = scmp.eq.s32.totalorder %s19, 0
    %p139 = por %p137, %p138
    %p140 = scmp.ne.s32.totalorder %s126, %s127
    %p141 = scmp.eq.s32.totalorder %s20, 1
    %p142 = por %p140, %p141
    %p144 = scmp.ne.s32.totalorder %s127, %s143
    %p145 = scmp.eq.s32.totalorder %s20, 0
    %p146 = por %p144, %p145
    %s147 = ssub.s32 %s14, %s21
    %p148 = scmp.eq.s32.totalorder %s147, 0
    %s150 = sadd.s32 %s149, 1
    %s151 = scalar_select %p148, %s149, %s150
    %p154 = pneg %p148
    %p155 = scmp.eq.s32.totalorder %s14, 1
    %p156 = por %p154, %p155
    %p157 = scmp.ne.s32.totalorder %s149, %s152
    %p158 = scmp.eq.s32.totalorder %s14, 0
    %p159 = por %p157, %p158
    %p160 = scmp.ne.s32.totalorder %s149, %s152
    %p161 = scmp.eq.s32.totalorder %s19, 1
    %p162 = por %p160, %p161
    %p163 = scmp.ne.s32.totalorder %s152, %s153
    %p164 = scmp.eq.s32.totalorder %s19, 0
    %p165 = por %p163, %p164
    %p166 = scmp.ne.s32.totalorder %s152, %s153
    %p167 = scmp.eq.s32.totalorder %s20, 1
    %p168 = por %p166, %p167
    %p170 = scmp.ne.s32.totalorder %s153, %s169
    %p171 = scmp.eq.s32.totalorder %s20, 0
    %p172 = por %p170, %p171
    %s173 = ssub.s32 %s14, %s21
    %p174 = scmp.eq.s32.totalorder %s173, 0
    %s176 = sadd.s32 %s175, 1
    %s177 = scalar_select %p174, %s175, %s176
    %p180 = pneg %p174
    %p181 = scmp.eq.s32.totalorder %s14, 1
    %p182 = por %p180, %p181
    %p183 = scmp.ne.s32.totalorder %s175, %s178
    %p184 = scmp.eq.s32.totalorder %s14, 0
    %p185 = por %p183, %p184
    %p186 = scmp.ne.s32.totalorder %s175, %s178
    %p187 = scmp.eq.s32.totalorder %s19, 1
    %p188 = por %p186, %p187
    %p189 = scmp.ne.s32.totalorder %s178, %s179
    %p190 = scmp.eq.s32.totalorder %s19, 0
    %p191 = por %p189, %p190
    %p192 = scmp.ne.s32.totalorder %s178, %s179
    %p193 = scmp.eq.s32.totalorder %s20, 1
    %p194 = por %p192, %p193
    %p196 = scmp.ne.s32.totalorder %s179, %s195
    %p197 = scmp.eq.s32.totalorder %s20, 0
    %p198 = por %p196, %p197
    %s199 = ssub.s32 %s14, %s21
    %p200 = scmp.eq.s32.totalorder %s199, 0
    %s202 = sadd.s32 %s201, 1
    %s203 = scalar_select %p200, %s201, %s202
    %p206 = pneg %p200
    %p207 = scmp.eq.s32.totalorder %s14, 1
    %p208 = por %p206, %p207
    %p209 = scmp.ne.s32.totalorder %s201, %s204
    %p210 = scmp.eq.s32.totalorder %s14, 0
    %p211 = por %p209, %p210
    %p212 = scmp.ne.s32.totalorder %s201, %s204
    %p213 = scmp.eq.s32.totalorder %s19, 1
    %p214 = por %p212, %p213
    %p215 = scmp.ne.s32.totalorder %s204, %s205
    %p216 = scmp.eq.s32.totalorder %s19, 0
    %p217 = por %p215, %p216
    %p218 = scmp.ne.s32.totalorder %s204, %s205
    %p219 = scmp.eq.s32.totalorder %s20, 1
    %p220 = por %p218, %p219
    %p222 = scmp.ne.s32.totalorder %s205, %s221
    %p223 = scmp.eq.s32.totalorder %s20, 0
    %p224 = por %p222, %p223
    %s225 = ssub.s32 %s14, %s21
    %p226 = scmp.eq.s32.totalorder %s225, 0
    %s228 = sadd.s32 %s227, 1
    %s229 = scalar_select %p226, %s227, %s228
    %p232 = pneg %p226
    %p233 = scmp.eq.s32.totalorder %s14, 1
    %p234 = por %p232, %p233
    %p235 = scmp.ne.s32.totalorder %s227, %s230
    %p236 = scmp.eq.s32.totalorder %s14, 0
    %p237 = por %p235, %p236
    %p238 = scmp.ne.s32.totalorder %s227, %s230
    %p239 = scmp.eq.s32.totalorder %s19, 1
    %p240 = por %p238, %p239
    %p241 = scmp.ne.s32.totalorder %s230, %s231
    %p242 = scmp.eq.s32.totalorder %s19, 0
    %p243 = por %p241, %p242
    %p244 = scmp.ne.s32.totalorder %s230, %s231
    %p245 = scmp.eq.s32.totalorder %s20, 1
    %p246 = por %p244, %p245
    %p248 = scmp.ne.s32.totalorder %s231, %s247
    %p249 = scmp.eq.s32.totalorder %s20, 0
    %p250 = por %p248, %p249
    %p251 = scmp.le.s32.totalorder 1, %s14
    %p252 = scmp.lt.s32.totalorder %s14, 3
    %p253 = pnand %p251, %p252
    %p254 = pneg %p253
    // Predicated region
    $region9: #{forward.3} parent=5 // pred_check
      _
    $region10: #{forward.3} parent=5 // pred_check_branch
      %256 = sbr.rel (%p253) target = $region12
    $region11: #{forward.3} parent=5 // pred_region
      %s257 = ssub.s32 %s14, 1
      // Predicated region
      $region13: #{forward.3} parent=11 // pred_check
        %p258 = pneg %p61
      $region14: #{forward.3} parent=11 // pred_check_branch
        %260 = sbr.rel (%p258) target = $region16
      $region15: #{forward.3} parent=11 // pred_region
        _
      $region16: #{forward.3} parent=11 // pred_fallthru
        _
    $region12: #{forward.3} parent=5 // pred_fallthru
      _
    %p261 = scmp.lt.s32.totalorder %s14, 2
    // Predicated region
    $region17: #{forward.3} parent=5 // pred_check
      %p262 = pneg %p261
    $region18: #{forward.3} parent=5 // pred_check_branch
      %264 = sbr.rel (%p262) target = $region20
    $region19: #{forward.3} parent=5 // pred_region
      // Predicated region
      $region21: #{forward.3} parent=19 // pred_check
        %p265 = pneg %p34
      $region22: #{forward.3} parent=19 // pred_check_branch
        %267 = sbr.rel (%p265) target = $region24
      $region23: #{forward.3} parent=19 // pred_region
        %p268 = scmp.lt.s32.totalorder %s14, 1
        %s269 = scalar_select %p268, %s14, 1
        %s270 = smul.addr %s269, 5
        %s271 = smul.addr %s270, 8
        %s272 = scalar_lea.vmem %s0, %s271
      $region24: #{forward.3} parent=19 // pred_fallthru
        _
      // Predicated region
      $region25: #{forward.3} parent=19 // pred_check
        %p273 = pneg %p81
      $region26: #{forward.3} parent=19 // pred_check_branch
        %275 = sbr.rel (%p273) target = $region28
      $region27: #{forward.3} parent=19 // pred_region
        %p276 = scmp.lt.s32.totalorder %s14, 1
        %s277 = scalar_select %p276, %s14, 1
        %s278 = smul.addr %s277, 9
        %s279 = smul.addr %s278, 8
        %s280 = scalar_lea.vmem %s2, %s279
      $region28: #{forward.3} parent=19 // pred_fallthru
        _
      // Predicated region
      $region29: #{forward.3} parent=19 // pred_check
        %p281 = pneg %p107
      $region30: #{forward.3} parent=19 // pred_check_branch
        %283 = sbr.rel (%p281) target = $region32
      $region31: #{forward.3} parent=19 // pred_region
        %p284 = scmp.lt.s32.totalorder %s14, 1
        %s285 = scalar_select %p284, %s14, 1
        %s286 = smul.addr %s285, 8
        %s287 = smul.addr %s286, 8
        %s288 = scalar_lea.vmem %s3, %s287
      $region32: #{forward.3} parent=19 // pred_fallthru
        _
      // Predicated region
      $region33: #{forward.3} parent=19 // pred_check
        %p289 = pneg %p133
      $region34: #{forward.3} parent=19 // pred_check_branch
        %291 = sbr.rel (%p289) target = $region36
      $region35: #{forward.3} parent=19 // pred_region
        %p292 = scmp.lt.s32.totalorder %s14, 1
        %s293 = scalar_select %p292, %s14, 1
        %s294 = smul.addr %s293, 8
        %s295 = smul.addr %s294, 8
        %s296 = scalar_lea.vmem %s4, %s295
      $region36: #{forward.3} parent=19 // pred_fallthru
        _
      // Predicated region
      $region37: #{forward.3} parent=19 // pred_check
        %p297 = pneg %p159
      $region38: #{forward.3} parent=19 // pred_check_branch
        %299 = sbr.rel (%p297) target = $region40
      $region39: #{forward.3} parent=19 // pred_region
        %p300 = scmp.lt.s32.totalorder %s14, 1
        %s301 = scalar_select %p300, %s14, 1
        %s302 = smul.addr %s301, 8
        %s303 = smul.addr %s302, 8
        %s304 = scalar_lea.vmem %s5, %s303
      $region40: #{forward.3} parent=19 // pred_fallthru
        _
      // Predicated region
      $region41: #{forward.3} parent=19 // pred_check
        %p305 = pneg %p185
      $region42: #{forward.3} parent=19 // pred_check_branch
        %307 = sbr.rel (%p305) target = $region44
      $region43: #{forward.3} parent=19 // pred_region
        %p308 = scmp.lt.s32.totalorder %s14, 1
        %s309 = scalar_select %p308, %s14, 1
        %s310 = smul.addr %s309, 32
        %s311 = smul.addr %s310, 8
        %s312 = scalar_lea.vmem %s6, %s311
      $region44: #{forward.3} parent=19 // pred_fallthru
        _
      // Predicated region
      $region45: #{forward.3} parent=19 // pred_check
        %p313 = pneg %p211
      $region46: #{forward.3} parent=19 // pred_check_branch
        %315 = sbr.rel (%p313) target = $region48
      $region47: #{forward.3} parent=19 // pred_region
        %p316 = scmp.lt.s32.totalorder %s14, 1
        %s317 = scalar_select %p316, %s14, 1
        %s318 = smul.addr %s317, 3
        %s319 = smul.addr %s318, 8
        %s320 = scalar_lea.vmem %s7, %s319
      $region48: #{forward.3} parent=19 // pred_fallthru
        _
    $region20: #{forward.3} parent=5 // pred_fallthru
      _
    %p321 = scmp.le.s32.totalorder 1, %s14
    %p322 = scmp.lt.s32.totalorder %s14, 3
    %p323 = pnand %p321, %p322
    %p324 = pneg %p323
    // Predicated region
    $region49: #{forward.3} parent=5 // pred_check
      _
    $region50: #{forward.3} parent=5 // pred_check_branch
      %326 = sbr.rel (%p323) target = $region52
    $region51: #{forward.3} parent=5 // pred_region
      %s327 = ssub.s32 %s14, 1
      %p328 = scmp.lt.s32.totalorder %s19, 1
      %s329 = scalar_select %p328, %s19, 1
      %s330 = smul.addr %s329, 5
      %s331 = smul.addr %s330, 8
      %s332 = scalar_lea.vmem %s0, %s331
      %p333 = pneg %p40
      %p334 = pneg %p37
      %p335 = pneg %p61
      %p336 = pneg %p58
      %p337 = scmp.lt.s32.totalorder %s19, 1
      %s338 = scalar_select %p337, %s19, 1
      %s339 = smul.addr %s338, 9
      %s340 = smul.addr %s339, 8
      %s341 = scalar_lea.vmem %s2, %s340
      %p342 = pneg %p87
      %p343 = pneg %p84
      %p344 = scmp.lt.s32.totalorder %s19, 1
      %s345 = scalar_select %p344, %s19, 1
      %s346 = smul.addr %s345, 8
      %s347 = smul.addr %s346, 8
      %s348 = scalar_lea.vmem %s3, %s347
      %p349 = pneg %p113
      %p350 = pneg %p110
      %p351 = scmp.lt.s32.totalorder %s19, 1
      %s352 = scalar_select %p351, %s19, 1
      %s353 = smul.addr %s352, 8
      %s354 = smul.addr %s353, 8
      %s355 = scalar_lea.vmem %s4, %s354
      %p356 = pneg %p139
      %p357 = pneg %p136
      %p358 = scmp.lt.s32.totalorder %s19, 1
      %s359 = scalar_select %p358, %s19, 1
      %s360 = smul.addr %s359, 8
      %s361 = smul.addr %s360, 8
      %s362 = scalar_lea.vmem %s5, %s361
      %p363 = pneg %p165
      %p364 = pneg %p162
      %p365 = scmp.lt.s32.totalorder %s19, 1
      %s366 = scalar_select %p365, %s19, 1
      %s367 = smul.addr %s366, 32
      %s368 = smul.addr %s367, 8
      %s369 = scalar_lea.vmem %s6, %s368
      %p370 = pneg %p191
      %p371 = pneg %p188
      %p372 = scmp.lt.s32.totalorder %s19, 1
      %s373 = scalar_select %p372, %s19, 1
      %s374 = smul.addr %s373, 3
      %s375 = smul.addr %s374, 8
      %s376 = scalar_lea.vmem %s7, %s375
      %p377 = pneg %p217
      %p378 = pneg %p214
      %p379 = pneg %p243
      %p380 = pneg %p240
      %p381 = scmp.lt.s32.totalorder %s19, 1
      %s382 = scalar_select %p381, %s19, 1
      %s383 = smul.addr %s382, 2
      %s384 = scalar_lea.vmem %s8, %s383
      %p385 = scmp.lt.s32.totalorder %s19, 1
      %s386 = scalar_select %p385, %s19, 1
      %s387 = smul.addr %s386, 5
      %s388 = smul.addr %s387, 8
      %s389 = scalar_lea.vmem %s0, %s388
      %p390 = scmp.lt.s32.totalorder %s19, 1
      %s391 = scalar_select %p390, %s19, 1
      %s392 = smul.addr %s391, 9
      %s393 = smul.addr %s392, 8
      %s394 = scalar_lea.vmem %s2, %s393
      %p395 = scmp.lt.s32.totalorder %s19, 1
      %s396 = scalar_select %p395, %s19, 1
      %s397 = smul.addr %s396, 8
      %s398 = smul.addr %s397, 8
      %s399 = scalar_lea.vmem %s3, %s398
      %p400 = scmp.lt.s32.totalorder %s19, 1
      %s401 = scalar_select %p400, %s19, 1
      %s402 = smul.addr %s401, 8
      %s403 = smul.addr %s402, 8
      %s404 = scalar_lea.vmem %s4, %s403
      %p405 = scmp.lt.s32.totalorder %s19, 1
      %s406 = scalar_select %p405, %s19, 1
      %s407 = smul.addr %s406, 8
      %s408 = smul.addr %s407, 8
      %s409 = scalar_lea.vmem %s5, %s408
      %p410 = scmp.lt.s32.totalorder %s19, 1
      %s411 = scalar_select %p410, %s19, 1
      %s412 = smul.addr %s411, 32
      %s413 = smul.addr %s412, 8
      %s414 = scalar_lea.vmem %s6, %s413
      %p415 = scmp.lt.s32.totalorder %s19, 1
      %s416 = scalar_select %p415, %s19, 1
      %s417 = smul.addr %s416, 3
      %s418 = smul.addr %s417, 8
      %s419 = scalar_lea.vmem %s7, %s418
      %p420 = scmp.lt.s32.totalorder %s19, 1
      %s421 = scalar_select %p420, %s19, 1
      %s422 = smul.addr %s421, 2
      %s423 = scalar_lea.vmem %s8, %s422
      %v424 = vld [vmem:[%s1] sm:$0xff]
      %v425 = vld [vmem:[%s1 + $0x8] sm:$0xff]
      %v426 = vld [vmem:[%s1 + $0x10] sm:$0xff]
      %v427 = vld [vmem:[%s1 + $0x18] sm:$0xff]
      %v428 = vld [vmem:[%s1 + $0x20] sm:$0x3]
      %v429 = vld [vmem:[%s389] sm:$0xff]
      %v430 = vld [vmem:[%s389 + $0x8] sm:$0xff]
      %v431 = vld [vmem:[%s389 + $0x10] sm:$0xff]
      %v432 = vld [vmem:[%s389 + $0x18] sm:$0xff]
      %v433 = vld [vmem:[%s389 + $0x20] sm:$0x3]
      %v434 = vld [vmem:[%s394] sm:$0xff]
      %v435 = vld [vmem:[%s394 + $0x8] sm:$0xff]
      %v436 = vld [vmem:[%s394 + $0x10] sm:$0xff]
      %v437 = vld [vmem:[%s394 + $0x18] sm:$0xff]
      %v438 = vld [vmem:[%s394 + $0x20] sm:$0xff]
      %v439 = vld [vmem:[%s394 + $0x28] sm:$0xff]
      %v440 = vld [vmem:[%s394 + $0x30] sm:$0xff]
      %v441 = vld [vmem:[%s394 + $0x38] sm:$0xff]
      %v442 = vld [vmem:[%s394 + $0x40] sm:$0x1]
      %vm443 = vcmask 531456
      %v445 = vsel %vm443, %v429, 0
      %v448 = vsel %vm443, %v430, 0
      %v451 = vsel %vm443, %v431, 0
      %v454 = vsel %vm443, %v432, 0
      %v457 = vsel %vm443, %v433, 0
      %vm459 = vcmask 1040384
      %v461 = vsel %vm459, %v442, 0
      %463 = vmatpush.msra.mxu0 0.0
      %464 = vmatpush.msra.mxu0 0.0
      %465 = vmatpush.msra.mxu0 0.0
      %466 = vmatpush.msra.mxu0 0.0
      %467 = vmatpush.msra.mxu0 0.0
      %468 = vmatpush.msra.mxu0 0.0
      %469 = vmatpush.msra.mxu0 0.0
      %470 = vmatpush.msra.mxu0 %v461
      %471 = vmatpush.msra.mxu0 %v441
      %472 = vmatpush.msra.mxu0 %v440
      %473 = vmatpush.msra.mxu0 %v439
      %474 = vmatpush.msra.mxu0 %v438
      %475 = vmatpush.msra.mxu0 %v437
      %476 = vmatpush.msra.mxu0 %v436
      %477 = vmatpush.msra.mxu0 %v435
      %478 = vmatpush.msra.mxu0 %v434
      %479 = vmatmul.f32.gmra.mxu0 %v445
      %v480 = vpop.f32.mrf.mxu0
      %v481 = vadd.f32 0.0, %v480
      %482 = vmatmul.f32.gmra.mxu0 %v448
      %v483 = vpop.f32.mrf.mxu0
      %v484 = vadd.f32 0.0, %v483
      %485 = vmatmul.f32.gmra.mxu0 %v451
      %v486 = vpop.f32.mrf.mxu0
      %v487 = vadd.f32 0.0, %v486
      %488 = vmatmul.f32.gmra.mxu0 %v454
      %v489 = vpop.f32.mrf.mxu0
      %v490 = vadd.f32 0.0, %v489
      %491 = vmatmul.f32.gmra.mxu0 %v457
      %v492 = vpop.f32.mrf.mxu0
      %v493 = vadd.f32 0.0, %v492
      %494 = vdwg.mxu0
      %v495 = vld [vmem:[%s419] sm:$0xff]
      %vm496 = vcmask 261120
      %v497 = vsel %vm496, %v481, 0.0
      %498 = vadd.xlane.f32.xlu0 %v497
      %v499 = vpop.xlane.xlu0 %498
      %v500 = vsel %vm496, %v484, 0.0
      %501 = vadd.xlane.f32.xlu0 %v500
      %v502 = vpop.xlane.xlu0 %501
      %v503 = vsel %vm496, %v487, 0.0
      %504 = vadd.xlane.f32.xlu0 %v503
      %v505 = vpop.xlane.xlu0 %504
      %v506 = vsel %vm496, %v490, 0.0
      %507 = vadd.xlane.f32.xlu0 %v506
      %v508 = vpop.xlane.xlu0 %507
      %vm509 = vcmask 254976
      %v510 = vsel %vm509, %v493, 0.0
      %511 = vadd.xlane.f32.xlu0 %v510
      %v512 = vpop.xlane.xlu0 %511
      %v513 = vrcp.pop 32.0
      %v514 = vmul.f32 32.0, %v513
      %v515 = vsub.f32 1.0, %v514
      %v516 = vmul.f32 %v513, %v515
      %v517 = vadd.f32 %v513, %v516
      %vm518 = vweird.f32 %v513
      %v519 = vsel %vm518, %v513, %v517
      %v520 = vmul.f32 %v499, %v519
      %v521 = vmul.f32 %v502, %v519
      %v522 = vmul.f32 %v505, %v519
      %v523 = vmul.f32 %v508, %v519
      %v524 = vmul.f32 %v512, %v519
      %v525 = vsub.f32 %v481, %v520
      %v526 = vsub.f32 %v484, %v521
      %v527 = vsub.f32 %v487, %v522
      %v528 = vsub.f32 %v490, %v523
      %v529 = vsub.f32 %v493, %v524
      %v530 = vmul.f32 %v525, %v525
      %v531 = vmul.f32 %v526, %v526
      %v532 = vmul.f32 %v527, %v527
      %v533 = vmul.f32 %v528, %v528
      %v534 = vmul.f32 %v529, %v529
      %v535 = vsel %vm496, %v530, 0.0
      %536 = vadd.xlane.f32.xlu0 %v535
      %v537 = vpop.xlane.xlu0 %536
      %v538 = vsel %vm496, %v531, 0.0
      %539 = vadd.xlane.f32.xlu0 %v538
      %v540 = vpop.xlane.xlu0 %539
      %v541 = vsel %vm496, %v532, 0.0
      %542 = vadd.xlane.f32.xlu0 %v541
      %v543 = vpop.xlane.xlu0 %542
      %v544 = vsel %vm496, %v533, 0.0
      %545 = vadd.xlane.f32.xlu0 %v544
      %v546 = vpop.xlane.xlu0 %545
      %v547 = vsel %vm509, %v534, 0.0
      %548 = vadd.xlane.f32.xlu0 %v547
      %v549 = vpop.xlane.xlu0 %548
      %v550 = vmul.f32 %v537, %v519
      %v551 = vmul.f32 %v540, %v519
      %v552 = vmul.f32 %v543, %v519
      %v553 = vmul.f32 %v546, %v519
      %v554 = vmul.f32 %v549, %v519
      %v555 = vadd.f32 %v550, 1e-06
      %v556 = vadd.f32 %v551, 1e-06
      %v557 = vadd.f32 %v552, 1e-06
      %v558 = vadd.f32 %v553, 1e-06
      %v559 = vadd.f32 %v554, 1e-06
      %v560 = vrsqrt.pop %v555
      %v561 = vmul.f32 %v560, %v555
      %v562 = vmul.f32 %v561, %v560
      %v563 = vmul.f32 0.5, %v562
      %v564 = vsub.f32 1.5, %v563
      %v565 = vmul.f32 %v560, %v564
      %vm566 = vweird.f32 %v555
      %vm567 = vweird.f32 %v560
      %vm568 = vmor %vm566, %vm567
      %v569 = vsel %vm568, %v560, %v565
      %v570 = vrsqrt.pop %v556
      %v571 = vmul.f32 %v570, %v556
      %v572 = vmul.f32 %v571, %v570
      %v573 = vmul.f32 0.5, %v572
      %v574 = vsub.f32 1.5, %v573
      %v575 = vmul.f32 %v570, %v574
      %vm576 = vweird.f32 %v556
      %vm577 = vweird.f32 %v570
      %vm578 = vmor %vm576, %vm577
      %v579 = vsel %vm578, %v570, %v575
      %v580 = vrsqrt.pop %v557
      %v581 = vmul.f32 %v580, %v557
      %v582 = vmul.f32 %v581, %v580
      %v583 = vmul.f32 0.5, %v582
      %v584 = vsub.f32 1.5, %v583
      %v585 = vmul.f32 %v580, %v584
      %vm586 = vweird.f32 %v557
      %vm587 = vweird.f32 %v580
      %vm588 = vmor %vm586, %vm587
      %v589 = vsel %vm588, %v580, %v585
      %v590 = vrsqrt.pop %v558
      %v591 = vmul.f32 %v590, %v558
      %v592 = vmul.f32 %v591, %v590
      %v593 = vmul.f32 0.5, %v592
      %v594 = vsub.f32 1.5, %v593
      %v595 = vmul.f32 %v590, %v594
      %vm596 = vweird.f32 %v558
      %vm597 = vweird.f32 %v590
      %vm598 = vmor %vm596, %vm597
      %v599 = vsel %vm598, %v590, %v595
      %v600 = vrsqrt.pop %v559
      %v601 = vmul.f32 %v600, %v559
      %v602 = vmul.f32 %v601, %v600
      %v603 = vmul.f32 0.5, %v602
      %v604 = vsub.f32 1.5, %v603
      %v605 = vmul.f32 %v600, %v604
      %vm606 = vweird.f32 %v559
      %vm607 = vweird.f32 %v600
      %vm608 = vmor %vm606, %vm607
      %v609 = vsel %vm608, %v600, %v605
      %v610 = vmul.f32 %v525, %v569
      %v611 = vmul.f32 %v526, %v579
      %v612 = vmul.f32 %v527, %v589
      %v613 = vmul.f32 %v528, %v599
      %v614 = vmul.f32 %v529, %v609
      %v615 = vperm.slane %v495, 0
      %v616 = vmul.f32 %v610, %v615
      %v617 = vmul.f32 %v611, %v615
      %v618 = vmul.f32 %v612, %v615
      %v619 = vmul.f32 %v613, %v615
      %v620 = vmul.f32 %v614, %v615
      %v621 = vperm.slane %v495, 1
      %v622 = vadd.f32 %v616, %v621
      %v623 = vadd.f32 %v617, %v621
      %v624 = vadd.f32 %v618, %v621
      %v625 = vadd.f32 %v619, %v621
      %v626 = vadd.f32 %v620, %v621
      %v627 = vld [vmem:[%s399] sm:$0xff]
      %v628 = vld [vmem:[%s399 + $0x8] sm:$0xff]
      %v629 = vld [vmem:[%s399 + $0x10] sm:$0xff]
      %v630 = vld [vmem:[%s399 + $0x18] sm:$0xff]
      %v631 = vperm.slane %v495, 2
      %v633 = vsel %vm496, %v622, 0
      %v636 = vsel %vm496, %v623, 0
      %v639 = vsel %vm496, %v624, 0
      %v642 = vsel %vm496, %v625, 0
      %v645 = vsel %vm496, %v626, 0
      %647 = vmatpush.msra.mxu0 0.0
      %648 = vmatpush.msra.mxu0 0.0
      %649 = vmatpush.msra.mxu0 0.0
      %650 = vmatpush.msra.mxu0 0.0
      %651 = vmatpush.msra.mxu0 0.0
      %652 = vmatpush.msra.mxu0 0.0
      %653 = vmatpush.msra.mxu0 0.0
      %654 = vmatpush.msra.mxu0 0.0
      %655 = vmatpush.msra.mxu0 0.0
      %656 = vmatpush.msra.mxu0 0.0
      %657 = vmatpush.msra.mxu0 0.0
      %658 = vmatpush.msra.mxu0 0.0
      %659 = vmatpush.msra.mxu0 %v630
      %660 = vmatpush.msra.mxu0 %v629
      %661 = vmatpush.msra.mxu0 %v628
      %662 = vmatpush.msra.mxu0 %v627
      %663 = vmatmul.f32.gmra.mxu0 %v633
      %v664 = vpop.f32.mrf.mxu0
      %v665 = vadd.f32 %v631, %v664
      %666 = vmatmul.f32.gmra.mxu0 %v636
      %v667 = vpop.f32.mrf.mxu0
      %v668 = vadd.f32 %v631, %v667
      %669 = vmatmul.f32.gmra.mxu0 %v639
      %v670 = vpop.f32.mrf.mxu0
      %v671 = vadd.f32 %v631, %v670
      %672 = vmatmul.f32.gmra.mxu0 %v642
      %v673 = vpop.f32.mrf.mxu0
      %v674 = vadd.f32 %v631, %v673
      %675 = vmatmul.f32.gmra.mxu0 %v645
      %v676 = vpop.f32.mrf.mxu0
      %v677 = vadd.f32 %v631, %v676
      %678 = vdwg.mxu0
      %684 = vrot.lane.b32.xlu0 %v665, 96
      %v685 = vpop.permute.xlu0 %684
      %686 = vrot.lane.b32.xlu0 %v668, 96
      %v687 = vpop.permute.xlu0 %686
      %688 = vrot.lane.b32.xlu0 %v671, 96
      %v689 = vpop.permute.xlu0 %688
      %690 = vrot.lane.b32.xlu0 %v674, 96
      %v691 = vpop.permute.xlu0 %690
      %692 = vrot.lane.b32.xlu0 %v677, 96
      %v693 = vpop.permute.xlu0 %692
      %vm694 = vcmask 130048
      %v695 = vsel %vm694, %v665, 0
      %v697 = vsel %vm694, %v668, 0
      %v699 = vsel %vm694, %v671, 0
      %v701 = vsel %vm694, %v674, 0
      %v703 = vsel %vm694, %v677, 0
      %v705 = vsel %vm694, %v685, 0
      %v707 = vsel %vm694, %v687, 0
      %v709 = vsel %vm694, %v689, 0
      %v711 = vsel %vm694, %v691, 0
      %v713 = vsel %vm694, %v693, 0
      %715 = vmatpush.xpose.msra.mxu0 0.0
      %716 = vmatpush.xpose.msra.mxu0 0.0
      %717 = vmatpush.xpose.msra.mxu0 0.0
      %718 = vmatpush.xpose.msra.mxu0 0.0
      %719 = vmatpush.xpose.msra.mxu0 0.0
      %720 = vmatpush.xpose.msra.mxu0 0.0
      %721 = vmatpush.xpose.msra.mxu0 0.0
      %722 = vmatpush.xpose.msra.mxu0 0.0
      %723 = vmatpush.xpose.msra.mxu0 0.0
      %724 = vmatpush.xpose.msra.mxu0 0.0
      %725 = vmatpush.xpose.msra.mxu0 0.0
      %726 = vmatpush.xpose.msra.mxu0 %v713
      %727 = vmatpush.xpose.msra.mxu0 %v711
      %728 = vmatpush.xpose.msra.mxu0 %v709
      %729 = vmatpush.xpose.msra.mxu0 %v707
      %730 = vmatpush.xpose.msra.mxu0 %v705
      %731 = vmatmul.f32.gmra.mxu0 %v695
      %v732 = vpop.f32.mrf.mxu0
      %v733 = vadd.f32 0.0, %v732
      %734 = vmatmul.f32.gmra.mxu0 %v697
      %v735 = vpop.f32.mrf.mxu0
      %v736 = vadd.f32 0.0, %v735
      %737 = vmatmul.f32.gmra.mxu0 %v699
      %v738 = vpop.f32.mrf.mxu0
      %v739 = vadd.f32 0.0, %v738
      %740 = vmatmul.f32.gmra.mxu0 %v701
      %v741 = vpop.f32.mrf.mxu0
      %v742 = vadd.f32 0.0, %v741
      %743 = vmatmul.f32.gmra.mxu0 %v703
      %v744 = vpop.f32.mrf.mxu0
      %v745 = vadd.f32 0.0, %v744
      %746 = vdwg.mxu0
      %v747 = vmul.f32 %v733, 0.25
      %v748 = vmul.f32 %v736, 0.25
      %v749 = vmul.f32 %v739, 0.25
      %v750 = vmul.f32 %v742, 0.25
      %v751 = vmul.f32 %v745, 0.25
      %v752 = vadd.f32 %v747, %v424
      %v753 = vadd.f32 %v748, %v425
      %v754 = vadd.f32 %v749, %v426
      %v755 = vadd.f32 %v750, %v427
      %v756 = vadd.f32 %v751, %v428
      %vm757 = vcmask 277504
      %v758 = vsel %vm757, %v752, -inf
      %759 = vmax.xlane.f32.xlu0 %v758
      %v760 = vpop.xlane.xlu0 %759
      %v761 = vsel %vm757, %v753, -inf
      %762 = vmax.xlane.f32.xlu0 %v761
      %v763 = vpop.xlane.xlu0 %762
      %v764 = vsel %vm757, %v754, -inf
      %765 = vmax.xlane.f32.xlu0 %v764
      %v766 = vpop.xlane.xlu0 %765
      %v767 = vsel %vm757, %v755, -inf
      %768 = vmax.xlane.f32.xlu0 %v767
      %v769 = vpop.xlane.xlu0 %768
      %vm770 = vcmask 271360
      %v771 = vsel %vm770, %v756, -inf
      %772 = vmax.xlane.f32.xlu0 %v771
      %v773 = vpop.xlane.xlu0 %772
      %v774 = vsub.f32 %v752, %v760
      %v775 = vsub.f32 %v753, %v763
      %v776 = vsub.f32 %v754, %v766
      %v777 = vsub.f32 %v755, %v769
      %v778 = vsub.f32 %v756, %v773
      %v779 = vmul.f32 %v774, 1.442695
      %v780 = vpow.pop %v779
      %v781 = vmul.f32 %v775, 1.442695
      %v782 = vpow.pop %v781
      %v783 = vmul.f32 %v776, 1.442695
      %v784 = vpow.pop %v783
      %v785 = vmul.f32 %v777, 1.442695
      %v786 = vpow.pop %v785
      %v787 = vmul.f32 %v778, 1.442695
      %v788 = vpow.pop %v787
      %v789 = vsel %vm757, %v780, 0.0
      %790 = vadd.xlane.f32.xlu0 %v789
      %v791 = vpop.xlane.xlu0 %790
      %v792 = vsel %vm757, %v782, 0.0
      %793 = vadd.xlane.f32.xlu0 %v792
      %v794 = vpop.xlane.xlu0 %793
      %v795 = vsel %vm757, %v784, 0.0
      %796 = vadd.xlane.f32.xlu0 %v795
      %v797 = vpop.xlane.xlu0 %796
      %v798 = vsel %vm757, %v786, 0.0
      %799 = vadd.xlane.f32.xlu0 %v798
      %v800 = vpop.xlane.xlu0 %799
      %v801 = vsel %vm770, %v788, 0.0
      %802 = vadd.xlane.f32.xlu0 %v801
      %v803 = vpop.xlane.xlu0 %802
      %v804 = vrcp.pop %v791
      %v805 = vmul.f32 %v791, %v804
      %v806 = vsub.f32 1.0, %v805
      %v807 = vmul.f32 %v804, %v806
      %v808 = vadd.f32 %v804, %v807
      %vm809 = vweird.f32 %v791
      %vm810 = vweird.f32 %v804
      %vm811 = vmor %vm809, %vm810
      %v812 = vsel %vm811, %v804, %v808
      %v813 = vand.u32 2147483647, %v791
      %vm814 = vcmp.eq.f32.partialorder %v813, 8.507059e+37
      %v815 = vand.u32 %v791, 2147483648
      %v816 = vor.u32 1.1754944e-38, %v815
      %v817 = vsel %vm814, %v816, %v812
      %v818 = vmul.f32 %v780, %v817
      %v819 = vrcp.pop %v794
      %v820 = vmul.f32 %v794, %v819
      %v821 = vsub.f32 1.0, %v820
      %v822 = vmul.f32 %v819, %v821
      %v823 = vadd.f32 %v819, %v822
      %vm824 = vweird.f32 %v794
      %vm825 = vweird.f32 %v819
      %vm826 = vmor %vm824, %vm825
      %v827 = vsel %vm826, %v819, %v823
      %v828 = vand.u32 2147483647, %v794
      %vm829 = vcmp.eq.f32.partialorder %v828, 8.507059e+37
      %v830 = vand.u32 %v794, 2147483648
      %v831 = vor.u32 1.1754944e-38, %v830
      %v832 = vsel %vm829, %v831, %v827
      %v833 = vmul.f32 %v782, %v832
      %v834 = vrcp.pop %v797
      %v835 = vmul.f32 %v797, %v834
      %v836 = vsub.f32 1.0, %v835
      %v837 = vmul.f32 %v834, %v836
      %v838 = vadd.f32 %v834, %v837
      %vm839 = vweird.f32 %v797
      %vm840 = vweird.f32 %v834
      %vm841 = vmor %vm839, %vm840
      %v842 = vsel %vm841, %v834, %v838
      %v843 = vand.u32 2147483647, %v797
      %vm844 = vcmp.eq.f32.partialorder %v843, 8.507059e+37
      %v845 = vand.u32 %v797, 2147483648
      %v846 = vor.u32 1.1754944e-38, %v845
      %v847 = vsel %vm844, %v846, %v842
      %v848 = vmul.f32 %v784, %v847
      %v849 = vrcp.pop %v800
      %v850 = vmul.f32 %v800, %v849
      %v851 = vsub.f32 1.0, %v850
      %v852 = vmul.f32 %v849, %v851
      %v853 = vadd.f32 %v849, %v852
      %vm854 = vweird.f32 %v800
      %vm855 = vweird.f32 %v849
      %vm856 = vmor %vm854, %vm855
      %v857 = vsel %vm856, %v849, %v853
      %v858 = vand.u32 2147483647, %v800
      %vm859 = vcmp.eq.f32.partialorder %v858, 8.507059e+37
      %v860 = vand.u32 %v800, 2147483648
      %v861 = vor.u32 1.1754944e-38, %v860
      %v862 = vsel %vm859, %v861, %v857
      %v863 = vmul.f32 %v786, %v862
      %v864 = vrcp.pop %v803
      %v865 = vmul.f32 %v803, %v864
      %v866 = vsub.f32 1.0, %v865
      %v867 = vmul.f32 %v864, %v866
      %v868 = vadd.f32 %v864, %v867
      %vm869 = vweird.f32 %v803
      %vm870 = vweird.f32 %v864
      %vm871 = vmor %vm869, %vm870
      %v872 = vsel %vm871, %v864, %v868
      %v873 = vand.u32 2147483647, %v803
      %vm874 = vcmp.eq.f32.partialorder %v873, 8.507059e+37
      %v875 = vand.u32 %v803, 2147483648
      %v876 = vor.u32 1.1754944e-38, %v875
      %v877 = vsel %vm874, %v876, %v872
      %v878 = vmul.f32 %v788, %v877
      %879 = vrot.lane.b32.xlu0 %v665, 64
      %v880 = vpop.permute.xlu0 %879
      %881 = vrot.lane.b32.xlu0 %v668, 64
      %v882 = vpop.permute.xlu0 %881
      %883 = vrot.lane.b32.xlu0 %v671, 64
      %v884 = vpop.permute.xlu0 %883
      %885 = vrot.lane.b32.xlu0 %v674, 64
      %v886 = vpop.permute.xlu0 %885
      %887 = vrot.lane.b32.xlu0 %v677, 64
      %v888 = vpop.permute.xlu0 %887
      %v894 = vsel %vm757, %v818, 0
      %v897 = vsel %vm757, %v833, 0
      %v900 = vsel %vm757, %v848, 0
      %v903 = vsel %vm757, %v863, 0
      %v906 = vsel %vm757, %v878, 0
      %vm908 = vcmask 1041408
      %v909 = vsel %vm908, %v888, 0
      %911 = vmatpush.msra.mxu0 0.0
      %912 = vmatpush.msra.mxu0 0.0
      %913 = vmatpush.msra.mxu0 0.0
      %914 = vmatpush.msra.mxu0 0.0
      %915 = vmatpush.msra.mxu0 0.0
      %916 = vmatpush.msra.mxu0 0.0
      %917 = vmatpush.msra.mxu0 0.0
      %918 = vmatpush.msra.mxu0 0.0
      %919 = vmatpush.msra.mxu0 0.0
      %920 = vmatpush.msra.mxu0 0.0
      %921 = vmatpush.msra.mxu0 0.0
      %922 = vmatpush.msra.mxu0 %v909
      %923 = vmatpush.msra.mxu0 %v886
      %924 = vmatpush.msra.mxu0 %v884
      %925 = vmatpush.msra.mxu0 %v882
      %926 = vmatpush.msra.mxu0 %v880
      %927 = vmatmul.f32.gmra.mxu0 %v894
      %v928 = vpop.f32.mrf.mxu0
      %v929 = vadd.f32 0.0, %v928
      %930 = vmatmul.f32.gmra.mxu0 %v897
      %v931 = vpop.f32.mrf.mxu0
      %v932 = vadd.f32 0.0, %v931
      %933 = vmatmul.f32.gmra.mxu0 %v900
      %v934 = vpop.f32.mrf.mxu0
      %v935 = vadd.f32 0.0, %v934
      %936 = vmatmul.f32.gmra.mxu0 %v903
      %v937 = vpop.f32.mrf.mxu0
      %v938 = vadd.f32 0.0, %v937
      %939 = vmatmul.f32.gmra.mxu0 %v906
      %v940 = vpop.f32.mrf.mxu0
      %v941 = vadd.f32 0.0, %v940
      %942 = vdwg.mxu0
      %v943 = vld [vmem:[%s404] sm:$0xff]
      %v944 = vld [vmem:[%s404 + $0x8] sm:$0xff]
      %945 = vrot.lane.b32.xlu0 %v665, 112
      %v946 = vpop.permute.xlu0 %945
      %947 = vrot.lane.b32.xlu0 %v668, 112
      %v948 = vpop.permute.xlu0 %947
      %949 = vrot.lane.b32.xlu0 %v671, 112
      %v950 = vpop.permute.xlu0 %949
      %951 = vrot.lane.b32.xlu0 %v674, 112
      %v952 = vpop.permute.xlu0 %951
      %953 = vrot.lane.b32.xlu0 %v677, 112
      %v954 = vpop.permute.xlu0 %953
      %955 = vrot.lane.b32.xlu0 %v665, 80
      %v956 = vpop.permute.xlu0 %955
      %957 = vrot.lane.b32.xlu0 %v668, 80
      %v958 = vpop.permute.xlu0 %957
      %959 = vrot.lane.b32.xlu0 %v671, 80
      %v960 = vpop.permute.xlu0 %959
      %961 = vrot.lane.b32.xlu0 %v674, 80
      %v962 = vpop.permute.xlu0 %961
      %963 = vrot.lane.b32.xlu0 %v677, 80
      %v964 = vpop.permute.xlu0 %963
      %v965 = vsel %vm694, %v946, 0
      %v967 = vsel %vm694, %v948, 0
      %v969 = vsel %vm694, %v950, 0
      %v971 = vsel %vm694, %v952, 0
      %v973 = vsel %vm694, %v954, 0
      %v975 = vsel %vm694, %v956, 0
      %v977 = vsel %vm694, %v958, 0
      %v979 = vsel %vm694, %v960, 0
      %v981 = vsel %vm694, %v962, 0
      %v983 = vsel %vm694, %v964, 0
      %985 = vmatpush.xpose.msra.mxu0 0.0
      %986 = vmatpush.xpose.msra.mxu0 0.0
      %987 = vmatpush.xpose.msra.mxu0 0.0
      %988 = vmatpush.xpose.msra.mxu0 0.0
      %989 = vmatpush.xpose.msra.mxu0 0.0
      %990 = vmatpush.xpose.msra.mxu0 0.0
      %991 = vmatpush.xpose.msra.mxu0 0.0
      %992 = vmatpush.xpose.msra.mxu0 0.0
      %993 = vmatpush.xpose.msra.mxu0 0.0
      %994 = vmatpush.xpose.msra.mxu0 0.0
      %995 = vmatpush.xpose.msra.mxu0 0.0
      %996 = vmatpush.xpose.msra.mxu0 %v983
      %997 = vmatpush.xpose.msra.mxu0 %v981
      %998 = vmatpush.xpose.msra.mxu0 %v979
      %999 = vmatpush.xpose.msra.mxu0 %v977
      %1000 = vmatpush.xpose.msra.mxu0 %v975
      %1001 = vmatmul.f32.gmra.mxu0 %v965
      %v1002 = vpop.f32.mrf.mxu0
      %v1003 = vadd.f32 0.0, %v1002
      %1004 = vmatmul.f32.gmra.mxu0 %v967
      %v1005 = vpop.f32.mrf.mxu0
      %v1006 = vadd.f32 0.0, %v1005
      %1007 = vmatmul.f32.gmra.mxu0 %v969
      %v1008 = vpop.f32.mrf.mxu0
      %v1009 = vadd.f32 0.0, %v1008
      %1010 = vmatmul.f32.gmra.mxu0 %v971
      %v1011 = vpop.f32.mrf.mxu0
      %v1012 = vadd.f32 0.0, %v1011
      %1013 = vmatmul.f32.gmra.mxu0 %v973
      %v1014 = vpop.f32.mrf.mxu0
      %v1015 = vadd.f32 0.0, %v1014
      %1016 = vdwg.mxu0
      %v1017 = vmul.f32 %v1003, 0.25
      %v1018 = vmul.f32 %v1006, 0.25
      %v1019 = vmul.f32 %v1009, 0.25
      %v1020 = vmul.f32 %v1012, 0.25
      %v1021 = vmul.f32 %v1015, 0.25
      %v1022 = vadd.f32 %v1017, %v424
      %v1023 = vadd.f32 %v1018, %v425
      %v1024 = vadd.f32 %v1019, %v426
      %v1025 = vadd.f32 %v1020, %v427
      %v1026 = vadd.f32 %v1021, %v428
      %v1027 = vsel %vm757, %v1022, -inf
      %1028 = vmax.xlane.f32.xlu0 %v1027
      %v1029 = vpop.xlane.xlu0 %1028
      %v1030 = vsel %vm757, %v1023, -inf
      %1031 = vmax.xlane.f32.xlu0 %v1030
      %v1032 = vpop.xlane.xlu0 %1031
      %v1033 = vsel %vm757, %v1024, -inf
      %1034 = vmax.xlane.f32.xlu0 %v1033
      %v1035 = vpop.xlane.xlu0 %1034
      %v1036 = vsel %vm757, %v1025, -inf
      %1037 = vmax.xlane.f32.xlu0 %v1036
      %v1038 = vpop.xlane.xlu0 %1037
      %v1039 = vsel %vm770, %v1026, -inf
      %1040 = vmax.xlane.f32.xlu0 %v1039
      %v1041 = vpop.xlane.xlu0 %1040
      %v1042 = vsub.f32 %v1022, %v1029
      %v1043 = vsub.f32 %v1023, %v1032
      %v1044 = vsub.f32 %v1024, %v1035
      %v1045 = vsub.f32 %v1025, %v1038
      %v1046 = vsub.f32 %v1026, %v1041
      %v1047 = vmul.f32 %v1042, 1.442695
      %v1048 = vpow.pop %v1047
      %v1049 = vmul.f32 %v1043, 1.442695
      %v1050 = vpow.pop %v1049
      %v1051 = vmul.f32 %v1044, 1.442695
      %v1052 = vpow.pop %v1051
      %v1053 = vmul.f32 %v1045, 1.442695
      %v1054 = vpow.pop %v1053
      %v1055 = vmul.f32 %v1046, 1.442695
      %v1056 = vpow.pop %v1055
      %v1057 = vsel %vm757, %v1048, 0.0
      %1058 = vadd.xlane.f32.xlu0 %v1057
      %v1059 = vpop.xlane.xlu0 %1058
      %v1060 = vsel %vm757, %v1050, 0.0
      %1061 = vadd.xlane.f32.xlu0 %v1060
      %v1062 = vpop.xlane.xlu0 %1061
      %v1063 = vsel %vm757, %v1052, 0.0
      %1064 = vadd.xlane.f32.xlu0 %v1063
      %v1065 = vpop.xlane.xlu0 %1064
      %v1066 = vsel %vm757, %v1054, 0.0
      %1067 = vadd.xlane.f32.xlu0 %v1066
      %v1068 = vpop.xlane.xlu0 %1067
      %v1069 = vsel %vm770, %v1056, 0.0
      %1070 = vadd.xlane.f32.xlu0 %v1069
      %v1071 = vpop.xlane.xlu0 %1070
      %v1072 = vrcp.pop %v1059
      %v1073 = vmul.f32 %v1059, %v1072
      %v1074 = vsub.f32 1.0, %v1073
      %v1075 = vmul.f32 %v1072, %v1074
      %v1076 = vadd.f32 %v1072, %v1075
      %vm1077 = vweird.f32 %v1059
      %vm1078 = vweird.f32 %v1072
      %vm1079 = vmor %vm1077, %vm1078
      %v1080 = vsel %vm1079, %v1072, %v1076
      %v1081 = vand.u32 2147483647, %v1059
      %vm1082 = vcmp.eq.f32.partialorder %v1081, 8.507059e+37
      %v1083 = vand.u32 %v1059, 2147483648
      %v1084 = vor.u32 1.1754944e-38, %v1083
      %v1085 = vsel %vm1082, %v1084, %v1080
      %v1086 = vmul.f32 %v1048, %v1085
      %v1087 = vrcp.pop %v1062
      %v1088 = vmul.f32 %v1062, %v1087
      %v1089 = vsub.f32 1.0, %v1088
      %v1090 = vmul.f32 %v1087, %v1089
      %v1091 = vadd.f32 %v1087, %v1090
      %vm1092 = vweird.f32 %v1062
      %vm1093 = vweird.f32 %v1087
      %vm1094 = vmor %vm1092, %vm1093
      %v1095 = vsel %vm1094, %v1087, %v1091
      %v1096 = vand.u32 2147483647, %v1062
      %vm1097 = vcmp.eq.f32.partialorder %v1096, 8.507059e+37
      %v1098 = vand.u32 %v1062, 2147483648
      %v1099 = vor.u32 1.1754944e-38, %v1098
      %v1100 = vsel %vm1097, %v1099, %v1095
      %v1101 = vmul.f32 %v1050, %v1100
      %v1102 = vrcp.pop %v1065
      %v1103 = vmul.f32 %v1065, %v1102
      %v1104 = vsub.f32 1.0, %v1103
      %v1105 = vmul.f32 %v1102, %v1104
      %v1106 = vadd.f32 %v1102, %v1105
      %vm1107 = vweird.f32 %v1065
      %vm1108 = vweird.f32 %v1102
      %vm1109 = vmor %vm1107, %vm1108
      %v1110 = vsel %vm1109, %v1102, %v1106
      %v1111 = vand.u32 2147483647, %v1065
      %vm1112 = vcmp.eq.f32.partialorder %v1111, 8.507059e+37
      %v1113 = vand.u32 %v1065, 2147483648
      %v1114 = vor.u32 1.1754944e-38, %v1113
      %v1115 = vsel %vm1112, %v1114, %v1110
      %v1116 = vmul.f32 %v1052, %v1115
      %v1117 = vrcp.pop %v1068
      %v1118 = vmul.f32 %v1068, %v1117
      %v1119 = vsub.f32 1.0, %v1118
      %v1120 = vmul.f32 %v1117, %v1119
      %v1121 = vadd.f32 %v1117, %v1120
      %vm1122 = vweird.f32 %v1068
      %vm1123 = vweird.f32 %v1117
      %vm1124 = vmor %vm1122, %vm1123
      %v1125 = vsel %vm1124, %v1117, %v1121
      %v1126 = vand.u32 2147483647, %v1068
      %vm1127 = vcmp.eq.f32.partialorder %v1126, 8.507059e+37
      %v1128 = vand.u32 %v1068, 2147483648
      %v1129 = vor.u32 1.1754944e-38, %v1128
      %v1130 = vsel %vm1127, %v1129, %v1125
      %v1131 = vmul.f32 %v1054, %v1130
      %v1132 = vrcp.pop %v1071
      %v1133 = vmul.f32 %v1071, %v1132
      %v1134 = vsub.f32 1.0, %v1133
      %v1135 = vmul.f32 %v1132, %v1134
      %v1136 = vadd.f32 %v1132, %v1135
      %vm1137 = vweird.f32 %v1071
      %vm1138 = vweird.f32 %v1132
      %vm1139 = vmor %vm1137, %vm1138
      %v1140 = vsel %vm1139, %v1132, %v1136
      %v1141 = vand.u32 2147483647, %v1071
      %vm1142 = vcmp.eq.f32.partialorder %v1141, 8.507059e+37
      %v1143 = vand.u32 %v1071, 2147483648
      %v1144 = vor.u32 1.1754944e-38, %v1143
      %v1145 = vsel %vm1142, %v1144, %v1140
      %v1146 = vmul.f32 %v1056, %v1145
      %1147 = vrot.lane.b32.xlu0 %v665, 48
      %v1148 = vpop.permute.xlu0 %1147
      %1149 = vrot.lane.b32.xlu0 %v668, 48
      %v1150 = vpop.permute.xlu0 %1149
      %1151 = vrot.lane.b32.xlu0 %v671, 48
      %v1152 = vpop.permute.xlu0 %1151
      %1153 = vrot.lane.b32.xlu0 %v674, 48
      %v1154 = vpop.permute.xlu0 %1153
      %1155 = vrot.lane.b32.xlu0 %v677, 48
      %v1156 = vpop.permute.xlu0 %1155
      %v1162 = vsel %vm757, %v1086, 0
      %v1165 = vsel %vm757, %v1101, 0
      %v1168 = vsel %vm757, %v1116, 0
      %v1171 = vsel %vm757, %v1131, 0
      %v1174 = vsel %vm757, %v1146, 0
      %v1176 = vsel %vm908, %v1156, 0
      %1178 = vmatpush.msra.mxu0 0.0
      %1179 = vmatpush.msra.mxu0 0.0
      %1180 = vmatpush.msra.mxu0 0.0
      %1181 = vmatpush.msra.mxu0 0.0
      %1182 = vmatpush.msra.mxu0 0.0
      %1183 = vmatpush.msra.mxu0 0.0
      %1184 = vmatpush.msra.mxu0 0.0
      %1185 = vmatpush.msra.mxu0 0.0
      %1186 = vmatpush.msra.mxu0 0.0
      %1187 = vmatpush.msra.mxu0 0.0
      %1188 = vmatpush.msra.mxu0 0.0
      %1189 = vmatpush.msra.mxu0 %v1176
      %1190 = vmatpush.msra.mxu0 %v1154
      %1191 = vmatpush.msra.mxu0 %v1152
      %1192 = vmatpush.msra.mxu0 %v1150
      %1193 = vmatpush.msra.mxu0 %v1148
      %1194 = vmatmul.f32.gmra.mxu0 %v1162
      %v1195 = vpop.f32.mrf.mxu0
      %v1196 = vadd.f32 0.0, %v1195
      %1197 = vmatmul.f32.gmra.mxu0 %v1165
      %v1198 = vpop.f32.mrf.mxu0
      %v1199 = vadd.f32 0.0, %v1198
      %1200 = vmatmul.f32.gmra.mxu0 %v1168
      %v1201 = vpop.f32.mrf.mxu0
      %v1202 = vadd.f32 0.0, %v1201
      %1203 = vmatmul.f32.gmra.mxu0 %v1171
      %v1204 = vpop.f32.mrf.mxu0
      %v1205 = vadd.f32 0.0, %v1204
      %1206 = vmatmul.f32.gmra.mxu0 %v1174
      %v1207 = vpop.f32.mrf.mxu0
      %v1208 = vadd.f32 0.0, %v1207
      %1209 = vdwg.mxu0
      %s1210 = scalar_lea.vmem %s404, 16
      %v1211 = vld [vmem:[%s1210] sm:$0xff]
      %v1212 = vld [vmem:[%s1210 + $0x8] sm:$0xff]
      %v1214 = vsel %vm694, %v1196, 0
      %v1217 = vsel %vm694, %v1199, 0
      %v1220 = vsel %vm694, %v1202, 0
      %v1223 = vsel %vm694, %v1205, 0
      %v1226 = vsel %vm694, %v1208, 0
      %1228 = vmatpush.msra.mxu0 0.0
      %1229 = vmatpush.msra.mxu0 0.0
      %1230 = vmatpush.msra.mxu0 0.0
      %1231 = vmatpush.msra.mxu0 0.0
      %1232 = vmatpush.msra.mxu0 0.0
      %1233 = vmatpush.msra.mxu0 0.0
      %1234 = vmatpush.msra.mxu0 0.0
      %1235 = vmatpush.msra.mxu0 0.0
      %1236 = vmatpush.msra.mxu0 0.0
      %1237 = vmatpush.msra.mxu0 0.0
      %1238 = vmatpush.msra.mxu0 0.0
      %1239 = vmatpush.msra.mxu0 0.0
      %1240 = vmatpush.msra.mxu0 0.0
      %1241 = vmatpush.msra.mxu0 0.0
      %1242 = vmatpush.msra.mxu0 %v1212
      %1243 = vmatpush.msra.mxu0 %v1211
      %1244 = vmatmul.f32.gmra.mxu0 %v1214
      %v1245 = vpop.f32.mrf.mxu0
      %v1246 = vadd.f32 0.0, %v1245
      %1247 = vmatmul.f32.gmra.mxu0 %v1217
      %v1248 = vpop.f32.mrf.mxu0
      %v1249 = vadd.f32 0.0, %v1248
      %1250 = vmatmul.f32.gmra.mxu0 %v1220
      %v1251 = vpop.f32.mrf.mxu0
      %v1252 = vadd.f32 0.0, %v1251
      %1253 = vmatmul.f32.gmra.mxu0 %v1223
      %v1254 = vpop.f32.mrf.mxu0
      %v1255 = vadd.f32 0.0, %v1254
      %1256 = vmatmul.f32.gmra.mxu0 %v1226
      %v1257 = vpop.f32.mrf.mxu0
      %v1258 = vadd.f32 0.0, %v1257
      %1259 = vdwg.mxu0
      %v1261 = vsel %vm694, %v929, 0
      %v1264 = vsel %vm694, %v932, 0
      %v1267 = vsel %vm694, %v935, 0
      %v1270 = vsel %vm694, %v938, 0
      %v1273 = vsel %vm694, %v941, 0
      %1275 = vmatpush.msra.mxu0 0.0
      %1276 = vmatpush.msra.mxu0 0.0
      %1277 = vmatpush.msra.mxu0 0.0
      %1278 = vmatpush.msra.mxu0 0.0
      %1279 = vmatpush.msra.mxu0 0.0
      %1280 = vmatpush.msra.mxu0 0.0
      %1281 = vmatpush.msra.mxu0 0.0
      %1282 = vmatpush.msra.mxu0 0.0
      %1283 = vmatpush.msra.mxu0 0.0
      %1284 = vmatpush.msra.mxu0 0.0
      %1285 = vmatpush.msra.mxu0 0.0
      %1286 = vmatpush.msra.mxu0 0.0
      %1287 = vmatpush.msra.mxu0 0.0
      %1288 = vmatpush.msra.mxu0 0.0
      %1289 = vmatpush.msra.mxu0 %v944
      %1290 = vmatpush.msra.mxu0 %v943
      %1291 = vmatmul.f32.gmra.mxu0 %v1261
      %v1292 = vpop.f32.mrf.mxu0
      %v1293 = vadd.f32 %v1246, %v1292
      %1294 = vmatmul.f32.gmra.mxu0 %v1264
      %v1295 = vpop.f32.mrf.mxu0
      %v1296 = vadd.f32 %v1249, %v1295
      %1297 = vmatmul.f32.gmra.mxu0 %v1267
      %v1298 = vpop.f32.mrf.mxu0
      %v1299 = vadd.f32 %v1252, %v1298
      %1300 = vmatmul.f32.gmra.mxu0 %v1270
      %v1301 = vpop.f32.mrf.mxu0
      %v1302 = vadd.f32 %v1255, %v1301
      %1303 = vmatmul.f32.gmra.mxu0 %v1273
      %v1304 = vpop.f32.mrf.mxu0
      %v1305 = vadd.f32 %v1258, %v1304
      %1306 = vdwg.mxu0
      %v1307 = vperm.slane %v495, 3
      %v1308 = vadd.f32 %v1293, %v1307
      %v1309 = vadd.f32 %v1296, %v1307
      %v1310 = vadd.f32 %v1299, %v1307
      %v1311 = vadd.f32 %v1302, %v1307
      %v1312 = vadd.f32 %v1305, %v1307
      %v1313 = vadd.f32 %v481, %v1308
      %v1314 = vadd.f32 %v484, %v1309
      %v1315 = vadd.f32 %v487, %v1310
      %v1316 = vadd.f32 %v490, %v1311
      %v1317 = vadd.f32 %v493, %v1312
      %v1318 = vsel %vm496, %v1313, 0.0
      %1319 = vadd.xlane.f32.xlu0 %v1318
      %v1320 = vpop.xlane.xlu0 %1319
      %v1321 = vsel %vm496, %v1314, 0.0
      %1322 = vadd.xlane.f32.xlu0 %v1321
      %v1323 = vpop.xlane.xlu0 %1322
      %v1324 = vsel %vm496, %v1315, 0.0
      %1325 = vadd.xlane.f32.xlu0 %v1324
      %v1326 = vpop.xlane.xlu0 %1325
      %v1327 = vsel %vm496, %v1316, 0.0
      %1328 = vadd.xlane.f32.xlu0 %v1327
      %v1329 = vpop.xlane.xlu0 %1328
      %v1330 = vsel %vm509, %v1317, 0.0
      %1331 = vadd.xlane.f32.xlu0 %v1330
      %v1332 = vpop.xlane.xlu0 %1331
      %v1333 = vmul.f32 %v1320, %v519
      %v1334 = vmul.f32 %v1323, %v519
      %v1335 = vmul.f32 %v1326, %v519
      %v1336 = vmul.f32 %v1329, %v519
      %v1337 = vmul.f32 %v1332, %v519
      %v1338 = vsub.f32 %v1313, %v1333
      %v1339 = vsub.f32 %v1314, %v1334
      %v1340 = vsub.f32 %v1315, %v1335
      %v1341 = vsub.f32 %v1316, %v1336
      %v1342 = vsub.f32 %v1317, %v1337
      %v1343 = vmul.f32 %v1338, %v1338
      %v1344 = vmul.f32 %v1339, %v1339
      %v1345 = vmul.f32 %v1340, %v1340
      %v1346 = vmul.f32 %v1341, %v1341
      %v1347 = vmul.f32 %v1342, %v1342
      %v1348 = vsel %vm496, %v1343, 0.0
      %1349 = vadd.xlane.f32.xlu0 %v1348
      %v1350 = vpop.xlane.xlu0 %1349
      %v1351 = vsel %vm496, %v1344, 0.0
      %1352 = vadd.xlane.f32.xlu0 %v1351
      %v1353 = vpop.xlane.xlu0 %1352
      %v1354 = vsel %vm496, %v1345, 0.0
      %1355 = vadd.xlane.f32.xlu0 %v1354
      %v1356 = vpop.xlane.xlu0 %1355
      %v1357 = vsel %vm496, %v1346, 0.0
      %1358 = vadd.xlane.f32.xlu0 %v1357
      %v1359 = vpop.xlane.xlu0 %1358
      %v1360 = vsel %vm509, %v1347, 0.0
      %1361 = vadd.xlane.f32.xlu0 %v1360
      %v1362 = vpop.xlane.xlu0 %1361
      %v1363 = vmul.f32 %v1350, %v519
      %v1364 = vmul.f32 %v1353, %v519
      %v1365 = vmul.f32 %v1356, %v519
      %v1366 = vmul.f32 %v1359, %v519
      %v1367 = vmul.f32 %v1362, %v519
      %v1368 = vadd.f32 %v1363, 1e-06
      %v1369 = vadd.f32 %v1364, 1e-06
      %v1370 = vadd.f32 %v1365, 1e-06
      %v1371 = vadd.f32 %v1366, 1e-06
      %v1372 = vadd.f32 %v1367, 1e-06
      %v1373 = vrsqrt.pop %v1368
      %v1374 = vmul.f32 %v1373, %v1368
      %v1375 = vmul.f32 %v1374, %v1373
      %v1376 = vmul.f32 0.5, %v1375
      %v1377 = vsub.f32 1.5, %v1376
      %v1378 = vmul.f32 %v1373, %v1377
      %vm1379 = vweird.f32 %v1368
      %vm1380 = vweird.f32 %v1373
      %vm1381 = vmor %vm1379, %vm1380
      %v1382 = vsel %vm1381, %v1373, %v1378
      %v1383 = vrsqrt.pop %v1369
      %v1384 = vmul.f32 %v1383, %v1369
      %v1385 = vmul.f32 %v1384, %v1383
      %v1386 = vmul.f32 0.5, %v1385
      %v1387 = vsub.f32 1.5, %v1386
      %v1388 = vmul.f32 %v1383, %v1387
      %vm1389 = vweird.f32 %v1369
      %vm1390 = vweird.f32 %v1383
      %vm1391 = vmor %vm1389, %vm1390
      %v1392 = vsel %vm1391, %v1383, %v1388
      %v1393 = vrsqrt.pop %v1370
      %v1394 = vmul.f32 %v1393, %v1370
      %v1395 = vmul.f32 %v1394, %v1393
      %v1396 = vmul.f32 0.5, %v1395
      %v1397 = vsub.f32 1.5, %v1396
      %v1398 = vmul.f32 %v1393, %v1397
      %vm1399 = vweird.f32 %v1370
      %vm1400 = vweird.f32 %v1393
      %vm1401 = vmor %vm1399, %vm1400
      %v1402 = vsel %vm1401, %v1393, %v1398
      %v1403 = vrsqrt.pop %v1371
      %v1404 = vmul.f32 %v1403, %v1371
      %v1405 = vmul.f32 %v1404, %v1403
      %v1406 = vmul.f32 0.5, %v1405
      %v1407 = vsub.f32 1.5, %v1406
      %v1408 = vmul.f32 %v1403, %v1407
      %vm1409 = vweird.f32 %v1371
      %vm1410 = vweird.f32 %v1403
      %vm1411 = vmor %vm1409, %vm1410
      %v1412 = vsel %vm1411, %v1403, %v1408
      %v1413 = vrsqrt.pop %v1372
      %v1414 = vmul.f32 %v1413, %v1372
      %v1415 = vmul.f32 %v1414, %v1413
      %v1416 = vmul.f32 0.5, %v1415
      %v1417 = vsub.f32 1.5, %v1416
      %v1418 = vmul.f32 %v1413, %v1417
      %vm1419 = vweird.f32 %v1372
      %vm1420 = vweird.f32 %v1413
      %vm1421 = vmor %vm1419, %vm1420
      %v1422 = vsel %vm1421, %v1413, %v1418
      %v1423 = vmul.f32 %v1338, %v1382
      %v1424 = vmul.f32 %v1339, %v1392
      %v1425 = vmul.f32 %v1340, %v1402
      %v1426 = vmul.f32 %v1341, %v1412
      %v1427 = vmul.f32 %v1342, %v1422
      %v1428 = vperm.slane %v495, 4
      %v1429 = vmul.f32 %v1423, %v1428
      %v1430 = vmul.f32 %v1424, %v1428
      %v1431 = vmul.f32 %v1425, %v1428
      %v1432 = vmul.f32 %v1426, %v1428
      %v1433 = vmul.f32 %v1427, %v1428
      %v1434 = vperm.slane %v495, 5
      %v1435 = vadd.f32 %v1429, %v1434
      %v1436 = vadd.f32 %v1430, %v1434
      %v1437 = vadd.f32 %v1431, %v1434
      %v1438 = vadd.f32 %v1432, %v1434
      %v1439 = vadd.f32 %v1433, %v1434
      %v1440 = vld [vmem:[%s409] sm:$0xff]
      %v1441 = vld [vmem:[%s409 + $0x8] sm:$0xff]
      %v1442 = vld [vmem:[%s409 + $0x10] sm:$0xff]
      %v1443 = vld [vmem:[%s409 + $0x18] sm:$0xff]
      %v1444 = vld [vmem:[%s414] sm:$0xff]
      %v1445 = vld [vmem:[%s414 + $0x8] sm:$0xff]
      %v1446 = vld [vmem:[%s414 + $0x10] sm:$0xff]
      %v1447 = vld [vmem:[%s414 + $0x18] sm:$0xff]
      %v1448 = vld [vmem:[%s414 + $0x20] sm:$0xff]
      %v1449 = vld [vmem:[%s414 + $0x28] sm:$0xff]
      %v1450 = vld [vmem:[%s414 + $0x30] sm:$0xff]
      %v1451 = vld [vmem:[%s414 + $0x38] sm:$0xff]
      %v1452 = vld [vmem:[%s414 + $0x40] sm:$0xff]
      %v1453 = vld [vmem:[%s414 + $0x48] sm:$0xff]
      %v1454 = vld [vmem:[%s414 + $0x50] sm:$0xff]
      %v1455 = vld [vmem:[%s414 + $0x58] sm:$0xff]
      %v1456 = vld [vmem:[%s414 + $0x60] sm:$0xff]
      %v1457 = vld [vmem:[%s414 + $0x68] sm:$0xff]
      %v1458 = vld [vmem:[%s414 + $0x70] sm:$0xff]
      %v1459 = vld [vmem:[%s414 + $0x78] sm:$0xff]
      %v1460 = vperm.slane %v495, 6
      %v1462 = vsel %vm496, %v1435, 0
      %v1465 = vsel %vm496, %v1436, 0
      %v1468 = vsel %vm496, %v1437, 0
      %v1471 = vsel %vm496, %v1438, 0
      %v1474 = vsel %vm496, %v1439, 0
      %1476 = vmatpush.msra.mxu0 0.0
      %1477 = vmatpush.msra.mxu0 0.0
      %1478 = vmatpush.msra.mxu0 0.0
      %1479 = vmatpush.msra.mxu0 0.0
      %1480 = vmatpush.msra.mxu0 0.0
      %1481 = vmatpush.msra.mxu0 0.0
      %1482 = vmatpush.msra.mxu0 0.0
      %1483 = vmatpush.msra.mxu0 0.0
      %1484 = vmatpush.msra.mxu0 0.0
      %1485 = vmatpush.msra.mxu0 0.0
      %1486 = vmatpush.msra.mxu0 0.0
      %1487 = vmatpush.msra.mxu0 0.0
      %1488 = vmatpush.msra.mxu0 %v1443
      %1489 = vmatpush.msra.mxu0 %v1442
      %1490 = vmatpush.msra.mxu0 %v1441
      %1491 = vmatpush.msra.mxu0 %v1440
      %1492 = vmatmul.f32.gmra.mxu0 %v1462
      %v1493 = vpop.f32.mrf.mxu0
      %v1494 = vadd.f32 %v1460, %v1493
      %1495 = vmatmul.f32.gmra.mxu0 %v1465
      %v1496 = vpop.f32.mrf.mxu0
      %v1497 = vadd.f32 %v1460, %v1496
      %1498 = vmatmul.f32.gmra.mxu0 %v1468
      %v1499 = vpop.f32.mrf.mxu0
      %v1500 = vadd.f32 %v1460, %v1499
      %1501 = vmatmul.f32.gmra.mxu0 %v1471
      %v1502 = vpop.f32.mrf.mxu0
      %v1503 = vadd.f32 %v1460, %v1502
      %1504 = vmatmul.f32.gmra.mxu0 %v1474
      %v1505 = vpop.f32.mrf.mxu0
      %v1506 = vadd.f32 %v1460, %v1505
      %1507 = vdwg.mxu0
      %v1508 = vmul.f32 %v1494, 0.5
      %v1509 = vmul.f32 %v1497, 0.5
      %v1510 = vmul.f32 %v1500, 0.5
      %v1511 = vmul.f32 %v1503, 0.5
      %v1512 = vmul.f32 %v1506, 0.5
      %v1513 = vmul.f32 %v1494, 0.044715
      %v1514 = vmul.f32 %v1497, 0.044715
      %v1515 = vmul.f32 %v1500, 0.044715
      %v1516 = vmul.f32 %v1503, 0.044715
      %v1517 = vmul.f32 %v1506, 0.044715
      %v1518 = vmul.f32 %v1513, %v1494
      %v1519 = vmul.f32 %v1514, %v1497
      %v1520 = vmul.f32 %v1515, %v1500
      %v1521 = vmul.f32 %v1516, %v1503
      %v1522 = vmul.f32 %v1517, %v1506
      %v1523 = vmul.f32 %v1518, %v1494
      %v1524 = vmul.f32 %v1519, %v1497
      %v1525 = vmul.f32 %v1520, %v1500
      %v1526 = vmul.f32 %v1521, %v1503
      %v1527 = vmul.f32 %v1522, %v1506
      %v1528 = vadd.f32 %v1494, %v1523
      %v1529 = vadd.f32 %v1497, %v1524
      %v1530 = vadd.f32 %v1500, %v1525
      %v1531 = vadd.f32 %v1503, %v1526
      %v1532 = vadd.f32 %v1506, %v1527
      %v1533 = vmul.f32 %v1528, 0.7978846
      %v1534 = vmul.f32 %v1529, 0.7978846
      %v1535 = vmul.f32 %v1530, 0.7978846
      %v1536 = vmul.f32 %v1531, 0.7978846
      %v1537 = vmul.f32 %v1532, 0.7978846
      %v1538 = vtanh.pop %v1533
      %v1539 = vtanh.pop %v1534
      %v1540 = vtanh.pop %v1535
      %v1541 = vtanh.pop %v1536
      %v1542 = vtanh.pop %v1537
      %v1543 = vadd.f32 %v1538, 1.0
      %v1544 = vadd.f32 %v1539, 1.0
      %v1545 = vadd.f32 %v1540, 1.0
      %v1546 = vadd.f32 %v1541, 1.0
      %v1547 = vadd.f32 %v1542, 1.0
      %v1548 = vmul.f32 %v1508, %v1543
      %v1549 = vmul.f32 %v1509, %v1544
      %v1550 = vmul.f32 %v1510, %v1545
      %v1551 = vmul.f32 %v1511, %v1546
      %v1552 = vmul.f32 %v1512, %v1547
      %v1553 = vperm.slane %v495, 7
      %1554 = vmatpush.msra.mxu0 %v1459
      %1555 = vmatpush.msra.mxu0 %v1458
      %1556 = vmatpush.msra.mxu0 %v1457
      %1557 = vmatpush.msra.mxu0 %v1456
      %1558 = vmatpush.msra.mxu0 %v1455
      %1559 = vmatpush.msra.mxu0 %v1454
      %1560 = vmatpush.msra.mxu0 %v1453
      %1561 = vmatpush.msra.mxu0 %v1452
      %1562 = vmatpush.msra.mxu0 %v1451
      %1563 = vmatpush.msra.mxu0 %v1450
      %1564 = vmatpush.msra.mxu0 %v1449
      %1565 = vmatpush.msra.mxu0 %v1448
      %1566 = vmatpush.msra.mxu0 %v1447
      %1567 = vmatpush.msra.mxu0 %v1446
      %1568 = vmatpush.msra.mxu0 %v1445
      %1569 = vmatpush.msra.mxu0 %v1444
      %1570 = vmatmul.f32.gmra.mxu0 %v1548
      %v1571 = vpop.f32.mrf.mxu0
      %v1572 = vadd.f32 %v1553, %v1571
      %1573 = vmatmul.f32.gmra.mxu0 %v1549
      %v1574 = vpop.f32.mrf.mxu0
      %v1575 = vadd.f32 %v1553, %v1574
      %1576 = vmatmul.f32.gmra.mxu0 %v1550
      %v1577 = vpop.f32.mrf.mxu0
      %v1578 = vadd.f32 %v1553, %v1577
      %1579 = vmatmul.f32.gmra.mxu0 %v1551
      %v1580 = vpop.f32.mrf.mxu0
      %v1581 = vadd.f32 %v1553, %v1580
      %1582 = vmatmul.f32.gmra.mxu0 %v1552
      %v1583 = vpop.f32.mrf.mxu0
      %v1584 = vadd.f32 %v1553, %v1583
      %1585 = vdwg.mxu0
      %v1586 = vadd.f32 %v1313, %v1572
      %v1587 = vadd.f32 %v1314, %v1575
      %v1588 = vadd.f32 %v1315, %v1578
      %v1589 = vadd.f32 %v1316, %v1581
      %v1590 = vadd.f32 %v1317, %v1584
      %s1591 = scalar_lea.vmem %s419, 8
      %v1592 = vld [vmem:[%s1591] sm:$0xff]
      %v1593 = vsel %vm496, %v1586, 0.0
      %1594 = vadd.xlane.f32.xlu0 %v1593
      %v1595 = vpop.xlane.xlu0 %1594
      %v1596 = vsel %vm496, %v1587, 0.0
      %1597 = vadd.xlane.f32.xlu0 %v1596
      %v1598 = vpop.xlane.xlu0 %1597
      %v1599 = vsel %vm496, %v1588, 0.0
      %1600 = vadd.xlane.f32.xlu0 %v1599
      %v1601 = vpop.xlane.xlu0 %1600
      %v1602 = vsel %vm496, %v1589, 0.0
      %1603 = vadd.xlane.f32.xlu0 %v1602
      %v1604 = vpop.xlane.xlu0 %1603
      %v1605 = vsel %vm509, %v1590, 0.0
      %1606 = vadd.xlane.f32.xlu0 %v1605
      %v1607 = vpop.xlane.xlu0 %1606
      %v1608 = vmul.f32 %v1595, %v519
      %v1609 = vmul.f32 %v1598, %v519
      %v1610 = vmul.f32 %v1601, %v519
      %v1611 = vmul.f32 %v1604, %v519
      %v1612 = vmul.f32 %v1607, %v519
      %v1613 = vsub.f32 %v1586, %v1608
      %v1614 = vsub.f32 %v1587, %v1609
      %v1615 = vsub.f32 %v1588, %v1610
      %v1616 = vsub.f32 %v1589, %v1611
      %v1617 = vsub.f32 %v1590, %v1612
      %v1618 = vmul.f32 %v1613, %v1613
      %v1619 = vmul.f32 %v1614, %v1614
      %v1620 = vmul.f32 %v1615, %v1615
      %v1621 = vmul.f32 %v1616, %v1616
      %v1622 = vmul.f32 %v1617, %v1617
      %v1623 = vsel %vm496, %v1618, 0.0
      %1624 = vadd.xlane.f32.xlu0 %v1623
      %v1625 = vpop.xlane.xlu0 %1624
      %v1626 = vsel %vm496, %v1619, 0.0
      %1627 = vadd.xlane.f32.xlu0 %v1626
      %v1628 = vpop.xlane.xlu0 %1627
      %v1629 = vsel %vm496, %v1620, 0.0
      %1630 = vadd.xlane.f32.xlu0 %v1629
      %v1631 = vpop.xlane.xlu0 %1630
      %v1632 = vsel %vm496, %v1621, 0.0
      %1633 = vadd.xlane.f32.xlu0 %v1632
      %v1634 = vpop.xlane.xlu0 %1633
      %v1635 = vsel %vm509, %v1622, 0.0
      %1636 = vadd.xlane.f32.xlu0 %v1635
      %v1637 = vpop.xlane.xlu0 %1636
      %v1638 = vmul.f32 %v1625, %v519
      %v1639 = vmul.f32 %v1628, %v519
      %v1640 = vmul.f32 %v1631, %v519
      %v1641 = vmul.f32 %v1634, %v519
      %v1642 = vmul.f32 %v1637, %v519
      %v1643 = vadd.f32 %v1638, 1e-06
      %v1644 = vadd.f32 %v1639, 1e-06
      %v1645 = vadd.f32 %v1640, 1e-06
      %v1646 = vadd.f32 %v1641, 1e-06
      %v1647 = vadd.f32 %v1642, 1e-06
      %v1648 = vrsqrt.pop %v1643
      %v1649 = vmul.f32 %v1648, %v1643
      %v1650 = vmul.f32 %v1649, %v1648
      %v1651 = vmul.f32 0.5, %v1650
      %v1652 = vsub.f32 1.5, %v1651
      %v1653 = vmul.f32 %v1648, %v1652
      %vm1654 = vweird.f32 %v1643
      %vm1655 = vweird.f32 %v1648
      %vm1656 = vmor %vm1654, %vm1655
      %v1657 = vsel %vm1656, %v1648, %v1653
      %v1658 = vrsqrt.pop %v1644
      %v1659 = vmul.f32 %v1658, %v1644
      %v1660 = vmul.f32 %v1659, %v1658
      %v1661 = vmul.f32 0.5, %v1660
      %v1662 = vsub.f32 1.5, %v1661
      %v1663 = vmul.f32 %v1658, %v1662
      %vm1664 = vweird.f32 %v1644
      %vm1665 = vweird.f32 %v1658
      %vm1666 = vmor %vm1664, %vm1665
      %v1667 = vsel %vm1666, %v1658, %v1663
      %v1668 = vrsqrt.pop %v1645
      %v1669 = vmul.f32 %v1668, %v1645
      %v1670 = vmul.f32 %v1669, %v1668
      %v1671 = vmul.f32 0.5, %v1670
      %v1672 = vsub.f32 1.5, %v1671
      %v1673 = vmul.f32 %v1668, %v1672
      %vm1674 = vweird.f32 %v1645
      %vm1675 = vweird.f32 %v1668
      %vm1676 = vmor %vm1674, %vm1675
      %v1677 = vsel %vm1676, %v1668, %v1673
      %v1678 = vrsqrt.pop %v1646
      %v1679 = vmul.f32 %v1678, %v1646
      %v1680 = vmul.f32 %v1679, %v1678
      %v1681 = vmul.f32 0.5, %v1680
      %v1682 = vsub.f32 1.5, %v1681
      %v1683 = vmul.f32 %v1678, %v1682
      %vm1684 = vweird.f32 %v1646
      %vm1685 = vweird.f32 %v1678
      %vm1686 = vmor %vm1684, %vm1685
      %v1687 = vsel %vm1686, %v1678, %v1683
      %v1688 = vrsqrt.pop %v1647
      %v1689 = vmul.f32 %v1688, %v1647
      %v1690 = vmul.f32 %v1689, %v1688
      %v1691 = vmul.f32 0.5, %v1690
      %v1692 = vsub.f32 1.5, %v1691
      %v1693 = vmul.f32 %v1688, %v1692
      %vm1694 = vweird.f32 %v1647
      %vm1695 = vweird.f32 %v1688
      %vm1696 = vmor %vm1694, %vm1695
      %v1697 = vsel %vm1696, %v1688, %v1693
      %v1698 = vmul.f32 %v1613, %v1657
      %v1699 = vmul.f32 %v1614, %v1667
      %v1700 = vmul.f32 %v1615, %v1677
      %v1701 = vmul.f32 %v1616, %v1687
      %v1702 = vmul.f32 %v1617, %v1697
      %v1703 = vperm.slane %v1592, 0
      %v1704 = vmul.f32 %v1698, %v1703
      %v1705 = vmul.f32 %v1699, %v1703
      %v1706 = vmul.f32 %v1700, %v1703
      %v1707 = vmul.f32 %v1701, %v1703
      %v1708 = vmul.f32 %v1702, %v1703
      %v1709 = vperm.slane %v1592, 1
      %v1710 = vadd.f32 %v1704, %v1709
      %v1711 = vadd.f32 %v1705, %v1709
      %v1712 = vadd.f32 %v1706, %v1709
      %v1713 = vadd.f32 %v1707, %v1709
      %v1714 = vadd.f32 %v1708, %v1709
      %s1715 = scalar_lea.vmem %s399, 32
      %v1716 = vld [vmem:[%s1715] sm:$0xff]
      %v1717 = vld [vmem:[%s1715 + $0x8] sm:$0xff]
      %v1718 = vld [vmem:[%s1715 + $0x10] sm:$0xff]
      %v1719 = vld [vmem:[%s1715 + $0x18] sm:$0xff]
      %v1720 = vperm.slane %v1592, 2
      %v1722 = vsel %vm496, %v1710, 0
      %v1725 = vsel %vm496, %v1711, 0
      %v1728 = vsel %vm496, %v1712, 0
      %v1731 = vsel %vm496, %v1713, 0
      %v1734 = vsel %vm496, %v1714, 0
      %1736 = vmatpush.msra.mxu0 0.0
      %1737 = vmatpush.msra.mxu0 0.0
      %1738 = vmatpush.msra.mxu0 0.0
      %1739 = vmatpush.msra.mxu0 0.0
      %1740 = vmatpush.msra.mxu0 0.0
      %1741 = vmatpush.msra.mxu0 0.0
      %1742 = vmatpush.msra.mxu0 0.0
      %1743 = vmatpush.msra.mxu0 0.0
      %1744 = vmatpush.msra.mxu0 0.0
      %1745 = vmatpush.msra.mxu0 0.0
      %1746 = vmatpush.msra.mxu0 0.0
      %1747 = vmatpush.msra.mxu0 0.0
      %1748 = vmatpush.msra.mxu0 %v1719
      %1749 = vmatpush.msra.mxu0 %v1718
      %1750 = vmatpush.msra.mxu0 %v1717
      %1751 = vmatpush.msra.mxu0 %v1716
      %1752 = vmatmul.f32.gmra.mxu0 %v1722
      %v1753 = vpop.f32.mrf.mxu0
      %v1754 = vadd.f32 %v1720, %v1753
      %1755 = vmatmul.f32.gmra.mxu0 %v1725
      %v1756 = vpop.f32.mrf.mxu0
      %v1757 = vadd.f32 %v1720, %v1756
      %1758 = vmatmul.f32.gmra.mxu0 %v1728
      %v1759 = vpop.f32.mrf.mxu0
      %v1760 = vadd.f32 %v1720, %v1759
      %1761 = vmatmul.f32.gmra.mxu0 %v1731
      %v1762 = vpop.f32.mrf.mxu0
      %v1763 = vadd.f32 %v1720, %v1762
      %1764 = vmatmul.f32.gmra.mxu0 %v1734
      %v1765 = vpop.f32.mrf.mxu0
      %v1766 = vadd.f32 %v1720, %v1765
      %1767 = vdwg.mxu0
      %1773 = vrot.lane.b32.xlu0 %v1754, 96
      %v1774 = vpop.permute.xlu0 %1773
      %1775 = vrot.lane.b32.xlu0 %v1757, 96
      %v1776 = vpop.permute.xlu0 %1775
      %1777 = vrot.lane.b32.xlu0 %v1760, 96
      %v1778 = vpop.permute.xlu0 %1777
      %1779 = vrot.lane.b32.xlu0 %v1763, 96
      %v1780 = vpop.permute.xlu0 %1779
      %1781 = vrot.lane.b32.xlu0 %v1766, 96
      %v1782 = vpop.permute.xlu0 %1781
      %v1783 = vsel %vm694, %v1754, 0
      %v1785 = vsel %vm694, %v1757, 0
      %v1787 = vsel %vm694, %v1760, 0
      %v1789 = vsel %vm694, %v1763, 0
      %v1791 = vsel %vm694, %v1766, 0
      %v1793 = vsel %vm694, %v1774, 0
      %v1795 = vsel %vm694, %v1776, 0
      %v1797 = vsel %vm694, %v1778, 0
      %v1799 = vsel %vm694, %v1780, 0
      %v1801 = vsel %vm694, %v1782, 0
      %1803 = vmatpush.xpose.msra.mxu0 0.0
      %1804 = vmatpush.xpose.msra.mxu0 0.0
      %1805 = vmatpush.xpose.msra.mxu0 0.0
      %1806 = vmatpush.xpose.msra.mxu0 0.0
      %1807 = vmatpush.xpose.msra.mxu0 0.0
      %1808 = vmatpush.xpose.msra.mxu0 0.0
      %1809 = vmatpush.xpose.msra.mxu0 0.0
      %1810 = vmatpush.xpose.msra.mxu0 0.0
      %1811 = vmatpush.xpose.msra.mxu0 0.0
      %1812 = vmatpush.xpose.msra.mxu0 0.0
      %1813 = vmatpush.xpose.msra.mxu0 0.0
      %1814 = vmatpush.xpose.msra.mxu0 %v1801
      %1815 = vmatpush.xpose.msra.mxu0 %v1799
      %1816 = vmatpush.xpose.msra.mxu0 %v1797
      %1817 = vmatpush.xpose.msra.mxu0 %v1795
      %1818 = vmatpush.xpose.msra.mxu0 %v1793
      %1819 = vmatmul.f32.gmra.mxu0 %v1783
      %v1820 = vpop.f32.mrf.mxu0
      %v1821 = vadd.f32 0.0, %v1820
      %1822 = vmatmul.f32.gmra.mxu0 %v1785
      %v1823 = vpop.f32.mrf.mxu0
      %v1824 = vadd.f32 0.0, %v1823
      %1825 = vmatmul.f32.gmra.mxu0 %v1787
      %v1826 = vpop.f32.mrf.mxu0
      %v1827 = vadd.f32 0.0, %v1826
      %1828 = vmatmul.f32.gmra.mxu0 %v1789
      %v1829 = vpop.f32.mrf.mxu0
      %v1830 = vadd.f32 0.0, %v1829
      %1831 = vmatmul.f32.gmra.mxu0 %v1791
      %v1832 = vpop.f32.mrf.mxu0
      %v1833 = vadd.f32 0.0, %v1832
      %1834 = vdwg.mxu0
      %v1835 = vmul.f32 %v1821, 0.25
      %v1836 = vmul.f32 %v1824, 0.25
      %v1837 = vmul.f32 %v1827, 0.25
      %v1838 = vmul.f32 %v1830, 0.25
      %v1839 = vmul.f32 %v1833, 0.25
      %v1840 = vadd.f32 %v1835, %v424
      %v1841 = vadd.f32 %v1836, %v425
      %v1842 = vadd.f32 %v1837, %v426
      %v1843 = vadd.f32 %v1838, %v427
      %v1844 = vadd.f32 %v1839, %v428
      %v1845 = vsel %vm757, %v1840, -inf
      %1846 = vmax.xlane.f32.xlu0 %v1845
      %v1847 = vpop.xlane.xlu0 %1846
      %v1848 = vsel %vm757, %v1841, -inf
      %1849 = vmax.xlane.f32.xlu0 %v1848
      %v1850 = vpop.xlane.xlu0 %1849
      %v1851 = vsel %vm757, %v1842, -inf
      %1852 = vmax.xlane.f32.xlu0 %v1851
      %v1853 = vpop.xlane.xlu0 %1852
      %v1854 = vsel %vm757, %v1843, -inf
      %1855 = vmax.xlane.f32.xlu0 %v1854
      %v1856 = vpop.xlane.xlu0 %1855
      %v1857 = vsel %vm770, %v1844, -inf
      %1858 = vmax.xlane.f32.xlu0 %v1857
      %v1859 = vpop.xlane.xlu0 %1858
      %v1860 = vsub.f32 %v1840, %v1847
      %v1861 = vsub.f32 %v1841, %v1850
      %v1862 = vsub.f32 %v1842, %v1853
      %v1863 = vsub.f32 %v1843, %v1856
      %v1864 = vsub.f32 %v1844, %v1859
      %v1865 = vmul.f32 %v1860, 1.442695
      %v1866 = vpow.pop %v1865
      %v1867 = vmul.f32 %v1861, 1.442695
      %v1868 = vpow.pop %v1867
      %v1869 = vmul.f32 %v1862, 1.442695
      %v1870 = vpow.pop %v1869
      %v1871 = vmul.f32 %v1863, 1.442695
      %v1872 = vpow.pop %v1871
      %v1873 = vmul.f32 %v1864, 1.442695
      %v1874 = vpow.pop %v1873
      %v1875 = vsel %vm757, %v1866, 0.0
      %1876 = vadd.xlane.f32.xlu0 %v1875
      %v1877 = vpop.xlane.xlu0 %1876
      %v1878 = vsel %vm757, %v1868, 0.0
      %1879 = vadd.xlane.f32.xlu0 %v1878
      %v1880 = vpop.xlane.xlu0 %1879
      %v1881 = vsel %vm757, %v1870, 0.0
      %1882 = vadd.xlane.f32.xlu0 %v1881
      %v1883 = vpop.xlane.xlu0 %1882
      %v1884 = vsel %vm757, %v1872, 0.0
      %1885 = vadd.xlane.f32.xlu0 %v1884
      %v1886 = vpop.xlane.xlu0 %1885
      %v1887 = vsel %vm770, %v1874, 0.0
      %1888 = vadd.xlane.f32.xlu0 %v1887
      %v1889 = vpop.xlane.xlu0 %1888
      %v1890 = vrcp.pop %v1877
      %v1891 = vmul.f32 %v1877, %v1890
      %v1892 = vsub.f32 1.0, %v1891
      %v1893 = vmul.f32 %v1890, %v1892
      %v1894 = vadd.f32 %v1890, %v1893
      %vm1895 = vweird.f32 %v1877
      %vm1896 = vweird.f32 %v1890
      %vm1897 = vmor %vm1895, %vm1896
      %v1898 = vsel %vm1897, %v1890, %v1894
      %v1899 = vand.u32 2147483647, %v1877
      %vm1900 = vcmp.eq.f32.partialorder %v1899, 8.507059e+37
      %v1901 = vand.u32 %v1877, 2147483648
      %v1902 = vor.u32 1.1754944e-38, %v1901
      %v1903 = vsel %vm1900, %v1902, %v1898
      %v1904 = vmul.f32 %v1866, %v1903
      %v1905 = vrcp.pop %v1880
      %v1906 = vmul.f32 %v1880, %v1905
      %v1907 = vsub.f32 1.0, %v1906
      %v1908 = vmul.f32 %v1905, %v1907
      %v1909 = vadd.f32 %v1905, %v1908
      %vm1910 = vweird.f32 %v1880
      %vm1911 = vweird.f32 %v1905
      %vm1912 = vmor %vm1910, %vm1911
      %v1913 = vsel %vm1912, %v1905, %v1909
      %v1914 = vand.u32 2147483647, %v1880
      %vm1915 = vcmp.eq.f32.partialorder %v1914, 8.507059e+37
      %v1916 = vand.u32 %v1880, 2147483648
      %v1917 = vor.u32 1.1754944e-38, %v1916
      %v1918 = vsel %vm1915, %v1917, %v1913
      %v1919 = vmul.f32 %v1868, %v1918
      %v1920 = vrcp.pop %v1883
      %v1921 = vmul.f32 %v1883, %v1920
      %v1922 = vsub.f32 1.0, %v1921
      %v1923 = vmul.f32 %v1920, %v1922
      %v1924 = vadd.f32 %v1920, %v1923
      %vm1925 = vweird.f32 %v1883
      %vm1926 = vweird.f32 %v1920
      %vm1927 = vmor %vm1925, %vm1926
      %v1928 = vsel %vm1927, %v1920, %v1924
      %v1929 = vand.u32 2147483647, %v1883
      %vm1930 = vcmp.eq.f32.partialorder %v1929, 8.507059e+37
      %v1931 = vand.u32 %v1883, 2147483648
      %v1932 = vor.u32 1.1754944e-38, %v1931
      %v1933 = vsel %vm1930, %v1932, %v1928
      %v1934 = vmul.f32 %v1870, %v1933
      %v1935 = vrcp.pop %v1886
      %v1936 = vmul.f32 %v1886, %v1935
      %v1937 = vsub.f32 1.0, %v1936
      %v1938 = vmul.f32 %v1935, %v1937
      %v1939 = vadd.f32 %v1935, %v1938
      %vm1940 = vweird.f32 %v1886
      %vm1941 = vweird.f32 %v1935
      %vm1942 = vmor %vm1940, %vm1941
      %v1943 = vsel %vm1942, %v1935, %v1939
      %v1944 = vand.u32 2147483647, %v1886
      %vm1945 = vcmp.eq.f32.partialorder %v1944, 8.507059e+37
      %v1946 = vand.u32 %v1886, 2147483648
      %v1947 = vor.u32 1.1754944e-38, %v1946
      %v1948 = vsel %vm1945, %v1947, %v1943
      %v1949 = vmul.f32 %v1872, %v1948
      %v1950 = vrcp.pop %v1889
      %v1951 = vmul.f32 %v1889, %v1950
      %v1952 = vsub.f32 1.0, %v1951
      %v1953 = vmul.f32 %v1950, %v1952
      %v1954 = vadd.f32 %v1950, %v1953
      %vm1955 = vweird.f32 %v1889
      %vm1956 = vweird.f32 %v1950
      %vm1957 = vmor %vm1955, %vm1956
      %v1958 = vsel %vm1957, %v1950, %v1954
      %v1959 = vand.u32 2147483647, %v1889
      %vm1960 = vcmp.eq.f32.partialorder %v1959, 8.507059e+37
      %v1961 = vand.u32 %v1889, 2147483648
      %v1962 = vor.u32 1.1754944e-38, %v1961
      %v1963 = vsel %vm1960, %v1962, %v1958
      %v1964 = vmul.f32 %v1874, %v1963
      %1965 = vrot.lane.b32.xlu0 %v1754, 64
      %v1966 = vpop.permute.xlu0 %1965
      %1967 = vrot.lane.b32.xlu0 %v1757, 64
      %v1968 = vpop.permute.xlu0 %1967
      %1969 = vrot.lane.b32.xlu0 %v1760, 64
      %v1970 = vpop.permute.xlu0 %1969
      %1971 = vrot.lane.b32.xlu0 %v1763, 64
      %v1972 = vpop.permute.xlu0 %1971
      %1973 = vrot.lane.b32.xlu0 %v1766, 64
      %v1974 = vpop.permute.xlu0 %1973
      %v1980 = vsel %vm757, %v1904, 0
      %v1983 = vsel %vm757, %v1919, 0
      %v1986 = vsel %vm757, %v1934, 0
      %v1989 = vsel %vm757, %v1949, 0
      %v1992 = vsel %vm757, %v1964, 0
      %v1994 = vsel %vm908, %v1974, 0
      %1996 = vmatpush.msra.mxu0 0.0
      %1997 = vmatpush.msra.mxu0 0.0
      %1998 = vmatpush.msra.mxu0 0.0
      %1999 = vmatpush.msra.mxu0 0.0
      %2000 = vmatpush.msra.mxu0 0.0
      %2001 = vmatpush.msra.mxu0 0.0
      %2002 = vmatpush.msra.mxu0 0.0
      %2003 = vmatpush.msra.mxu0 0.0
      %2004 = vmatpush.msra.mxu0 0.0
      %2005 = vmatpush.msra.mxu0 0.0
      %2006 = vmatpush.msra.mxu0 0.0
      %2007 = vmatpush.msra.mxu0 %v1994
      %2008 = vmatpush.msra.mxu0 %v1972
      %2009 = vmatpush.msra.mxu0 %v1970
      %2010 = vmatpush.msra.mxu0 %v1968
      %2011 = vmatpush.msra.mxu0 %v1966
      %2012 = vmatmul.f32.gmra.mxu0 %v1980
      %v2013 = vpop.f32.mrf.mxu0
      %v2014 = vadd.f32 0.0, %v2013
      %2015 = vmatmul.f32.gmra.mxu0 %v1983
      %v2016 = vpop.f32.mrf.mxu0
      %v2017 = vadd.f32 0.0, %v2016
      %2018 = vmatmul.f32.gmra.mxu0 %v1986
      %v2019 = vpop.f32.mrf.mxu0
      %v2020 = vadd.f32 0.0, %v2019
      %2021 = vmatmul.f32.gmra.mxu0 %v1989
      %v2022 = vpop.f32.mrf.mxu0
      %v2023 = vadd.f32 0.0, %v2022
      %2024 = vmatmul.f32.gmra.mxu0 %v1992
      %v2025 = vpop.f32.mrf.mxu0
      %v2026 = vadd.f32 0.0, %v2025
      %2027 = vdwg.mxu0
      %s2028 = scalar_lea.vmem %s404, 32
      %v2029 = vld [vmem:[%s2028] sm:$0xff]
      %v2030 = vld [vmem:[%s2028 + $0x8] sm:$0xff]
      %2031 = vrot.lane.b32.xlu0 %v1754, 112
      %v2032 = vpop.permute.xlu0 %2031
      %2033 = vrot.lane.b32.xlu0 %v1757, 112
      %v2034 = vpop.permute.xlu0 %2033
      %2035 = vrot.lane.b32.xlu0 %v1760, 112
      %v2036 = vpop.permute.xlu0 %2035
      %2037 = vrot.lane.b32.xlu0 %v1763, 112
      %v2038 = vpop.permute.xlu0 %2037
      %2039 = vrot.lane.b32.xlu0 %v1766, 112
      %v2040 = vpop.permute.xlu0 %2039
      %2041 = vrot.lane.b32.xlu0 %v1754, 80
      %v2042 = vpop.permute.xlu0 %2041
      %2043 = vrot.lane.b32.xlu0 %v1757, 80
      %v2044 = vpop.permute.xlu0 %2043
      %2045 = vrot.lane.b32.xlu0 %v1760, 80
      %v2046 = vpop.permute.xlu0 %2045
      %2047 = vrot.lane.b32.xlu0 %v1763, 80
      %v2048 = vpop.permute.xlu0 %2047
      %2049 = vrot.lane.b32.xlu0 %v1766, 80
      %v2050 = vpop.permute.xlu0 %2049
      %v2051 = vsel %vm694, %v2032, 0
      %v2053 = vsel %vm694, %v2034, 0
      %v2055 = vsel %vm694, %v2036, 0
      %v2057 = vsel %vm694, %v2038, 0
      %v2059 = vsel %vm694, %v2040, 0
      %v2061 = vsel %vm694, %v2042, 0
      %v2063 = vsel %vm694, %v2044, 0
      %v2065 = vsel %vm694, %v2046, 0
      %v2067 = vsel %vm694, %v2048, 0
      %v2069 = vsel %vm694, %v2050, 0
      %2071 = vmatpush.xpose.msra.mxu0 0.0
      %2072 = vmatpush.xpose.msra.mxu0 0.0
      %2073 = vmatpush.xpose.msra.mxu0 0.0
      %2074 = vmatpush.xpose.msra.mxu0 0.0
      %2075 = vmatpush.xpose.msra.mxu0 0.0
      %2076 = vmatpush.xpose.msra.mxu0 0.0
      %2077 = vmatpush.xpose.msra.mxu0 0.0
      %2078 = vmatpush.xpose.msra.mxu0 0.0
      %2079 = vmatpush.xpose.msra.mxu0 0.0
      %2080 = vmatpush.xpose.msra.mxu0 0.0
      %2081 = vmatpush.xpose.msra.mxu0 0.0
      %2082 = vmatpush.xpose.msra.mxu0 %v2069
      %2083 = vmatpush.xpose.msra.mxu0 %v2067
      %2084 = vmatpush.xpose.msra.mxu0 %v2065
      %2085 = vmatpush.xpose.msra.mxu0 %v2063
      %2086 = vmatpush.xpose.msra.mxu0 %v2061
      %2087 = vmatmul.f32.gmra.mxu0 %v2051
      %v2088 = vpop.f32.mrf.mxu0
      %v2089 = vadd.f32 0.0, %v2088
      %2090 = vmatmul.f32.gmra.mxu0 %v2053
      %v2091 = vpop.f32.mrf.mxu0
      %v2092 = vadd.f32 0.0, %v2091
      %2093 = vmatmul.f32.gmra.mxu0 %v2055
      %v2094 = vpop.f32.mrf.mxu0
      %v2095 = vadd.f32 0.0, %v2094
      %2096 = vmatmul.f32.gmra.mxu0 %v2057
      %v2097 = vpop.f32.mrf.mxu0
      %v2098 = vadd.f32 0.0, %v2097
      %2099 = vmatmul.f32.gmra.mxu0 %v2059
      %v2100 = vpop.f32.mrf.mxu0
      %v2101 = vadd.f32 0.0, %v2100
      %2102 = vdwg.mxu0
      %v2103 = vmul.f32 %v2089, 0.25
      %v2104 = vmul.f32 %v2092, 0.25
      %v2105 = vmul.f32 %v2095, 0.25
      %v2106 = vmul.f32 %v2098, 0.25
      %v2107 = vmul.f32 %v2101, 0.25
      %v2108 = vadd.f32 %v2103, %v424
      %v2109 = vadd.f32 %v2104, %v425
      %v2110 = vadd.f32 %v2105, %v426
      %v2111 = vadd.f32 %v2106, %v427
      %v2112 = vadd.f32 %v2107, %v428
      %v2113 = vsel %vm757, %v2108, -inf
      %2114 = vmax.xlane.f32.xlu0 %v2113
      %v2115 = vpop.xlane.xlu0 %2114
      %v2116 = vsel %vm757, %v2109, -inf
      %2117 = vmax.xlane.f32.xlu0 %v2116
      %v2118 = vpop.xlane.xlu0 %2117
      %v2119 = vsel %vm757, %v2110, -inf
      %2120 = vmax.xlane.f32.xlu0 %v2119
      %v2121 = vpop.xlane.xlu0 %2120
      %v2122 = vsel %vm757, %v2111, -inf
      %2123 = vmax.xlane.f32.xlu0 %v2122
      %v2124 = vpop.xlane.xlu0 %2123
      %v2125 = vsel %vm770, %v2112, -inf
      %2126 = vmax.xlane.f32.xlu0 %v2125
      %v2127 = vpop.xlane.xlu0 %2126
      %v2128 = vsub.f32 %v2108, %v2115
      %v2129 = vsub.f32 %v2109, %v2118
      %v2130 = vsub.f32 %v2110, %v2121
      %v2131 = vsub.f32 %v2111, %v2124
      %v2132 = vsub.f32 %v2112, %v2127
      %v2133 = vmul.f32 %v2128, 1.442695
      %v2134 = vpow.pop %v2133
      %v2135 = vmul.f32 %v2129, 1.442695
      %v2136 = vpow.pop %v2135
      %v2137 = vmul.f32 %v2130, 1.442695
      %v2138 = vpow.pop %v2137
      %v2139 = vmul.f32 %v2131, 1.442695
      %v2140 = vpow.pop %v2139
      %v2141 = vmul.f32 %v2132, 1.442695
      %v2142 = vpow.pop %v2141
      %v2143 = vsel %vm757, %v2134, 0.0
      %2144 = vadd.xlane.f32.xlu0 %v2143
      %v2145 = vpop.xlane.xlu0 %2144
      %v2146 = vsel %vm757, %v2136, 0.0
      %2147 = vadd.xlane.f32.xlu0 %v2146
      %v2148 = vpop.xlane.xlu0 %2147
      %v2149 = vsel %vm757, %v2138, 0.0
      %2150 = vadd.xlane.f32.xlu0 %v2149
      %v2151 = vpop.xlane.xlu0 %2150
      %v2152 = vsel %vm757, %v2140, 0.0
      %2153 = vadd.xlane.f32.xlu0 %v2152
      %v2154 = vpop.xlane.xlu0 %2153
      %v2155 = vsel %vm770, %v2142, 0.0
      %2156 = vadd.xlane.f32.xlu0 %v2155
      %v2157 = vpop.xlane.xlu0 %2156
      %v2158 = vrcp.pop %v2145
      %v2159 = vmul.f32 %v2145, %v2158
      %v2160 = vsub.f32 1.0, %v2159
      %v2161 = vmul.f32 %v2158, %v2160
      %v2162 = vadd.f32 %v2158, %v2161
      %vm2163 = vweird.f32 %v2145
      %vm2164 = vweird.f32 %v2158
      %vm2165 = vmor %vm2163, %vm2164
      %v2166 = vsel %vm2165, %v2158, %v2162
      %v2167 = vand.u32 2147483647, %v2145
      %vm2168 = vcmp.eq.f32.partialorder %v2167, 8.507059e+37
      %v2169 = vand.u32 %v2145, 2147483648
      %v2170 = vor.u32 1.1754944e-38, %v2169
      %v2171 = vsel %vm2168, %v2170, %v2166
      %v2172 = vmul.f32 %v2134, %v2171
      %v2173 = vrcp.pop %v2148
      %v2174 = vmul.f32 %v2148, %v2173
      %v2175 = vsub.f32 1.0, %v2174
      %v2176 = vmul.f32 %v2173, %v2175
      %v2177 = vadd.f32 %v2173, %v2176
      %vm2178 = vweird.f32 %v2148
      %vm2179 = vweird.f32 %v2173
      %vm2180 = vmor %vm2178, %vm2179
      %v2181 = vsel %vm2180, %v2173, %v2177
      %v2182 = vand.u32 2147483647, %v2148
      %vm2183 = vcmp.eq.f32.partialorder %v2182, 8.507059e+37
      %v2184 = vand.u32 %v2148, 2147483648
      %v2185 = vor.u32 1.1754944e-38, %v2184
      %v2186 = vsel %vm2183, %v2185, %v2181
      %v2187 = vmul.f32 %v2136, %v2186
      %v2188 = vrcp.pop %v2151
      %v2189 = vmul.f32 %v2151, %v2188
      %v2190 = vsub.f32 1.0, %v2189
      %v2191 = vmul.f32 %v2188, %v2190
      %v2192 = vadd.f32 %v2188, %v2191
      %vm2193 = vweird.f32 %v2151
      %vm2194 = vweird.f32 %v2188
      %vm2195 = vmor %vm2193, %vm2194
      %v2196 = vsel %vm2195, %v2188, %v2192
      %v2197 = vand.u32 2147483647, %v2151
      %vm2198 = vcmp.eq.f32.partialorder %v2197, 8.507059e+37
      %v2199 = vand.u32 %v2151, 2147483648
      %v2200 = vor.u32 1.1754944e-38, %v2199
      %v2201 = vsel %vm2198, %v2200, %v2196
      %v2202 = vmul.f32 %v2138, %v2201
      %v2203 = vrcp.pop %v2154
      %v2204 = vmul.f32 %v2154, %v2203
      %v2205 = vsub.f32 1.0, %v2204
      %v2206 = vmul.f32 %v2203, %v2205
      %v2207 = vadd.f32 %v2203, %v2206
      %vm2208 = vweird.f32 %v2154
      %vm2209 = vweird.f32 %v2203
      %vm2210 = vmor %vm2208, %vm2209
      %v2211 = vsel %vm2210, %v2203, %v2207
      %v2212 = vand.u32 2147483647, %v2154
      %vm2213 = vcmp.eq.f32.partialorder %v2212, 8.507059e+37
      %v2214 = vand.u32 %v2154, 2147483648
      %v2215 = vor.u32 1.1754944e-38, %v2214
      %v2216 = vsel %vm2213, %v2215, %v2211
      %v2217 = vmul.f32 %v2140, %v2216
      %v2218 = vrcp.pop %v2157
      %v2219 = vmul.f32 %v2157, %v2218
      %v2220 = vsub.f32 1.0, %v2219
      %v2221 = vmul.f32 %v2218, %v2220
      %v2222 = vadd.f32 %v2218, %v2221
      %vm2223 = vweird.f32 %v2157
      %vm2224 = vweird.f32 %v2218
      %vm2225 = vmor %vm2223, %vm2224
      %v2226 = vsel %vm2225, %v2218, %v2222
      %v2227 = vand.u32 2147483647, %v2157
      %vm2228 = vcmp.eq.f32.partialorder %v2227, 8.507059e+37
      %v2229 = vand.u32 %v2157, 2147483648
      %v2230 = vor.u32 1.1754944e-38, %v2229
      %v2231 = vsel %vm2228, %v2230, %v2226
      %v2232 = vmul.f32 %v2142, %v2231
      %2233 = vrot.lane.b32.xlu0 %v1754, 48
      %v2234 = vpop.permute.xlu0 %2233
      %2235 = vrot.lane.b32.xlu0 %v1757, 48
      %v2236 = vpop.permute.xlu0 %2235
      %2237 = vrot.lane.b32.xlu0 %v1760, 48
      %v2238 = vpop.permute.xlu0 %2237
      %2239 = vrot.lane.b32.xlu0 %v1763, 48
      %v2240 = vpop.permute.xlu0 %2239
      %2241 = vrot.lane.b32.xlu0 %v1766, 48
      %v2242 = vpop.permute.xlu0 %2241
      %v2248 = vsel %vm757, %v2172, 0
      %v2251 = vsel %vm757, %v2187, 0
      %v2254 = vsel %vm757, %v2202, 0
      %v2257 = vsel %vm757, %v2217, 0
      %v2260 = vsel %vm757, %v2232, 0
      %v2262 = vsel %vm908, %v2242, 0
      %2264 = vmatpush.msra.mxu0 0.0
      %2265 = vmatpush.msra.mxu0 0.0
      %2266 = vmatpush.msra.mxu0 0.0
      %2267 = vmatpush.msra.mxu0 0.0
      %2268 = vmatpush.msra.mxu0 0.0
      %2269 = vmatpush.msra.mxu0 0.0
      %2270 = vmatpush.msra.mxu0 0.0
      %2271 = vmatpush.msra.mxu0 0.0
      %2272 = vmatpush.msra.mxu0 0.0
      %2273 = vmatpush.msra.mxu0 0.0
      %2274 = vmatpush.msra.mxu0 0.0
      %2275 = vmatpush.msra.mxu0 %v2262
      %2276 = vmatpush.msra.mxu0 %v2240
      %2277 = vmatpush.msra.mxu0 %v2238
      %2278 = vmatpush.msra.mxu0 %v2236
      %2279 = vmatpush.msra.mxu0 %v2234
      %2280 = vmatmul.f32.gmra.mxu0 %v2248
      %v2281 = vpop.f32.mrf.mxu0
      %v2282 = vadd.f32 0.0, %v2281
      %2283 = vmatmul.f32.gmra.mxu0 %v2251
      %v2284 = vpop.f32.mrf.mxu0
      %v2285 = vadd.f32 0.0, %v2284
      %2286 = vmatmul.f32.gmra.mxu0 %v2254
      %v2287 = vpop.f32.mrf.mxu0
      %v2288 = vadd.f32 0.0, %v2287
      %2289 = vmatmul.f32.gmra.mxu0 %v2257
      %v2290 = vpop.f32.mrf.mxu0
      %v2291 = vadd.f32 0.0, %v2290
      %2292 = vmatmul.f32.gmra.mxu0 %v2260
      %v2293 = vpop.f32.mrf.mxu0
      %v2294 = vadd.f32 0.0, %v2293
      %2295 = vdwg.mxu0
      %s2296 = scalar_lea.vmem %s404, 48
      %v2297 = vld [vmem:[%s2296] sm:$0xff]
      %v2298 = vld [vmem:[%s2296 + $0x8] sm:$0xff]
      %v2300 = vsel %vm694, %v2282, 0
      %v2303 = vsel %vm694, %v2285, 0
      %v2306 = vsel %vm694, %v2288, 0
      %v2309 = vsel %vm694, %v2291, 0
      %v2312 = vsel %vm694, %v2294, 0
      %2314 = vmatpush.msra.mxu0 0.0
      %2315 = vmatpush.msra.mxu0 0.0
      %2316 = vmatpush.msra.mxu0 0.0
      %2317 = vmatpush.msra.mxu0 0.0
      %2318 = vmatpush.msra.mxu0 0.0
      %2319 = vmatpush.msra.mxu0 0.0
      %2320 = vmatpush.msra.mxu0 0.0
      %2321 = vmatpush.msra.mxu0 0.0
      %2322 = vmatpush.msra.mxu0 0.0
      %2323 = vmatpush.msra.mxu0 0.0
      %2324 = vmatpush.msra.mxu0 0.0
      %2325 = vmatpush.msra.mxu0 0.0
      %2326 = vmatpush.msra.mxu0 0.0
      %2327 = vmatpush.msra.mxu0 0.0
      %2328 = vmatpush.msra.mxu0 %v2298
      %2329 = vmatpush.msra.mxu0 %v2297
      %2330 = vmatmul.f32.gmra.mxu0 %v2300
      %v2331 = vpop.f32.mrf.mxu0
      %v2332 = vadd.f32 0.0, %v2331
      %2333 = vmatmul.f32.gmra.mxu0 %v2303
      %v2334 = vpop.f32.mrf.mxu0
      %v2335 = vadd.f32 0.0, %v2334
      %2336 = vmatmul.f32.gmra.mxu0 %v2306
      %v2337 = vpop.f32.mrf.mxu0
      %v2338 = vadd.f32 0.0, %v2337
      %2339 = vmatmul.f32.gmra.mxu0 %v2309
      %v2340 = vpop.f32.mrf.mxu0
      %v2341 = vadd.f32 0.0, %v2340
      %2342 = vmatmul.f32.gmra.mxu0 %v2312
      %v2343 = vpop.f32.mrf.mxu0
      %v2344 = vadd.f32 0.0, %v2343
      %2345 = vdwg.mxu0
      %v2347 = vsel %vm694, %v2014, 0
      %v2350 = vsel %vm694, %v2017, 0
      %v2353 = vsel %vm694, %v2020, 0
      %v2356 = vsel %vm694, %v2023, 0
      %v2359 = vsel %vm694, %v2026, 0
      %2361 = vmatpush.msra.mxu0 0.0
      %2362 = vmatpush.msra.mxu0 0.0
      %2363 = vmatpush.msra.mxu0 0.0
      %2364 = vmatpush.msra.mxu0 0.0
      %2365 = vmatpush.msra.mxu0 0.0
      %2366 = vmatpush.msra.mxu0 0.0
      %2367 = vmatpush.msra.mxu0 0.0
      %2368 = vmatpush.msra.mxu0 0.0
      %2369 = vmatpush.msra.mxu0 0.0
      %2370 = vmatpush.msra.mxu0 0.0
      %2371 = vmatpush.msra.mxu0 0.0
      %2372 = vmatpush.msra.mxu0 0.0
      %2373 = vmatpush.msra.mxu0 0.0
      %2374 = vmatpush.msra.mxu0 0.0
      %2375 = vmatpush.msra.mxu0 %v2030
      %2376 = vmatpush.msra.mxu0 %v2029
      %2377 = vmatmul.f32.gmra.mxu0 %v2347
      %v2378 = vpop.f32.mrf.mxu0
      %v2379 = vadd.f32 %v2332, %v2378
      %2380 = vmatmul.f32.gmra.mxu0 %v2350
      %v2381 = vpop.f32.mrf.mxu0
      %v2382 = vadd.f32 %v2335, %v2381
      %2383 = vmatmul.f32.gmra.mxu0 %v2353
      %v2384 = vpop.f32.mrf.mxu0
      %v2385 = vadd.f32 %v2338, %v2384
      %2386 = vmatmul.f32.gmra.mxu0 %v2356
      %v2387 = vpop.f32.mrf.mxu0
      %v2388 = vadd.f32 %v2341, %v2387
      %2389 = vmatmul.f32.gmra.mxu0 %v2359
      %v2390 = vpop.f32.mrf.mxu0
      %v2391 = vadd.f32 %v2344, %v2390
      %2392 = vdwg.mxu0
      %v2393 = vperm.slane %v1592, 3
      %v2394 = vadd.f32 %v2379, %v2393
      %v2395 = vadd.f32 %v2382, %v2393
      %v2396 = vadd.f32 %v2385, %v2393
      %v2397 = vadd.f32 %v2388, %v2393
      %v2398 = vadd.f32 %v2391, %v2393
      %v2399 = vadd.f32 %v1586, %v2394
      %v2400 = vadd.f32 %v1587, %v2395
      %v2401 = vadd.f32 %v1588, %v2396
      %v2402 = vadd.f32 %v1589, %v2397
      %v2403 = vadd.f32 %v1590, %v2398
      %v2404 = vsel %vm496, %v2399, 0.0
      %2405 = vadd.xlane.f32.xlu0 %v2404
      %v2406 = vpop.xlane.xlu0 %2405
      %v2407 = vsel %vm496, %v2400, 0.0
      %2408 = vadd.xlane.f32.xlu0 %v2407
      %v2409 = vpop.xlane.xlu0 %2408
      %v2410 = vsel %vm496, %v2401, 0.0
      %2411 = vadd.xlane.f32.xlu0 %v2410
      %v2412 = vpop.xlane.xlu0 %2411
      %v2413 = vsel %vm496, %v2402, 0.0
      %2414 = vadd.xlane.f32.xlu0 %v2413
      %v2415 = vpop.xlane.xlu0 %2414
      %v2416 = vsel %vm509, %v2403, 0.0
      %2417 = vadd.xlane.f32.xlu0 %v2416
      %v2418 = vpop.xlane.xlu0 %2417
      %v2419 = vmul.f32 %v2406, %v519
      %v2420 = vmul.f32 %v2409, %v519
      %v2421 = vmul.f32 %v2412, %v519
      %v2422 = vmul.f32 %v2415, %v519
      %v2423 = vmul.f32 %v2418, %v519
      %v2424 = vsub.f32 %v2399, %v2419
      %v2425 = vsub.f32 %v2400, %v2420
      %v2426 = vsub.f32 %v2401, %v2421
      %v2427 = vsub.f32 %v2402, %v2422
      %v2428 = vsub.f32 %v2403, %v2423
      %v2429 = vmul.f32 %v2424, %v2424
      %v2430 = vmul.f32 %v2425, %v2425
      %v2431 = vmul.f32 %v2426, %v2426
      %v2432 = vmul.f32 %v2427, %v2427
      %v2433 = vmul.f32 %v2428, %v2428
      %v2434 = vsel %vm496, %v2429, 0.0
      %2435 = vadd.xlane.f32.xlu0 %v2434
      %v2436 = vpop.xlane.xlu0 %2435
      %v2437 = vsel %vm496, %v2430, 0.0
      %2438 = vadd.xlane.f32.xlu0 %v2437
      %v2439 = vpop.xlane.xlu0 %2438
      %v2440 = vsel %vm496, %v2431, 0.0
      %2441 = vadd.xlane.f32.xlu0 %v2440
      %v2442 = vpop.xlane.xlu0 %2441
      %v2443 = vsel %vm496, %v2432, 0.0
      %2444 = vadd.xlane.f32.xlu0 %v2443
      %v2445 = vpop.xlane.xlu0 %2444
      %v2446 = vsel %vm509, %v2433, 0.0
      %2447 = vadd.xlane.f32.xlu0 %v2446
      %v2448 = vpop.xlane.xlu0 %2447
      %v2449 = vmul.f32 %v2436, %v519
      %v2450 = vmul.f32 %v2439, %v519
      %v2451 = vmul.f32 %v2442, %v519
      %v2452 = vmul.f32 %v2445, %v519
      %v2453 = vmul.f32 %v2448, %v519
      %v2454 = vadd.f32 %v2449, 1e-06
      %v2455 = vadd.f32 %v2450, 1e-06
      %v2456 = vadd.f32 %v2451, 1e-06
      %v2457 = vadd.f32 %v2452, 1e-06
      %v2458 = vadd.f32 %v2453, 1e-06
      %v2459 = vrsqrt.pop %v2454
      %v2460 = vmul.f32 %v2459, %v2454
      %v2461 = vmul.f32 %v2460, %v2459
      %v2462 = vmul.f32 0.5, %v2461
      %v2463 = vsub.f32 1.5, %v2462
      %v2464 = vmul.f32 %v2459, %v2463
      %vm2465 = vweird.f32 %v2454
      %vm2466 = vweird.f32 %v2459
      %vm2467 = vmor %vm2465, %vm2466
      %v2468 = vsel %vm2467, %v2459, %v2464
      %v2469 = vrsqrt.pop %v2455
      %v2470 = vmul.f32 %v2469, %v2455
      %v2471 = vmul.f32 %v2470, %v2469
      %v2472 = vmul.f32 0.5, %v2471
      %v2473 = vsub.f32 1.5, %v2472
      %v2474 = vmul.f32 %v2469, %v2473
      %vm2475 = vweird.f32 %v2455
      %vm2476 = vweird.f32 %v2469
      %vm2477 = vmor %vm2475, %vm2476
      %v2478 = vsel %vm2477, %v2469, %v2474
      %v2479 = vrsqrt.pop %v2456
      %v2480 = vmul.f32 %v2479, %v2456
      %v2481 = vmul.f32 %v2480, %v2479
      %v2482 = vmul.f32 0.5, %v2481
      %v2483 = vsub.f32 1.5, %v2482
      %v2484 = vmul.f32 %v2479, %v2483
      %vm2485 = vweird.f32 %v2456
      %vm2486 = vweird.f32 %v2479
      %vm2487 = vmor %vm2485, %vm2486
      %v2488 = vsel %vm2487, %v2479, %v2484
      %v2489 = vrsqrt.pop %v2457
      %v2490 = vmul.f32 %v2489, %v2457
      %v2491 = vmul.f32 %v2490, %v2489
      %v2492 = vmul.f32 0.5, %v2491
      %v2493 = vsub.f32 1.5, %v2492
      %v2494 = vmul.f32 %v2489, %v2493
      %vm2495 = vweird.f32 %v2457
      %vm2496 = vweird.f32 %v2489
      %vm2497 = vmor %vm2495, %vm2496
      %v2498 = vsel %vm2497, %v2489, %v2494
      %v2499 = vrsqrt.pop %v2458
      %v2500 = vmul.f32 %v2499, %v2458
      %v2501 = vmul.f32 %v2500, %v2499
      %v2502 = vmul.f32 0.5, %v2501
      %v2503 = vsub.f32 1.5, %v2502
      %v2504 = vmul.f32 %v2499, %v2503
      %vm2505 = vweird.f32 %v2458
      %vm2506 = vweird.f32 %v2499
      %vm2507 = vmor %vm2505, %vm2506
      %v2508 = vsel %vm2507, %v2499, %v2504
      %v2509 = vmul.f32 %v2424, %v2468
      %v2510 = vmul.f32 %v2425, %v2478
      %v2511 = vmul.f32 %v2426, %v2488
      %v2512 = vmul.f32 %v2427, %v2498
      %v2513 = vmul.f32 %v2428, %v2508
      %v2514 = vperm.slane %v1592, 4
      %v2515 = vmul.f32 %v2509, %v2514
      %v2516 = vmul.f32 %v2510, %v2514
      %v2517 = vmul.f32 %v2511, %v2514
      %v2518 = vmul.f32 %v2512, %v2514
      %v2519 = vmul.f32 %v2513, %v2514
      %v2520 = vperm.slane %v1592, 5
      %v2521 = vadd.f32 %v2515, %v2520
      %v2522 = vadd.f32 %v2516, %v2520
      %v2523 = vadd.f32 %v2517, %v2520
      %v2524 = vadd.f32 %v2518, %v2520
      %v2525 = vadd.f32 %v2519, %v2520
      %s2526 = scalar_lea.vmem %s409, 32
      %v2527 = vld [vmem:[%s2526] sm:$0xff]
      %v2528 = vld [vmem:[%s2526 + $0x8] sm:$0xff]
      %v2529 = vld [vmem:[%s2526 + $0x10] sm:$0xff]
      %v2530 = vld [vmem:[%s2526 + $0x18] sm:$0xff]
      %s2531 = scalar_lea.vmem %s414, 128
      %v2532 = vld [vmem:[%s2531] sm:$0xff]
      %v2533 = vld [vmem:[%s2531 + $0x8] sm:$0xff]
      %v2534 = vld [vmem:[%s2531 + $0x10] sm:$0xff]
      %v2535 = vld [vmem:[%s2531 + $0x18] sm:$0xff]
      %v2536 = vld [vmem:[%s2531 + $0x20] sm:$0xff]
      %v2537 = vld [vmem:[%s2531 + $0x28] sm:$0xff]
      %v2538 = vld [vmem:[%s2531 + $0x30] sm:$0xff]
      %v2539 = vld [vmem:[%s2531 + $0x38] sm:$0xff]
      %v2540 = vld [vmem:[%s2531 + $0x40] sm:$0xff]
      %v2541 = vld [vmem:[%s2531 + $0x48] sm:$0xff]
      %v2542 = vld [vmem:[%s2531 + $0x50] sm:$0xff]
      %v2543 = vld [vmem:[%s2531 + $0x58] sm:$0xff]
      %v2544 = vld [vmem:[%s2531 + $0x60] sm:$0xff]
      %v2545 = vld [vmem:[%s2531 + $0x68] sm:$0xff]
      %v2546 = vld [vmem:[%s2531 + $0x70] sm:$0xff]
      %v2547 = vld [vmem:[%s2531 + $0x78] sm:$0xff]
      %v2548 = vperm.slane %v1592, 6
      %v2550 = vsel %vm496, %v2521, 0
      %v2553 = vsel %vm496, %v2522, 0
      %v2556 = vsel %vm496, %v2523, 0
      %v2559 = vsel %vm496, %v2524, 0
      %v2562 = vsel %vm496, %v2525, 0
      %2564 = vmatpush.msra.mxu0 0.0
      %2565 = vmatpush.msra.mxu0 0.0
      %2566 = vmatpush.msra.mxu0 0.0
      %2567 = vmatpush.msra.mxu0 0.0
      %2568 = vmatpush.msra.mxu0 0.0
      %2569 = vmatpush.msra.mxu0 0.0
      %2570 = vmatpush.msra.mxu0 0.0
      %2571 = vmatpush.msra.mxu0 0.0
      %2572 = vmatpush.msra.mxu0 0.0
      %2573 = vmatpush.msra.mxu0 0.0
      %2574 = vmatpush.msra.mxu0 0.0
      %2575 = vmatpush.msra.mxu0 0.0
      %2576 = vmatpush.msra.mxu0 %v2530
      %2577 = vmatpush.msra.mxu0 %v2529
      %2578 = vmatpush.msra.mxu0 %v2528
      %2579 = vmatpush.msra.mxu0 %v2527
      %2580 = vmatmul.f32.gmra.mxu0 %v2550
      %v2581 = vpop.f32.mrf.mxu0
      %v2582 = vadd.f32 %v2548, %v2581
      %2583 = vmatmul.f32.gmra.mxu0 %v2553
      %v2584 = vpop.f32.mrf.mxu0
      %v2585 = vadd.f32 %v2548, %v2584
      %2586 = vmatmul.f32.gmra.mxu0 %v2556
      %v2587 = vpop.f32.mrf.mxu0
      %v2588 = vadd.f32 %v2548, %v2587
      %2589 = vmatmul.f32.gmra.mxu0 %v2559
      %v2590 = vpop.f32.mrf.mxu0
      %v2591 = vadd.f32 %v2548, %v2590
      %2592 = vmatmul.f32.gmra.mxu0 %v2562
      %v2593 = vpop.f32.mrf.mxu0
      %v2594 = vadd.f32 %v2548, %v2593
      %2595 = vdwg.mxu0
      %v2596 = vmul.f32 %v2582, 0.5
      %v2597 = vmul.f32 %v2585, 0.5
      %v2598 = vmul.f32 %v2588, 0.5
      %v2599 = vmul.f32 %v2591, 0.5
      %v2600 = vmul.f32 %v2594, 0.5
      %v2601 = vmul.f32 %v2582, 0.044715
      %v2602 = vmul.f32 %v2585, 0.044715
      %v2603 = vmul.f32 %v2588, 0.044715
      %v2604 = vmul.f32 %v2591, 0.044715
      %v2605 = vmul.f32 %v2594, 0.044715
      %v2606 = vmul.f32 %v2601, %v2582
      %v2607 = vmul.f32 %v2602, %v2585
      %v2608 = vmul.f32 %v2603, %v2588
      %v2609 = vmul.f32 %v2604, %v2591
      %v2610 = vmul.f32 %v2605, %v2594
      %v2611 = vmul.f32 %v2606, %v2582
      %v2612 = vmul.f32 %v2607, %v2585
      %v2613 = vmul.f32 %v2608, %v2588
      %v2614 = vmul.f32 %v2609, %v2591
      %v2615 = vmul.f32 %v2610, %v2594
      %v2616 = vadd.f32 %v2582, %v2611
      %v2617 = vadd.f32 %v2585, %v2612
      %v2618 = vadd.f32 %v2588, %v2613
      %v2619 = vadd.f32 %v2591, %v2614
      %v2620 = vadd.f32 %v2594, %v2615
      %v2621 = vmul.f32 %v2616, 0.7978846
      %v2622 = vmul.f32 %v2617, 0.7978846
      %v2623 = vmul.f32 %v2618, 0.7978846
      %v2624 = vmul.f32 %v2619, 0.7978846
      %v2625 = vmul.f32 %v2620, 0.7978846
      %v2626 = vtanh.pop %v2621
      %v2627 = vtanh.pop %v2622
      %v2628 = vtanh.pop %v2623
      %v2629 = vtanh.pop %v2624
      %v2630 = vtanh.pop %v2625
      %v2631 = vadd.f32 %v2626, 1.0
      %v2632 = vadd.f32 %v2627, 1.0
      %v2633 = vadd.f32 %v2628, 1.0
      %v2634 = vadd.f32 %v2629, 1.0
      %v2635 = vadd.f32 %v2630, 1.0
      %v2636 = vmul.f32 %v2596, %v2631
      %v2637 = vmul.f32 %v2597, %v2632
      %v2638 = vmul.f32 %v2598, %v2633
      %v2639 = vmul.f32 %v2599, %v2634
      %v2640 = vmul.f32 %v2600, %v2635
      %v2641 = vperm.slane %v1592, 7
      %2642 = vmatpush.msra.mxu0 %v2547
      %2643 = vmatpush.msra.mxu0 %v2546
      %2644 = vmatpush.msra.mxu0 %v2545
      %2645 = vmatpush.msra.mxu0 %v2544
      %2646 = vmatpush.msra.mxu0 %v2543
      %2647 = vmatpush.msra.mxu0 %v2542
      %2648 = vmatpush.msra.mxu0 %v2541
      %2649 = vmatpush.msra.mxu0 %v2540
      %2650 = vmatpush.msra.mxu0 %v2539
      %2651 = vmatpush.msra.mxu0 %v2538
      %2652 = vmatpush.msra.mxu0 %v2537
      %2653 = vmatpush.msra.mxu0 %v2536
      %2654 = vmatpush.msra.mxu0 %v2535
      %2655 = vmatpush.msra.mxu0 %v2534
      %2656 = vmatpush.msra.mxu0 %v2533
      %2657 = vmatpush.msra.mxu0 %v2532
      %2658 = vmatmul.f32.gmra.mxu0 %v2636
      %v2659 = vpop.f32.mrf.mxu0
      %v2660 = vadd.f32 %v2641, %v2659
      %2661 = vmatmul.f32.gmra.mxu0 %v2637
      %v2662 = vpop.f32.mrf.mxu0
      %v2663 = vadd.f32 %v2641, %v2662
      %2664 = vmatmul.f32.gmra.mxu0 %v2638
      %v2665 = vpop.f32.mrf.mxu0
      %v2666 = vadd.f32 %v2641, %v2665
      %2667 = vmatmul.f32.gmra.mxu0 %v2639
      %v2668 = vpop.f32.mrf.mxu0
      %v2669 = vadd.f32 %v2641, %v2668
      %2670 = vmatmul.f32.gmra.mxu0 %v2640
      %v2671 = vpop.f32.mrf.mxu0
      %v2672 = vadd.f32 %v2641, %v2671
      %2673 = vdwg.mxu0
      %v2674 = vadd.f32 %v2399, %v2660
      %v2675 = vadd.f32 %v2400, %v2663
      %v2676 = vadd.f32 %v2401, %v2666
      %v2677 = vadd.f32 %v2402, %v2669
      %v2678 = vadd.f32 %v2403, %v2672
      %s2679 = scalar_lea.vmem %s419, 16
      %v2680 = vld [vmem:[%s2679] sm:$0xff]
      %v2681 = vlaneseq
      %v2682 = vand.u32 %v2681, 127
      %v2683 = vlaneseq
      %v2684 = vshrl.u32 %v2683, 7
      %v2685 = vmul.u32 %v2684, 17
      %vm2686 = vcmp.eq.s32.totalorder %v2682, %v2685
      %v2687 = vsel %vm2686, 1.0, 0.0
      %v2689 = vsel %vm757, %v2687, 0
      %v2692 = vsel %vm908, %v2678, 0
      %2694 = vmatpush.msra.mxu0 0.0
      %2695 = vmatpush.msra.mxu0 0.0
      %2696 = vmatpush.msra.mxu0 0.0
      %2697 = vmatpush.msra.mxu0 0.0
      %2698 = vmatpush.msra.mxu0 0.0
      %2699 = vmatpush.msra.mxu0 0.0
      %2700 = vmatpush.msra.mxu0 0.0
      %2701 = vmatpush.msra.mxu0 0.0
      %2702 = vmatpush.msra.mxu0 0.0
      %2703 = vmatpush.msra.mxu0 0.0
      %2704 = vmatpush.msra.mxu0 0.0
      %2705 = vmatpush.msra.mxu0 %v2692
      %2706 = vmatpush.msra.mxu0 %v2677
      %2707 = vmatpush.msra.mxu0 %v2676
      %2708 = vmatpush.msra.mxu0 %v2675
      %2709 = vmatpush.msra.mxu0 %v2674
      %2710 = vmatmul.f32.gmra.mxu0 %v2689
      %v2711 = vpop.f32.mrf.mxu0
      %v2712 = vadd.f32 0.0, %v2711
      %2713 = vdwg.mxu0
      %v2714 = vsel %vm509, %v2712, 0.0
      %2715 = vadd.xlane.f32.xlu0 %v2714
      %v2716 = vpop.xlane.xlu0 %2715
      %v2717 = vmul.f32 %v2716, %v519
      %v2718 = vsub.f32 %v2712, %v2717
      %v2719 = vmul.f32 %v2718, %v2718
      %v2720 = vsel %vm509, %v2719, 0.0
      %2721 = vadd.xlane.f32.xlu0 %v2720
      %v2722 = vpop.xlane.xlu0 %2721
      %v2723 = vmul.f32 %v2722, %v519
      %v2724 = vadd.f32 %v2723, 1e-06
      %v2725 = vrsqrt.pop %v2724
      %v2726 = vmul.f32 %v2725, %v2724
      %v2727 = vmul.f32 %v2726, %v2725
      %v2728 = vmul.f32 0.5, %v2727
      %v2729 = vsub.f32 1.5, %v2728
      %v2730 = vmul.f32 %v2725, %v2729
      %vm2731 = vweird.f32 %v2724
      %vm2732 = vweird.f32 %v2725
      %vm2733 = vmor %vm2731, %vm2732
      %v2734 = vsel %vm2733, %v2725, %v2730
      %v2735 = vmul.f32 %v2718, %v2734
      %v2736 = vperm.slane %v2680, 0
      %v2737 = vmul.f32 %v2735, %v2736
      %v2738 = vperm.slane %v2680, 1
      %v2739 = vadd.f32 %v2737, %v2738
      %2740 = vst.msk [vmem:[%s423] sm:$0x3] %vm509, %v2739
      %p2741 = scmp.lt.s32.totalorder %s19, 1
      %s2742 = scalar_select %p2741, %s19, 1
      %s2743 = smul.addr %s2742, 2
      %s2744 = scalar_lea.vmem %s8, %s2743
      // Predicated region
      $region53: #{forward.3} parent=51 // pred_check
        %p2745 = pneg %p240
      $region54: #{forward.3} parent=51 // pred_check_branch
        %2747 = sbr.rel (%p2745) target = $region56
      $region55: #{forward.3} parent=51 // pred_region
        _
      $region56: #{forward.3} parent=51 // pred_fallthru
        _
    $region52: #{forward.3} parent=5 // pred_fallthru
      _
    %p2748 = scmp.le.s32.totalorder 2, %s14
    // Predicated region
    $region57: #{forward.3} parent=5 // pred_check
      %p2749 = pneg %p2748
    $region58: #{forward.3} parent=5 // pred_check_branch
      %2751 = sbr.rel (%p2749) target = $region60
    $region59: #{forward.3} parent=5 // pred_region
      %s2752 = ssub.s32 %s14, 2
      // Predicated region
      $region61: #{forward.3} parent=59 // pred_check
        %p2753 = pneg %p246
      $region62: #{forward.3} parent=59 // pred_check_branch
        %2755 = sbr.rel (%p2753) target = $region64
      $region63: #{forward.3} parent=59 // pred_region
        %p2756 = scmp.lt.s32.totalorder %s20, 1
        %s2757 = scalar_select %p2756, %s20, 1
        %s2758 = smul.addr %s2757, 2
        %s2759 = scalar_lea.vmem %s8, %s2758
      $region64: #{forward.3} parent=59 // pred_fallthru
        _
    $region60: #{forward.3} parent=5 // pred_fallthru
      _
  $region6: #{forward.3} parent=0 // loop_footer
    %s18 = sadd.s32 1, %s14
  $region7: #{forward.3} parent=0 // loop_footer_branch
    %13 = sbr.rel target = $region3
  $region8: #{forward.3} parent=0 // loop_exit
    _

</llo_original>
